<compile_context>
chip_gen: v7x
topology: tpu7x:2x2x1
jax: 0.10.0
libtpu: 0.0.40
codegen_flags: <defaults>
</compile_context>

<pallas_src>
import functools

import jax
import jax.numpy as jnp
from jax import lax
from jax.experimental import pallas as pl
from jax.experimental.pallas import tpu as pltpu

EPS = 1e-5


# --------------------------------------------------------------------------
# Pass 1: conv + per-sample BN partial sums
# --------------------------------------------------------------------------
def _conv_stats_kernel(x_ref, w_ref, conv_ref, stats_ref, acc_ref, *, H, W):
    # x_ref:     (1, H+2, W+2, Cin)  zero-padded input, one batch sample (NHWC)
    # w_ref:     (9, Cin, Cout)      per-tap weights, tap = kh*3 + kw
    # conv_ref:  (1, H*W, Cout)      f32 conv output for this sample
    # stats_ref: (1, 2, Cout)        [channel sum, channel sum-of-squares]
    # acc_ref:   (H*W, Cout) f32     persistent VMEM scratch accumulator
    Cin = x_ref.shape[-1]

    acc_ref[...] = jnp.zeros_like(acc_ref)
    # 3x3 conv as 9 shifted 2-D matmuls: M = H*W rows feeds the MXU, f32 acc.
    for kh in range(3):
        for kw in range(3):
            patch = x_ref[0, kh:kh + H, kw:kw + W, :]          # (H, W, Cin)
            patch = patch.reshape(H * W, Cin)                  # merge leading dims
            acc_ref[...] += jnp.dot(patch, w_ref[kh * 3 + kw],
                                    preferred_element_type=jnp.float32)

    conv = acc_ref[...]
    conv_ref[0] = conv
    # single-pass statistics (E[x], E[x^2]) accumulated per channel
    stats_ref[0, 0:1, :] = jnp.sum(conv, axis=0, keepdims=True)
    stats_ref[0, 1:2, :] = jnp.sum(conv * conv, axis=0, keepdims=True)


# --------------------------------------------------------------------------
# Pass 2: folded BN affine + ReLU (lane-dense elementwise)
# --------------------------------------------------------------------------
def _bn_relu_kernel(conv_ref, scale_ref, shift_ref, out_ref):
    # conv_ref / out_ref: (1, h_t, W*Cout)   scale_ref/shift_ref: (1, 1, W*Cout)
    out_ref[...] = jnp.maximum(
        conv_ref[...] * scale_ref[...] + shift_ref[...], 0.0
    ).astype(out_ref.dtype)


# --------------------------------------------------------------------------
# Wrapper
# --------------------------------------------------------------------------
def conv_bn_relu(x_nchw, w_oihw, gamma, beta, *, h_tile=8):
    """x_nchw: (N, Cin, H, W); w_oihw: (Cout, Cin, 3, 3); gamma/beta: (Cout,)."""
    N, Cin, H, W = x_nchw.shape
    Cout = w_oihw.shape[0]
    HW = H * W

    # Boundary layout glue (tiny relative to kernel HBM traffic).
    # TODO(synk): fold the NCHW<->NHWC transpose and the 1-px halo pad into the
    # pass-1 input index_map (overlapping halo tiles) to remove these XLA passes.
    x_nhwc = jnp.transpose(x_nchw, (0, 2, 3, 1))
    x_pad = jnp.pad(x_nhwc, ((0, 0), (1, 1), (1, 1), (0, 0)))
    w_taps = jnp.transpose(w_oihw, (2, 3, 1, 0)).reshape(9, Cin, Cout)

    flops = 2 * N * HW * Cin * Cout * 9
    bytes_p1 = 4 * (x_pad.size + w_taps.size + N * HW * Cout + N * 2 * Cout)

    conv, stats = pl.pallas_call(
        functools.partial(_conv_stats_kernel, H=H, W=W),
        grid_spec=pltpu.PrefetchScalarGridSpec(
            num_scalar_prefetch=0,
            grid=(N,),
            in_specs=[
                pl.BlockSpec((1, H + 2, W + 2, Cin), lambda n: (n, 0, 0, 0)),
                pl.BlockSpec((9, Cin, Cout), lambda n: (0, 0, 0)),
            ],
            out_specs=[
                pl.BlockSpec((1, HW, Cout), lambda n: (n, 0, 0)),
                pl.BlockSpec((1, 2, Cout), lambda n: (n, 0, 0)),
            ],
            scratch_shapes=[pltpu.VMEM((HW, Cout), jnp.float32)],
        ),
        out_shape=(
            jax.ShapeDtypeStruct((N, HW, Cout), jnp.float32),
            jax.ShapeDtypeStruct((N, 2, Cout), jnp.float32),
        ),
        compiler_params=pltpu.CompilerParams(
            dimension_semantics=("parallel",),
            vmem_limit_bytes=32 * 1024 * 1024,
        ),
        cost_estimate=pl.CostEstimate(
            flops=int(flops), transcendentals=0, bytes_accessed=int(bytes_p1)),
    )(x_pad, w_taps)

    # Tiny per-channel finalize: biased variance from sum / sum-of-squares,
    # folded BN affine (scale/shift) -> pass 2 is a single FMA + ReLU.
    count = jnp.float32(N * HW)
    ch_sum = jnp.sum(stats[:, 0, :], axis=0)
    ch_sumsq = jnp.sum(stats[:, 1, :], axis=0)
    mean = ch_sum / count
    var = jnp.maximum(ch_sumsq / count - mean * mean, 0.0)
    inv_std = lax.rsqrt(var + EPS)
    scale = gamma * inv_std
    shift = beta - mean * scale

    # Lane-dense view for pass 2: last dim = W*Cout (contiguous reshape, no copy).
    lanes = W * Cout
    conv_v = conv.reshape(N, H, lanes)
    scale_v = jnp.tile(scale, (W,)).reshape(1, 1, lanes)
    shift_v = jnp.tile(shift, (W,)).reshape(1, 1, lanes)

    h_t = h_tile if (H % h_tile == 0) else H
    out_v = pl.pallas_call(
        _bn_relu_kernel,
        grid_spec=pltpu.PrefetchScalarGridSpec(
            num_scalar_prefetch=0,
            grid=(N, H // h_t),
            in_specs=[
                pl.BlockSpec((1, h_t, lanes), lambda n, h: (n, h, 0)),
                pl.BlockSpec((1, 1, lanes), lambda n, h: (0, 0, 0)),
                pl.BlockSpec((1, 1, lanes), lambda n, h: (0, 0, 0)),
            ],
            out_specs=pl.BlockSpec((1, h_t, lanes), lambda n, h: (n, h, 0)),
        ),
        out_shape=jax.ShapeDtypeStruct((N, H, lanes), jnp.float32),
        compiler_params=pltpu.CompilerParams(
            dimension_semantics=("parallel", "parallel"),
            vmem_limit_bytes=32 * 1024 * 1024,
        ),
        cost_estimate=pl.CostEstimate(
            flops=2 * N * H * lanes, transcendentals=0,
            bytes_accessed=int(4 * 2 * N * H * lanes)),
    )(conv_v, scale_v, shift_v)

    out_nhwc = out_v.reshape(N, H, W, Cout)
    return jnp.transpose(out_nhwc, (0, 3, 1, 2))   # back to PyTorch NCHW


# --------------------------------------------------------------------------
# Pure-JAX reference (identical semantics to the PyTorch module in training mode)
# --------------------------------------------------------------------------
def reference(x_nchw, w_oihw, gamma, beta):
    conv = lax.conv_general_dilated(
        x_nchw, w_oihw, window_strides=(1, 1), padding=((1, 1), (1, 1)),
        dimension_numbers=("NCHW", "OIHW", "NCHW"))
    mean = conv.mean(axis=(0, 2, 3), keepdims=True)
    var = ((conv - mean) ** 2).mean(axis=(0, 2, 3), keepdims=True)
    y = (conv - mean) / jnp.sqrt(var + EPS)
    y = y * gamma.reshape(1, -1, 1, 1) + beta.reshape(1, -1, 1, 1)
    return jnp.maximum(y, 0.0)


if __name__ == "__main__":
    N, C_in, C_out, H, W = 2, 4, 8, 16, 16

    key = jax.random.PRNGKey(0)
    kx, kw, kg, kb = jax.random.split(key, 4)

    x = jax.random.normal(kx, (N, C_in, H, W), dtype=jnp.float32)
    w = jax.random.normal(kw, (C_out, C_in, 3, 3), dtype=jnp.float32) * 0.1
    gamma = 1.0 + 0.5 * jax.random.normal(kg, (C_out,), dtype=jnp.float32)
    beta = 0.1 * jax.random.normal(kb, (C_out,), dtype=jnp.float32)

    out = conv_bn_relu(x, w, gamma, beta)
    out = jax.block_until_ready(out)

    ref = reference(x, w, gamma, beta)
    assert out.shape == (N, C_out, H, W)
    err = jnp.max(jnp.abs(out - ref))
    assert jnp.allclose(out, ref, atol=2e-4, rtol=2e-4), f"max abs err = {err}"

    print("KERNEL_OK")
</pallas_src>

<mosaic_0001>
module attributes {stable_mosaic.version = 11 : i64} {
  func.func @_conv_stats_kernel(%arg0: i32, %arg1: memref<1x18x18x4xf32, #tpu.memory_space<vmem>>, %arg2: memref<9x4x8xf32, #tpu.memory_space<vmem>>, %arg3: memref<1x256x8xf32, #tpu.memory_space<vmem>>, %arg4: memref<1x2x8xf32, #tpu.memory_space<vmem>>, %arg5: memref<256x8xf32, #tpu.memory_space<vmem>>) attributes {dimension_semantics = [#tpu.dimension_semantics<parallel>], iteration_bounds = array<i64: 2>, scalar_prefetch = 0 : i64, scratch_operands = 1 : i64, tpu.core_type = #tpu.core_type<tc>, window_params = [{transform_indices = @transform_0, window_bounds = array<i64: 1, 18, 18, 4>}, {pipeline_mode = #tpu.pipeline_mode<synchronous>, transform_indices = @transform_1, window_bounds = array<i64: 9, 4, 8>}, {transform_indices = @transform_2, window_bounds = array<i64: 1, 256, 8>}, {transform_indices = @transform_3, window_bounds = array<i64: 1, 2, 8>}]} {
    %cst = arith.constant 0.000000e+00 : f32
    %0 = vector.broadcast %cst : f32 to vector<256x8xf32>
    %c0 = arith.constant 0 : index
    %c0_0 = arith.constant 0 : index
    %1 = vector.load %arg5[%c0, %c0_0] : memref<256x8xf32, #tpu.memory_space<vmem>>, vector<256x8xf32>
    tpu.vector_store %arg5[%c0, %c0_0], %0 {strides = array<i32>} : memref<256x8xf32, #tpu.memory_space<vmem>>, vector<256x8xf32>,
    %c0_1 = arith.constant 0 : index
    %c0_2 = arith.constant 0 : index
    %c0_3 = arith.constant 0 : index
    %c0_4 = arith.constant 0 : index
    %2 = vector.load %arg1[%c0_1, %c0_2, %c0_3, %c0_4] : memref<1x18x18x4xf32, #tpu.memory_space<vmem>>, vector<1x16x16x4xf32>
    %3 = vector.shape_cast %2 : vector<1x16x16x4xf32> to vector<16x16x4xf32>
    %4 = vector.shape_cast %3 : vector<16x16x4xf32> to vector<256x4xf32>
    %c0_5 = arith.constant 0 : index
    %c0_6 = arith.constant 0 : index
    %5 = vector.load %arg5[%c0_5, %c0_6] : memref<256x8xf32, #tpu.memory_space<vmem>>, vector<256x8xf32>
    %c0_7 = arith.constant 0 : index
    %c0_8 = arith.constant 0 : index
    %c0_9 = arith.constant 0 : index
    %6 = vector.load %arg2[%c0_7, %c0_8, %c0_9] : memref<9x4x8xf32, #tpu.memory_space<vmem>>, vector<1x4x8xf32>
    %7 = vector.shape_cast %6 : vector<1x4x8xf32> to vector<4x8xf32>
    %cst_10 = arith.constant dense<0.000000e+00> : vector<256x8xf32>
    %8 = tpu.matmul %4, %7, %cst_10 {dimension_numbers = #tpu.dot_dimension_numbers<[1], [0], [0], [1], [0, 0, 1, 1], [], []>} : vector<256x4xf32>, vector<4x8xf32>, vector<256x8xf32> -> vector<256x8xf32>
    %9 = arith.addf %5, %8 : vector<256x8xf32>
    %c0_11 = arith.constant 0 : index
    %c0_12 = arith.constant 0 : index
    %10 = vector.load %arg5[%c0_11, %c0_12] : memref<256x8xf32, #tpu.memory_space<vmem>>, vector<256x8xf32>
    tpu.vector_store %arg5[%c0_11, %c0_12], %9 {strides = array<i32>} : memref<256x8xf32, #tpu.memory_space<vmem>>, vector<256x8xf32>,
    %c0_13 = arith.constant 0 : index
    %c0_14 = arith.constant 0 : index
    %c1 = arith.constant 1 : index
    %c0_15 = arith.constant 0 : index
    %11 = vector.load %arg1[%c0_13, %c0_14, %c1, %c0_15] : memref<1x18x18x4xf32, #tpu.memory_space<vmem>>, vector<1x16x16x4xf32>
    %12 = vector.shape_cast %11 : vector<1x16x16x4xf32> to vector<16x16x4xf32>
    %13 = vector.shape_cast %12 : vector<16x16x4xf32> to vector<256x4xf32>
    %c0_16 = arith.constant 0 : index
    %c0_17 = arith.constant 0 : index
    %14 = vector.load %arg5[%c0_16, %c0_17] : memref<256x8xf32, #tpu.memory_space<vmem>>, vector<256x8xf32>
    %c1_18 = arith.constant 1 : index
    %c0_19 = arith.constant 0 : index
    %c0_20 = arith.constant 0 : index
    %15 = vector.load %arg2[%c1_18, %c0_19, %c0_20] : memref<9x4x8xf32, #tpu.memory_space<vmem>>, vector<1x4x8xf32>
    %16 = vector.shape_cast %15 : vector<1x4x8xf32> to vector<4x8xf32>
    %cst_21 = arith.constant dense<0.000000e+00> : vector<256x8xf32>
    %17 = tpu.matmul %13, %16, %cst_21 {dimension_numbers = #tpu.dot_dimension_numbers<[1], [0], [0], [1], [0, 0, 1, 1], [], []>} : vector<256x4xf32>, vector<4x8xf32>, vector<256x8xf32> -> vector<256x8xf32>
    %18 = arith.addf %14, %17 : vector<256x8xf32>
    %c0_22 = arith.constant 0 : index
    %c0_23 = arith.constant 0 : index
    %19 = vector.load %arg5[%c0_22, %c0_23] : memref<256x8xf32, #tpu.memory_space<vmem>>, vector<256x8xf32>
    tpu.vector_store %arg5[%c0_22, %c0_23], %18 {strides = array<i32>} : memref<256x8xf32, #tpu.memory_space<vmem>>, vector<256x8xf32>,
    %c0_24 = arith.constant 0 : index
    %c0_25 = arith.constant 0 : index
    %c2 = arith.constant 2 : index
    %c0_26 = arith.constant 0 : index
    %20 = vector.load %arg1[%c0_24, %c0_25, %c2, %c0_26] : memref<1x18x18x4xf32, #tpu.memory_space<vmem>>, vector<1x16x16x4xf32>
    %21 = vector.shape_cast %20 : vector<1x16x16x4xf32> to vector<16x16x4xf32>
    %22 = vector.shape_cast %21 : vector<16x16x4xf32> to vector<256x4xf32>
    %c0_27 = arith.constant 0 : index
    %c0_28 = arith.constant 0 : index
    %23 = vector.load %arg5[%c0_27, %c0_28] : memref<256x8xf32, #tpu.memory_space<vmem>>, vector<256x8xf32>
    %c2_29 = arith.constant 2 : index
    %c0_30 = arith.constant 0 : index
    %c0_31 = arith.constant 0 : index
    %24 = vector.load %arg2[%c2_29, %c0_30, %c0_31] : memref<9x4x8xf32, #tpu.memory_space<vmem>>, vector<1x4x8xf32>
    %25 = vector.shape_cast %24 : vector<1x4x8xf32> to vector<4x8xf32>
    %cst_32 = arith.constant dense<0.000000e+00> : vector<256x8xf32>
    %26 = tpu.matmul %22, %25, %cst_32 {dimension_numbers = #tpu.dot_dimension_numbers<[1], [0], [0], [1], [0, 0, 1, 1], [], []>} : vector<256x4xf32>, vector<4x8xf32>, vector<256x8xf32> -> vector<256x8xf32>
    %27 = arith.addf %23, %26 : vector<256x8xf32>
    %c0_33 = arith.constant 0 : index
    %c0_34 = arith.constant 0 : index
    %28 = vector.load %arg5[%c0_33, %c0_34] : memref<256x8xf32, #tpu.memory_space<vmem>>, vector<256x8xf32>
    tpu.vector_store %arg5[%c0_33, %c0_34], %27 {strides = array<i32>} : memref<256x8xf32, #tpu.memory_space<vmem>>, vector<256x8xf32>,
    %c0_35 = arith.constant 0 : index
    %c1_36 = arith.constant 1 : index
    %c0_37 = arith.constant 0 : index
    %c0_38 = arith.constant 0 : index
    %29 = vector.load %arg1[%c0_35, %c1_36, %c0_37, %c0_38] : memref<1x18x18x4xf32, #tpu.memory_space<vmem>>, vector<1x16x16x4xf32>
    %30 = vector.shape_cast %29 : vector<1x16x16x4xf32> to vector<16x16x4xf32>
    %31 = vector.shape_cast %30 : vector<16x16x4xf32> to vector<256x4xf32>
    %c0_39 = arith.constant 0 : index
    %c0_40 = arith.constant 0 : index
    %32 = vector.load %arg5[%c0_39, %c0_40] : memref<256x8xf32, #tpu.memory_space<vmem>>, vector<256x8xf32>
    %c3 = arith.constant 3 : index
    %c0_41 = arith.constant 0 : index
    %c0_42 = arith.constant 0 : index
    %33 = vector.load %arg2[%c3, %c0_41, %c0_42] : memref<9x4x8xf32, #tpu.memory_space<vmem>>, vector<1x4x8xf32>
    %34 = vector.shape_cast %33 : vector<1x4x8xf32> to vector<4x8xf32>
    %cst_43 = arith.constant dense<0.000000e+00> : vector<256x8xf32>
    %35 = tpu.matmul %31, %34, %cst_43 {dimension_numbers = #tpu.dot_dimension_numbers<[1], [0], [0], [1], [0, 0, 1, 1], [], []>} : vector<256x4xf32>, vector<4x8xf32>, vector<256x8xf32> -> vector<256x8xf32>
    %36 = arith.addf %32, %35 : vector<256x8xf32>
    %c0_44 = arith.constant 0 : index
    %c0_45 = arith.constant 0 : index
    %37 = vector.load %arg5[%c0_44, %c0_45] : memref<256x8xf32, #tpu.memory_space<vmem>>, vector<256x8xf32>
    tpu.vector_store %arg5[%c0_44, %c0_45], %36 {strides = array<i32>} : memref<256x8xf32, #tpu.memory_space<vmem>>, vector<256x8xf32>,
    %c0_46 = arith.constant 0 : index
    %c1_47 = arith.constant 1 : index
    %c1_48 = arith.constant 1 : index
    %c0_49 = arith.constant 0 : index
    %38 = vector.load %arg1[%c0_46, %c1_47, %c1_48, %c0_49] : memref<1x18x18x4xf32, #tpu.memory_space<vmem>>, vector<1x16x16x4xf32>
    %39 = vector.shape_cast %38 : vector<1x16x16x4xf32> to vector<16x16x4xf32>
    %40 = vector.shape_cast %39 : vector<16x16x4xf32> to vector<256x4xf32>
    %c0_50 = arith.constant 0 : index
    %c0_51 = arith.constant 0 : index
    %41 = vector.load %arg5[%c0_50, %c0_51] : memref<256x8xf32, #tpu.memory_space<vmem>>, vector<256x8xf32>
    %c4 = arith.constant 4 : index
    %c0_52 = arith.constant 0 : index
    %c0_53 = arith.constant 0 : index
    %42 = vector.load %arg2[%c4, %c0_52, %c0_53] : memref<9x4x8xf32, #tpu.memory_space<vmem>>, vector<1x4x8xf32>
    %43 = vector.shape_cast %42 : vector<1x4x8xf32> to vector<4x8xf32>
    %cst_54 = arith.constant dense<0.000000e+00> : vector<256x8xf32>
    %44 = tpu.matmul %40, %43, %cst_54 {dimension_numbers = #tpu.dot_dimension_numbers<[1], [0], [0], [1], [0, 0, 1, 1], [], []>} : vector<256x4xf32>, vector<4x8xf32>, vector<256x8xf32> -> vector<256x8xf32>
    %45 = arith.addf %41, %44 : vector<256x8xf32>
    %c0_55 = arith.constant 0 : index
    %c0_56 = arith.constant 0 : index
    %46 = vector.load %arg5[%c0_55, %c0_56] : memref<256x8xf32, #tpu.memory_space<vmem>>, vector<256x8xf32>
    tpu.vector_store %arg5[%c0_55, %c0_56], %45 {strides = array<i32>} : memref<256x8xf32, #tpu.memory_space<vmem>>, vector<256x8xf32>,
    %c0_57 = arith.constant 0 : index
    %c1_58 = arith.constant 1 : index
    %c2_59 = arith.constant 2 : index
    %c0_60 = arith.constant 0 : index
    %47 = vector.load %arg1[%c0_57, %c1_58, %c2_59, %c0_60] : memref<1x18x18x4xf32, #tpu.memory_space<vmem>>, vector<1x16x16x4xf32>
    %48 = vector.shape_cast %47 : vector<1x16x16x4xf32> to vector<16x16x4xf32>
    %49 = vector.shape_cast %48 : vector<16x16x4xf32> to vector<256x4xf32>
    %c0_61 = arith.constant 0 : index
    %c0_62 = arith.constant 0 : index
    %50 = vector.load %arg5[%c0_61, %c0_62] : memref<256x8xf32, #tpu.memory_space<vmem>>, vector<256x8xf32>
    %c5 = arith.constant 5 : index
    %c0_63 = arith.constant 0 : index
    %c0_64 = arith.constant 0 : index
    %51 = vector.load %arg2[%c5, %c0_63, %c0_64] : memref<9x4x8xf32, #tpu.memory_space<vmem>>, vector<1x4x8xf32>
    %52 = vector.shape_cast %51 : vector<1x4x8xf32> to vector<4x8xf32>
    %cst_65 = arith.constant dense<0.000000e+00> : vector<256x8xf32>
    %53 = tpu.matmul %49, %52, %cst_65 {dimension_numbers = #tpu.dot_dimension_numbers<[1], [0], [0], [1], [0, 0, 1, 1], [], []>} : vector<256x4xf32>, vector<4x8xf32>, vector<256x8xf32> -> vector<256x8xf32>
    %54 = arith.addf %50, %53 : vector<256x8xf32>
    %c0_66 = arith.constant 0 : index
    %c0_67 = arith.constant 0 : index
    %55 = vector.load %arg5[%c0_66, %c0_67] : memref<256x8xf32, #tpu.memory_space<vmem>>, vector<256x8xf32>
    tpu.vector_store %arg5[%c0_66, %c0_67], %54 {strides = array<i32>} : memref<256x8xf32, #tpu.memory_space<vmem>>, vector<256x8xf32>,
    %c0_68 = arith.constant 0 : index
    %c2_69 = arith.constant 2 : index
    %c0_70 = arith.constant 0 : index
    %c0_71 = arith.constant 0 : index
    %56 = vector.load %arg1[%c0_68, %c2_69, %c0_70, %c0_71] : memref<1x18x18x4xf32, #tpu.memory_space<vmem>>, vector<1x16x16x4xf32>
    %57 = vector.shape_cast %56 : vector<1x16x16x4xf32> to vector<16x16x4xf32>
    %58 = vector.shape_cast %57 : vector<16x16x4xf32> to vector<256x4xf32>
    %c0_72 = arith.constant 0 : index
    %c0_73 = arith.constant 0 : index
    %59 = vector.load %arg5[%c0_72, %c0_73] : memref<256x8xf32, #tpu.memory_space<vmem>>, vector<256x8xf32>
    %c6 = arith.constant 6 : index
    %c0_74 = arith.constant 0 : index
    %c0_75 = arith.constant 0 : index
    %60 = vector.load %arg2[%c6, %c0_74, %c0_75] : memref<9x4x8xf32, #tpu.memory_space<vmem>>, vector<1x4x8xf32>
    %61 = vector.shape_cast %60 : vector<1x4x8xf32> to vector<4x8xf32>
    %cst_76 = arith.constant dense<0.000000e+00> : vector<256x8xf32>
    %62 = tpu.matmul %58, %61, %cst_76 {dimension_numbers = #tpu.dot_dimension_numbers<[1], [0], [0], [1], [0, 0, 1, 1], [], []>} : vector<256x4xf32>, vector<4x8xf32>, vector<256x8xf32> -> vector<256x8xf32>
    %63 = arith.addf %59, %62 : vector<256x8xf32>
    %c0_77 = arith.constant 0 : index
    %c0_78 = arith.constant 0 : index
    %64 = vector.load %arg5[%c0_77, %c0_78] : memref<256x8xf32, #tpu.memory_space<vmem>>, vector<256x8xf32>
    tpu.vector_store %arg5[%c0_77, %c0_78], %63 {strides = array<i32>} : memref<256x8xf32, #tpu.memory_space<vmem>>, vector<256x8xf32>,
    %c0_79 = arith.constant 0 : index
    %c2_80 = arith.constant 2 : index
    %c1_81 = arith.constant 1 : index
    %c0_82 = arith.constant 0 : index
    %65 = vector.load %arg1[%c0_79, %c2_80, %c1_81, %c0_82] : memref<1x18x18x4xf32, #tpu.memory_space<vmem>>, vector<1x16x16x4xf32>
    %66 = vector.shape_cast %65 : vector<1x16x16x4xf32> to vector<16x16x4xf32>
    %67 = vector.shape_cast %66 : vector<16x16x4xf32> to vector<256x4xf32>
    %c0_83 = arith.constant 0 : index
    %c0_84 = arith.constant 0 : index
    %68 = vector.load %arg5[%c0_83, %c0_84] : memref<256x8xf32, #tpu.memory_space<vmem>>, vector<256x8xf32>
    %c7 = arith.constant 7 : index
    %c0_85 = arith.constant 0 : index
    %c0_86 = arith.constant 0 : index
    %69 = vector.load %arg2[%c7, %c0_85, %c0_86] : memref<9x4x8xf32, #tpu.memory_space<vmem>>, vector<1x4x8xf32>
    %70 = vector.shape_cast %69 : vector<1x4x8xf32> to vector<4x8xf32>
    %cst_87 = arith.constant dense<0.000000e+00> : vector<256x8xf32>
    %71 = tpu.matmul %67, %70, %cst_87 {dimension_numbers = #tpu.dot_dimension_numbers<[1], [0], [0], [1], [0, 0, 1, 1], [], []>} : vector<256x4xf32>, vector<4x8xf32>, vector<256x8xf32> -> vector<256x8xf32>
    %72 = arith.addf %68, %71 : vector<256x8xf32>
    %c0_88 = arith.constant 0 : index
    %c0_89 = arith.constant 0 : index
    %73 = vector.load %arg5[%c0_88, %c0_89] : memref<256x8xf32, #tpu.memory_space<vmem>>, vector<256x8xf32>
    tpu.vector_store %arg5[%c0_88, %c0_89], %72 {strides = array<i32>} : memref<256x8xf32, #tpu.memory_space<vmem>>, vector<256x8xf32>,
    %c0_90 = arith.constant 0 : index
    %c2_91 = arith.constant 2 : index
    %c2_92 = arith.constant 2 : index
    %c0_93 = arith.constant 0 : index
    %74 = vector.load %arg1[%c0_90, %c2_91, %c2_92, %c0_93] : memref<1x18x18x4xf32, #tpu.memory_space<vmem>>, vector<1x16x16x4xf32>
    %75 = vector.shape_cast %74 : vector<1x16x16x4xf32> to vector<16x16x4xf32>
    %76 = vector.shape_cast %75 : vector<16x16x4xf32> to vector<256x4xf32>
    %c0_94 = arith.constant 0 : index
    %c0_95 = arith.constant 0 : index
    %77 = vector.load %arg5[%c0_94, %c0_95] : memref<256x8xf32, #tpu.memory_space<vmem>>, vector<256x8xf32>
    %c8 = arith.constant 8 : index
    %c0_96 = arith.constant 0 : index
    %c0_97 = arith.constant 0 : index
    %78 = vector.load %arg2[%c8, %c0_96, %c0_97] : memref<9x4x8xf32, #tpu.memory_space<vmem>>, vector<1x4x8xf32>
    %79 = vector.shape_cast %78 : vector<1x4x8xf32> to vector<4x8xf32>
    %cst_98 = arith.constant dense<0.000000e+00> : vector<256x8xf32>
    %80 = tpu.matmul %76, %79, %cst_98 {dimension_numbers = #tpu.dot_dimension_numbers<[1], [0], [0], [1], [0, 0, 1, 1], [], []>} : vector<256x4xf32>, vector<4x8xf32>, vector<256x8xf32> -> vector<256x8xf32>
    %81 = arith.addf %77, %80 : vector<256x8xf32>
    %c0_99 = arith.constant 0 : index
    %c0_100 = arith.constant 0 : index
    %82 = vector.load %arg5[%c0_99, %c0_100] : memref<256x8xf32, #tpu.memory_space<vmem>>, vector<256x8xf32>
    tpu.vector_store %arg5[%c0_99, %c0_100], %81 {strides = array<i32>} : memref<256x8xf32, #tpu.memory_space<vmem>>, vector<256x8xf32>,
    %c0_101 = arith.constant 0 : index
    %c0_102 = arith.constant 0 : index
    %83 = vector.load %arg5[%c0_101, %c0_102] : memref<256x8xf32, #tpu.memory_space<vmem>>, vector<256x8xf32>
    %c0_103 = arith.constant 0 : index
    %c0_104 = arith.constant 0 : index
    %c0_105 = arith.constant 0 : index
    %84 = vector.load %arg3[%c0_103, %c0_104, %c0_105] : memref<1x256x8xf32, #tpu.memory_space<vmem>>, vector<1x256x8xf32>
    %85 = vector.shape_cast %84 : vector<1x256x8xf32> to vector<256x8xf32>
    %86 = vector.shape_cast %83 : vector<256x8xf32> to vector<1x256x8xf32>
    tpu.vector_store %arg3[%c0_103, %c0_104, %c0_105], %86 {strides = array<i32>} : memref<1x256x8xf32, #tpu.memory_space<vmem>>, vector<1x256x8xf32>,
    %cst_106 = arith.constant dense<0.000000e+00> : vector<8xf32>
    %87 = vector.multi_reduction <add>, %83, %cst_106 [0] : vector<256x8xf32> to vector<8xf32>
    %88 = vector.shape_cast %87 : vector<8xf32> to vector<1x8xf32>
    %c0_107 = arith.constant 0 : index
    %c0_108 = arith.constant 0 : index
    %c0_109 = arith.constant 0 : index
    %89 = vector.load %arg4[%c0_107, %c0_108, %c0_109] : memref<1x2x8xf32, #tpu.memory_space<vmem>>, vector<1x1x8xf32>
    %90 = vector.shape_cast %89 : vector<1x1x8xf32> to vector<1x8xf32>
    %91 = vector.shape_cast %88 : vector<1x8xf32> to vector<1x1x8xf32>
    tpu.vector_store %arg4[%c0_107, %c0_108, %c0_109], %91 {strides = array<i32>} : memref<1x2x8xf32, #tpu.memory_space<vmem>>, vector<1x1x8xf32>,
    %92 = arith.mulf %83, %83 : vector<256x8xf32>
    %cst_110 = arith.constant dense<0.000000e+00> : vector<8xf32>
    %93 = vector.multi_reduction <add>, %92, %cst_110 [0] : vector<256x8xf32> to vector<8xf32>
    %94 = vector.shape_cast %93 : vector<8xf32> to vector<1x8xf32>
    %c0_111 = arith.constant 0 : index
    %c1_112 = arith.constant 1 : index
    %c0_113 = arith.constant 0 : index
    %95 = vector.load %arg4[%c0_111, %c1_112, %c0_113] : memref<1x2x8xf32, #tpu.memory_space<vmem>>, vector<1x1x8xf32>
    %96 = vector.shape_cast %95 : vector<1x1x8xf32> to vector<1x8xf32>
    %97 = vector.shape_cast %94 : vector<1x8xf32> to vector<1x1x8xf32>
    tpu.vector_store %arg4[%c0_111, %c1_112, %c0_113], %97 {strides = array<i32>} : memref<1x2x8xf32, #tpu.memory_space<vmem>>, vector<1x1x8xf32>,
    return
  }
  func.func @transform_0(%arg0: i32) -> (i32, i32, i32, i32) {
    %c0_i32 = arith.constant 0 : i32
    %c0_i32_0 = arith.constant 0 : i32
    %c0_i32_1 = arith.constant 0 : i32
    %c0_i32_2 = arith.constant 0 : i32
    return %arg0, %c0_i32, %c0_i32_0, %c0_i32_1 : i32, i32, i32, i32
  }
  func.func @transform_1(%arg0: i32) -> (i32, i32, i32) {
    %c0_i32 = arith.constant 0 : i32
    %c0_i32_0 = arith.constant 0 : i32
    %c0_i32_1 = arith.constant 0 : i32
    %c0_i32_2 = arith.constant 0 : i32
    return %c0_i32, %c0_i32_0, %c0_i32_1 : i32, i32, i32
  }
  func.func @transform_2(%arg0: i32) -> (i32, i32, i32) {
    %c0_i32 = arith.constant 0 : i32
    %c0_i32_0 = arith.constant 0 : i32
    %c0_i32_1 = arith.constant 0 : i32
    return %arg0, %c0_i32, %c0_i32_0 : i32, i32, i32
  }
  func.func @transform_3(%arg0: i32) -> (i32, i32, i32) {
    %c0_i32 = arith.constant 0 : i32
    %c0_i32_0 = arith.constant 0 : i32
    %c0_i32_1 = arith.constant 0 : i32
    return %arg0, %c0_i32, %c0_i32_0 : i32, i32, i32
  }
}

</mosaic_0001>

<llo_original>
// kernel: tpu_custom_call.1
$region0: #{tpu_custom_call.1}
  #allocation0 [shape = 'u32[]', space=smem, size = 0x4, offset = 0x4, fixed_abs, tag = 'smem constant byte address 0x4 - core index']
  #allocation1 [shape = 'u32[144,128]{1,0:T(1,128)}', space=vmem, size = 0x12000, scoped, tag = 'internal scratch']
  #allocation2 [shape = 'f32[256,8]{1,0:T(8,128)}', space=vmem, size = 0x20000, scoped, tag = 'scratch operand']
  %s0 = inlined_call_operand.vmem [shape: f32[2,18,18,4], index: 0, kind: input, shape index: {}]
  %s1 = inlined_call_operand.vmem [shape: f32[9,4,8], index: 1, kind: input, shape index: {}]
  %s2 = inlined_call_operand.vmem [shape: f32[2,256,8], index: 2, kind: output, shape index: {0}]
  %s3 = inlined_call_operand.hbm [shape: f32[2,2,8], index: 3, kind: output, shape index: {1}]
  %4 = xla_tuple %s2, %s3
  %s5 = sld [smem:[#allocation0]]
  $region49: #{tpu_custom_call.1} parent=0
    _
  %s7 = ssub.s32 1, %s5
  %s8 = scalar_select 0, %s7, %s5
  $region1: #{tpu_custom_call.1} parent=0
    #allocation3 [shape = 'u8[2048]{0}', space=vmem, size = 0x800, scoped, tag = 'output window, operand 1']
    #allocation4 [shape = 's32[2]{0}', space=sflag, size = 0x8, scoped, tag = 'scoped memory for tpu_custom_call.1']
    %9 = vsyncpa [#allocation4], 0
    %s10 = scalar_lea.sflag [#allocation4], 1
    %11 = vsyncpa %s10, 0
    loop: start=0, step=1, limit=4
    $region2: #{tpu_custom_call.1} parent=1 // loop_pre_header
      _
    $region3: #{tpu_custom_call.1} parent=1 // loop_header
      %s13 = sphi 0, %s17
      %p14 = scmp.ge.s32.totalorder %s13, 4
      %s23 = sphi 0, %s25
      %s26 = sphi 0, %s23
      %s27 = sphi 0, %s26
      %s43 = sphi 0, %s27
      %s47 = sphi 0, %s47
      %s49 = sphi 0, %s47
      %s50 = sphi 0, %s49
      %s64 = sphi 0, %s50
      %s70 = sphi 0, %s72
      %s73 = sphi 0, %s70
      %s74 = sphi 0, %s73
      %s90 = sphi 0, %s74
      %s96 = sphi 0, %s98
      %s99 = sphi 0, %s96
      %s100 = sphi 0, %s99
      %s116 = sphi 0, %s100
    $region4: #{tpu_custom_call.1} parent=1 // loop_header_branch
      %16 = sbr.rel (%p14) target = $region8
    $region5: #{tpu_custom_call.1} parent=1 // loop_body
      %s18 = ssub.s32 %s13, 1
      %s19 = ssub.s32 %s13, 2
      %s20 = sadd.s32 %s13, 1
      %s21 = ssub.s32 %s13, %s20
      %p22 = scmp.eq.s32.totalorder %s21, 0
      %s24 = sadd.s32 %s23, 1
      %s25 = scalar_select %p22, %s23, %s24
      %p28 = pneg %p22
      %p29 = scmp.eq.s32.totalorder %s13, 1
      %p30 = por %p28, %p29
      %p31 = scmp.ne.s32.totalorder %s23, %s26
      %p32 = scmp.eq.s32.totalorder %s13, 0
      %p33 = por %p31, %p32
      %p34 = scmp.ne.s32.totalorder %s23, %s26
      %p35 = scmp.eq.s32.totalorder %s18, 1
      %p36 = por %p34, %p35
      %p37 = scmp.ne.s32.totalorder %s26, %s27
      %p38 = scmp.eq.s32.totalorder %s18, 0
      %p39 = por %p37, %p38
      %p40 = scmp.ne.s32.totalorder %s26, %s27
      %p41 = scmp.eq.s32.totalorder %s19, 1
      %p42 = por %p40, %p41
      %p44 = scmp.ne.s32.totalorder %s27, %s43
      %p45 = scmp.eq.s32.totalorder %s19, 0
      %p46 = por %p44, %p45
      %s48 = sadd.s32 %s47, 1
      %p51 = scmp.eq.s32.totalorder %s13, 1
      %p52 = scmp.ne.s32.totalorder %s47, %s49
      %p53 = scmp.eq.s32.totalorder %s13, 0
      %p54 = por %p52, %p53
      %p55 = scmp.ne.s32.totalorder %s47, %s49
      %p56 = scmp.eq.s32.totalorder %s18, 1
      %p57 = por %p55, %p56
      %p58 = scmp.ne.s32.totalorder %s49, %s50
      %p59 = scmp.eq.s32.totalorder %s18, 0
      %p60 = por %p58, %p59
      %p61 = scmp.ne.s32.totalorder %s49, %s50
      %p62 = scmp.eq.s32.totalorder %s19, 1
      %p63 = por %p61, %p62
      %p65 = scmp.ne.s32.totalorder %s50, %s64
      %p66 = scmp.eq.s32.totalorder %s19, 0
      %p67 = por %p65, %p66
      %s68 = ssub.s32 %s13, %s20
      %p69 = scmp.eq.s32.totalorder %s68, 0
      %s71 = sadd.s32 %s70, 1
      %s72 = scalar_select %p69, %s70, %s71
      %p75 = pneg %p69
      %p76 = scmp.eq.s32.totalorder %s13, 1
      %p77 = por %p75, %p76
      %p78 = scmp.ne.s32.totalorder %s70, %s73
      %p79 = scmp.eq.s32.totalorder %s13, 0
      %p80 = por %p78, %p79
      %p81 = scmp.ne.s32.totalorder %s70, %s73
      %p82 = scmp.eq.s32.totalorder %s18, 1
      %p83 = por %p81, %p82
      %p84 = scmp.ne.s32.totalorder %s73, %s74
      %p85 = scmp.eq.s32.totalorder %s18, 0
      %p86 = por %p84, %p85
      %p87 = scmp.ne.s32.totalorder %s73, %s74
      %p88 = scmp.eq.s32.totalorder %s19, 1
      %p89 = por %p87, %p88
      %p91 = scmp.ne.s32.totalorder %s74, %s90
      %p92 = scmp.eq.s32.totalorder %s19, 0
      %p93 = por %p91, %p92
      %s94 = ssub.s32 %s13, %s20
      %p95 = scmp.eq.s32.totalorder %s94, 0
      %s97 = sadd.s32 %s96, 1
      %s98 = scalar_select %p95, %s96, %s97
      %p101 = pneg %p95
      %p102 = scmp.eq.s32.totalorder %s13, 1
      %p103 = por %p101, %p102
      %p104 = scmp.ne.s32.totalorder %s96, %s99
      %p105 = scmp.eq.s32.totalorder %s13, 0
      %p106 = por %p104, %p105
      %p107 = scmp.ne.s32.totalorder %s96, %s99
      %p108 = scmp.eq.s32.totalorder %s18, 1
      %p109 = por %p107, %p108
      %p110 = scmp.ne.s32.totalorder %s99, %s100
      %p111 = scmp.eq.s32.totalorder %s18, 0
      %p112 = por %p110, %p111
      %p113 = scmp.ne.s32.totalorder %s99, %s100
      %p114 = scmp.eq.s32.totalorder %s19, 1
      %p115 = por %p113, %p114
      %p117 = scmp.ne.s32.totalorder %s100, %s116
      %p118 = scmp.eq.s32.totalorder %s19, 0
      %p119 = por %p117, %p118
      %p120 = scmp.le.s32.totalorder 1, %s13
      %p121 = scmp.lt.s32.totalorder %s13, 3
      %p122 = pnand %p120, %p121
      %p123 = pneg %p122
      // Predicated region
      $region9: #{tpu_custom_call.1} parent=5 // pred_check
        _
      $region10: #{tpu_custom_call.1} parent=5 // pred_check_branch
        %125 = sbr.rel (%p122) target = $region12
      $region11: #{tpu_custom_call.1} parent=5 // pred_region
        %s126 = ssub.s32 %s13, 1
        // Predicated region
        $region13: #{tpu_custom_call.1} parent=11 // pred_check
          %p127 = pneg %p60
        $region14: #{tpu_custom_call.1} parent=11 // pred_check_branch
          %129 = sbr.rel (%p127) target = $region16
        $region15: #{tpu_custom_call.1} parent=11 // pred_region
          _
        $region16: #{tpu_custom_call.1} parent=11 // pred_fallthru
          _
      $region12: #{tpu_custom_call.1} parent=5 // pred_fallthru
        _
      %p130 = scmp.lt.s32.totalorder %s13, 2
      // Predicated region
      $region17: #{tpu_custom_call.1} parent=5 // pred_check
        %p131 = pneg %p130
      $region18: #{tpu_custom_call.1} parent=5 // pred_check_branch
        %133 = sbr.rel (%p131) target = $region20
      $region19: #{tpu_custom_call.1} parent=5 // pred_region
        // Predicated region
        $region21: #{tpu_custom_call.1} parent=19 // pred_check
          %p134 = pneg %p33
        $region22: #{tpu_custom_call.1} parent=19 // pred_check_branch
          %136 = sbr.rel (%p134) target = $region24
        $region23: #{tpu_custom_call.1} parent=19 // pred_region
          %p137 = scmp.lt.s32.totalorder %s13, 1
          %s138 = scalar_select %p137, %s13, 1
          %s139 = smul.addr %s138, 54
          %s140 = smul.addr %s139, 8
          %s141 = scalar_lea.vmem %s0, %s140
        $region24: #{tpu_custom_call.1} parent=19 // pred_fallthru
          _
      $region20: #{tpu_custom_call.1} parent=5 // pred_fallthru
        _
      %p142 = scmp.le.s32.totalorder 1, %s13
      %p143 = scmp.lt.s32.totalorder %s13, 3
      %p144 = pnand %p142, %p143
      %p145 = pneg %p144
      // Predicated region
      $region25: #{tpu_custom_call.1} parent=5 // pred_check
        _
      $region26: #{tpu_custom_call.1} parent=5 // pred_check_branch
        %147 = sbr.rel (%p144) target = $region28
      $region27: #{tpu_custom_call.1} parent=5 // pred_region
        %s148 = ssub.s32 %s13, 1
        %p149 = scmp.lt.s32.totalorder %s18, 1
        %s150 = scalar_select %p149, %s18, 1
        %s151 = smul.addr %s150, 54
        %s152 = smul.addr %s151, 8
        %s153 = scalar_lea.vmem %s0, %s152
        %p154 = pneg %p39
        %p155 = pneg %p36
        %p156 = pneg %p60
        %p157 = pneg %p57
        %p158 = pneg %p86
        %p159 = pneg %p83
        %p160 = scmp.lt.s32.totalorder %s18, 1
        %s161 = scalar_select %p160, %s18, 1
        %s162 = smul.addr %s161, 32
        %s163 = smul.addr %s162, 8
        %s164 = scalar_lea.vmem %s2, %s163
        %p165 = pneg %p112
        %p166 = pneg %p109
        %s167 = sand.u32 %s99, 1
        %s168 = scalar_lea.sflag [#allocation4], %s167
        %s169 = sand.u32 %s99, 1
        %s170 = smul.addr %s169, 2
        %s171 = scalar_lea.vmem [#allocation3], %s170
        %p172 = scmp.lt.s32.totalorder %s18, 1
        %s173 = scalar_select %p172, %s18, 1
        %s174 = smul.addr %s173, 54
        %s175 = smul.addr %s174, 8
        %s176 = scalar_lea.vmem %s0, %s175
        %p177 = scmp.lt.s32.totalorder %s18, 1
        %s178 = scalar_select %p177, %s18, 1
        %s179 = smul.addr %s178, 32
        %s180 = smul.addr %s179, 8
        %s181 = scalar_lea.vmem %s2, %s180
        %vm182 = vcmask 64512
        %183 = vst.msk [vmem:[#allocation2] sm:$0xff] %vm182, 0.0
        %184 = vst.msk [vmem:[#allocation2 + $0x8] sm:$0xff] %vm182, 0.0
        %185 = vst.msk [vmem:[#allocation2 + $0x10] sm:$0xff] %vm182, 0.0
        %186 = vst.msk [vmem:[#allocation2 + $0x18] sm:$0xff] %vm182, 0.0
        %187 = vst.msk [vmem:[#allocation2 + $0x20] sm:$0xff] %vm182, 0.0
        %188 = vst.msk [vmem:[#allocation2 + $0x28] sm:$0xff] %vm182, 0.0
        %189 = vst.msk [vmem:[#allocation2 + $0x30] sm:$0xff] %vm182, 0.0
        %190 = vst.msk [vmem:[#allocation2 + $0x38] sm:$0xff] %vm182, 0.0
        %191 = vst.msk [vmem:[#allocation2 + $0x40] sm:$0xff] %vm182, 0.0
        %192 = vst.msk [vmem:[#allocation2 + $0x48] sm:$0xff] %vm182, 0.0
        %193 = vst.msk [vmem:[#allocation2 + $0x50] sm:$0xff] %vm182, 0.0
        %194 = vst.msk [vmem:[#allocation2 + $0x58] sm:$0xff] %vm182, 0.0
        %195 = vst.msk [vmem:[#allocation2 + $0x60] sm:$0xff] %vm182, 0.0
        %196 = vst.msk [vmem:[#allocation2 + $0x68] sm:$0xff] %vm182, 0.0
        %197 = vst.msk [vmem:[#allocation2 + $0x70] sm:$0xff] %vm182, 0.0
        %198 = vst.msk [vmem:[#allocation2 + $0x78] sm:$0xff] %vm182, 0.0
        %199 = vst.msk [vmem:[#allocation2 + $0x80] sm:$0xff] %vm182, 0.0
        %200 = vst.msk [vmem:[#allocation2 + $0x88] sm:$0xff] %vm182, 0.0
        %201 = vst.msk [vmem:[#allocation2 + $0x90] sm:$0xff] %vm182, 0.0
        %202 = vst.msk [vmem:[#allocation2 + $0x98] sm:$0xff] %vm182, 0.0
        %203 = vst.msk [vmem:[#allocation2 + $0xa0] sm:$0xff] %vm182, 0.0
        %204 = vst.msk [vmem:[#allocation2 + $0xa8] sm:$0xff] %vm182, 0.0
        %205 = vst.msk [vmem:[#allocation2 + $0xb0] sm:$0xff] %vm182, 0.0
        %206 = vst.msk [vmem:[#allocation2 + $0xb8] sm:$0xff] %vm182, 0.0
        %207 = vst.msk [vmem:[#allocation2 + $0xc0] sm:$0xff] %vm182, 0.0
        %208 = vst.msk [vmem:[#allocation2 + $0xc8] sm:$0xff] %vm182, 0.0
        %209 = vst.msk [vmem:[#allocation2 + $0xd0] sm:$0xff] %vm182, 0.0
        %210 = vst.msk [vmem:[#allocation2 + $0xd8] sm:$0xff] %vm182, 0.0
        %211 = vst.msk [vmem:[#allocation2 + $0xe0] sm:$0xff] %vm182, 0.0
        %212 = vst.msk [vmem:[#allocation2 + $0xe8] sm:$0xff] %vm182, 0.0
        %213 = vst.msk [vmem:[#allocation2 + $0xf0] sm:$0xff] %vm182, 0.0
        %214 = vst.msk [vmem:[#allocation2 + $0xf8] sm:$0xff] %vm182, 0.0
        %v215 = vld [vmem:[%s176] sm:$0xff]
        %v216 = vld [vmem:[%s176 + $0x8] sm:$0xff]
        %v217 = vld [vmem:[%s176 + $0x18] sm:$0xff]
        %v218 = vld [vmem:[%s176 + $0x20] sm:$0xff]
        %v219 = vld [vmem:[%s176 + $0x30] sm:$0xff]
        %v220 = vld [vmem:[%s176 + $0x38] sm:$0xff]
        %v221 = vld [vmem:[%s176 + $0x48] sm:$0xff]
        %v222 = vld [vmem:[%s176 + $0x50] sm:$0xff]
        %v223 = vld [vmem:[%s176 + $0x60] sm:$0xff]
        %v224 = vld [vmem:[%s176 + $0x68] sm:$0xff]
        %v225 = vld [vmem:[%s176 + $0x78] sm:$0xff]
        %v226 = vld [vmem:[%s176 + $0x80] sm:$0xff]
        %v227 = vld [vmem:[%s176 + $0x90] sm:$0xff]
        %v228 = vld [vmem:[%s176 + $0x98] sm:$0xff]
        %v229 = vld [vmem:[%s176 + $0xa8] sm:$0xff]
        %v230 = vld [vmem:[%s176 + $0xb0] sm:$0xff]
        %v231 = vld [vmem:[%s176 + $0xc0] sm:$0xff]
        %v232 = vld [vmem:[%s176 + $0xc8] sm:$0xff]
        %v233 = vld [vmem:[%s176 + $0xd8] sm:$0xff]
        %v234 = vld [vmem:[%s176 + $0xe0] sm:$0xff]
        %v235 = vld [vmem:[%s176 + $0xf0] sm:$0xff]
        %v236 = vld [vmem:[%s176 + $0xf8] sm:$0xff]
        %v237 = vld [vmem:[%s176 + $0x108] sm:$0xff]
        %v238 = vld [vmem:[%s176 + $0x110] sm:$0xff]
        %v239 = vld [vmem:[%s176 + $0x120] sm:$0xff]
        %v240 = vld [vmem:[%s176 + $0x128] sm:$0xff]
        %v241 = vld [vmem:[%s176 + $0x138] sm:$0xff]
        %v242 = vld [vmem:[%s176 + $0x140] sm:$0xff]
        %v243 = vld [vmem:[%s176 + $0x150] sm:$0xff]
        %v244 = vld [vmem:[%s176 + $0x158] sm:$0xff]
        %v245 = vld [vmem:[%s176 + $0x168] sm:$0xff]
        %v246 = vld [vmem:[%s176 + $0x170] sm:$0xff]
        %v247 = vld [vmem:[#allocation2] sm:$0xff]
        %v248 = vld [vmem:[#allocation2 + $0x8] sm:$0xff]
        %v249 = vld [vmem:[#allocation2 + $0x10] sm:$0xff]
        %v250 = vld [vmem:[#allocation2 + $0x18] sm:$0xff]
        %v251 = vld [vmem:[#allocation2 + $0x20] sm:$0xff]
        %v252 = vld [vmem:[#allocation2 + $0x28] sm:$0xff]
        %v253 = vld [vmem:[#allocation2 + $0x30] sm:$0xff]
        %v254 = vld [vmem:[#allocation2 + $0x38] sm:$0xff]
        %v255 = vld [vmem:[#allocation2 + $0x40] sm:$0xff]
        %v256 = vld [vmem:[#allocation2 + $0x48] sm:$0xff]
        %v257 = vld [vmem:[#allocation2 + $0x50] sm:$0xff]
        %v258 = vld [vmem:[#allocation2 + $0x58] sm:$0xff]
        %v259 = vld [vmem:[#allocation2 + $0x60] sm:$0xff]
        %v260 = vld [vmem:[#allocation2 + $0x68] sm:$0xff]
        %v261 = vld [vmem:[#allocation2 + $0x70] sm:$0xff]
        %v262 = vld [vmem:[#allocation2 + $0x78] sm:$0xff]
        %v263 = vld [vmem:[#allocation2 + $0x80] sm:$0xff]
        %v264 = vld [vmem:[#allocation2 + $0x88] sm:$0xff]
        %v265 = vld [vmem:[#allocation2 + $0x90] sm:$0xff]
        %v266 = vld [vmem:[#allocation2 + $0x98] sm:$0xff]
        %v267 = vld [vmem:[#allocation2 + $0xa0] sm:$0xff]
        %v268 = vld [vmem:[#allocation2 + $0xa8] sm:$0xff]
        %v269 = vld [vmem:[#allocation2 + $0xb0] sm:$0xff]
        %v270 = vld [vmem:[#allocation2 + $0xb8] sm:$0xff]
        %v271 = vld [vmem:[#allocation2 + $0xc0] sm:$0xff]
        %v272 = vld [vmem:[#allocation2 + $0xc8] sm:$0xff]
        %v273 = vld [vmem:[#allocation2 + $0xd0] sm:$0xff]
        %v274 = vld [vmem:[#allocation2 + $0xd8] sm:$0xff]
        %v275 = vld [vmem:[#allocation2 + $0xe0] sm:$0xff]
        %v276 = vld [vmem:[#allocation2 + $0xe8] sm:$0xff]
        %v277 = vld [vmem:[#allocation2 + $0xf0] sm:$0xff]
        %v278 = vld [vmem:[#allocation2 + $0xf8] sm:$0xff]
        %v279 = vld [vmem:[%s1] sm:$0xf]
        %vm280 = vcmask 31744
        %v282 = vsel %vm280, %v215, 0
        %v285 = vsel %vm280, %v216, 0
        %v288 = vsel %vm280, %v217, 0
        %v291 = vsel %vm280, %v218, 0
        %v294 = vsel %vm280, %v219, 0
        %v297 = vsel %vm280, %v220, 0
        %v300 = vsel %vm280, %v221, 0
        %v303 = vsel %vm280, %v222, 0
        %v306 = vsel %vm280, %v223, 0
        %v309 = vsel %vm280, %v224, 0
        %v312 = vsel %vm280, %v225, 0
        %v315 = vsel %vm280, %v226, 0
        %v318 = vsel %vm280, %v227, 0
        %v321 = vsel %vm280, %v228, 0
        %v324 = vsel %vm280, %v229, 0
        %v327 = vsel %vm280, %v230, 0
        %v330 = vsel %vm280, %v231, 0
        %v333 = vsel %vm280, %v232, 0
        %v336 = vsel %vm280, %v233, 0
        %v339 = vsel %vm280, %v234, 0
        %v342 = vsel %vm280, %v235, 0
        %v345 = vsel %vm280, %v236, 0
        %v348 = vsel %vm280, %v237, 0
        %v351 = vsel %vm280, %v238, 0
        %v354 = vsel %vm280, %v239, 0
        %v357 = vsel %vm280, %v240, 0
        %v360 = vsel %vm280, %v241, 0
        %v363 = vsel %vm280, %v242, 0
        %v366 = vsel %vm280, %v243, 0
        %v369 = vsel %vm280, %v244, 0
        %v372 = vsel %vm280, %v245, 0
        %v375 = vsel %vm280, %v246, 0
        %vm377 = vcmask 1043456
        %v379 = vsel %vm377, %v279, 0
        %381 = vmatprep.subr.mxu0 0.0
        %382 = vmatpush1.msra.mxu0 %v379
        %383 = vmatprep.subr.mxu0 0.0
        %384 = vmatpush1.msra.mxu0 0.0
        %385 = vmatprep.subr.mxu0 0.0
        %386 = vmatpush1.msra.mxu0 0.0
        %387 = vmatprep.subr.mxu0 0.0
        %388 = vmatpush1.msra.mxu0 0.0
        %389 = vmatprep.subr.mxu0 0.0
        %390 = vmatpush1.msra.mxu0 0.0
        %391 = vmatprep.subr.mxu0 0.0
        %392 = vmatpush1.msra.mxu0 0.0
        %393 = vmatprep.subr.mxu0 0.0
        %394 = vmatpush1.msra.mxu0 0.0
        %395 = vmatprep.subr.mxu0 0.0
        %396 = vmatpush1.msra.mxu0 0.0
        %397 = vmatprep.subr.mxu0 0.0
        %398 = vmatpush1.msra.mxu0 0.0
        %399 = vmatprep.subr.mxu0 0.0
        %400 = vmatpush1.msra.mxu0 0.0
        %401 = vmatprep.subr.mxu0 0.0
        %402 = vmatpush1.msra.mxu0 0.0
        %403 = vmatprep.subr.mxu0 0.0
        %404 = vmatpush1.msra.mxu0 0.0
        %405 = vmatprep.subr.mxu0 0.0
        %406 = vmatpush1.msra.mxu0 0.0
        %407 = vmatprep.subr.mxu0 0.0
        %408 = vmatpush1.msra.mxu0 0.0
        %409 = vmatprep.subr.mxu0 0.0
        %410 = vmatpush1.msra.mxu0 0.0
        %411 = vmatprep.subr.mxu0 0.0
        %412 = vmatpush1.msra.mxu0 0.0
        %413 = vmatprep.subr.mxu0 0.0
        %414 = vmatpush1.msra.mxu0 0.0
        %415 = vmatprep.subr.mxu0 0.0
        %416 = vmatpush1.msra.mxu0 0.0
        %417 = vmatprep.subr.mxu0 0.0
        %418 = vmatpush1.msra.mxu0 0.0
        %419 = vmatprep.subr.mxu0 0.0
        %420 = vmatpush1.msra.mxu0 0.0
        %421 = vmatprep.subr.mxu0 0.0
        %422 = vmatpush1.msra.mxu0 0.0
        %423 = vmatprep.subr.mxu0 0.0
        %424 = vmatpush1.msra.mxu0 0.0
        %425 = vmatprep.subr.mxu0 0.0
        %426 = vmatpush1.msra.mxu0 0.0
        %427 = vmatprep.subr.mxu0 0.0
        %428 = vmatpush1.msra.mxu0 0.0
        %429 = vmatprep.subr.mxu0 0.0
        %430 = vmatpush1.msra.mxu0 0.0
        %431 = vmatprep.subr.mxu0 0.0
        %432 = vmatpush1.msra.mxu0 0.0
        %433 = vmatprep.subr.mxu0 0.0
        %434 = vmatpush1.msra.mxu0 0.0
        %435 = vmatprep.subr.mxu0 0.0
        %436 = vmatpush1.msra.mxu0 0.0
        %437 = vmatprep.subr.mxu0 0.0
        %438 = vmatpush1.msra.mxu0 0.0
        %439 = vmatprep.subr.mxu0 0.0
        %440 = vmatpush1.msra.mxu0 0.0
        %441 = vmatprep.subr.mxu0 0.0
        %442 = vmatpush1.msra.mxu0 0.0
        %443 = vmatprep.subr.mxu0 0.0
        %444 = vmatpush1.msra.mxu0 0.0
        %445 = vmatprep.mubr.f32.mxu0 0.0
        %446 = vmatmul.mubr.f32.gmra.mrb[0].mxu0 %v282
        %v447 = vpop.f32.mrb[0].mxu0
        %v448 = vadd.f32 0.0, %v447
        %v449 = vpop.f32.mrb[0].mxu0
        %450 = vmatprep.mubr.f32.mxu0 0.0
        %451 = vmatmul.mubr.f32.gmra.mrb[0].mxu0 %v285
        %v452 = vpop.f32.mrb[0].mxu0
        %v453 = vadd.f32 0.0, %v452
        %v454 = vpop.f32.mrb[0].mxu0
        %455 = vmatprep.mubr.f32.mxu0 0.0
        %456 = vmatmul.mubr.f32.gmra.mrb[0].mxu0 %v288
        %v457 = vpop.f32.mrb[0].mxu0
        %v458 = vadd.f32 0.0, %v457
        %v459 = vpop.f32.mrb[0].mxu0
        %460 = vmatprep.mubr.f32.mxu0 0.0
        %461 = vmatmul.mubr.f32.gmra.mrb[0].mxu0 %v291
        %v462 = vpop.f32.mrb[0].mxu0
        %v463 = vadd.f32 0.0, %v462
        %v464 = vpop.f32.mrb[0].mxu0
        %465 = vmatprep.mubr.f32.mxu0 0.0
        %466 = vmatmul.mubr.f32.gmra.mrb[0].mxu0 %v294
        %v467 = vpop.f32.mrb[0].mxu0
        %v468 = vadd.f32 0.0, %v467
        %v469 = vpop.f32.mrb[0].mxu0
        %470 = vmatprep.mubr.f32.mxu0 0.0
        %471 = vmatmul.mubr.f32.gmra.mrb[0].mxu0 %v297
        %v472 = vpop.f32.mrb[0].mxu0
        %v473 = vadd.f32 0.0, %v472
        %v474 = vpop.f32.mrb[0].mxu0
        %475 = vmatprep.mubr.f32.mxu0 0.0
        %476 = vmatmul.mubr.f32.gmra.mrb[0].mxu0 %v300
        %v477 = vpop.f32.mrb[0].mxu0
        %v478 = vadd.f32 0.0, %v477
        %v479 = vpop.f32.mrb[0].mxu0
        %480 = vmatprep.mubr.f32.mxu0 0.0
        %481 = vmatmul.mubr.f32.gmra.mrb[0].mxu0 %v303
        %v482 = vpop.f32.mrb[0].mxu0
        %v483 = vadd.f32 0.0, %v482
        %v484 = vpop.f32.mrb[0].mxu0
        %485 = vmatprep.mubr.f32.mxu0 0.0
        %486 = vmatmul.mubr.f32.gmra.mrb[0].mxu0 %v306
        %v487 = vpop.f32.mrb[0].mxu0
        %v488 = vadd.f32 0.0, %v487
        %v489 = vpop.f32.mrb[0].mxu0
        %490 = vmatprep.mubr.f32.mxu0 0.0
        %491 = vmatmul.mubr.f32.gmra.mrb[0].mxu0 %v309
        %v492 = vpop.f32.mrb[0].mxu0
        %v493 = vadd.f32 0.0, %v492
        %v494 = vpop.f32.mrb[0].mxu0
        %495 = vmatprep.mubr.f32.mxu0 0.0
        %496 = vmatmul.mubr.f32.gmra.mrb[0].mxu0 %v312
        %v497 = vpop.f32.mrb[0].mxu0
        %v498 = vadd.f32 0.0, %v497
        %v499 = vpop.f32.mrb[0].mxu0
        %500 = vmatprep.mubr.f32.mxu0 0.0
        %501 = vmatmul.mubr.f32.gmra.mrb[0].mxu0 %v315
        %v502 = vpop.f32.mrb[0].mxu0
        %v503 = vadd.f32 0.0, %v502
        %v504 = vpop.f32.mrb[0].mxu0
        %505 = vmatprep.mubr.f32.mxu0 0.0
        %506 = vmatmul.mubr.f32.gmra.mrb[0].mxu0 %v318
        %v507 = vpop.f32.mrb[0].mxu0
        %v508 = vadd.f32 0.0, %v507
        %v509 = vpop.f32.mrb[0].mxu0
        %510 = vmatprep.mubr.f32.mxu0 0.0
        %511 = vmatmul.mubr.f32.gmra.mrb[0].mxu0 %v321
        %v512 = vpop.f32.mrb[0].mxu0
        %v513 = vadd.f32 0.0, %v512
        %v514 = vpop.f32.mrb[0].mxu0
        %515 = vmatprep.mubr.f32.mxu0 0.0
        %516 = vmatmul.mubr.f32.gmra.mrb[0].mxu0 %v324
        %v517 = vpop.f32.mrb[0].mxu0
        %v518 = vadd.f32 0.0, %v517
        %v519 = vpop.f32.mrb[0].mxu0
        %520 = vmatprep.mubr.f32.mxu0 0.0
        %521 = vmatmul.mubr.f32.gmra.mrb[0].mxu0 %v327
        %v522 = vpop.f32.mrb[0].mxu0
        %v523 = vadd.f32 0.0, %v522
        %v524 = vpop.f32.mrb[0].mxu0
        %525 = vmatprep.mubr.f32.mxu0 0.0
        %526 = vmatmul.mubr.f32.gmra.mrb[0].mxu0 %v330
        %v527 = vpop.f32.mrb[0].mxu0
        %v528 = vadd.f32 0.0, %v527
        %v529 = vpop.f32.mrb[0].mxu0
        %530 = vmatprep.mubr.f32.mxu0 0.0
        %531 = vmatmul.mubr.f32.gmra.mrb[0].mxu0 %v333
        %v532 = vpop.f32.mrb[0].mxu0
        %v533 = vadd.f32 0.0, %v532
        %v534 = vpop.f32.mrb[0].mxu0
        %535 = vmatprep.mubr.f32.mxu0 0.0
        %536 = vmatmul.mubr.f32.gmra.mrb[0].mxu0 %v336
        %v537 = vpop.f32.mrb[0].mxu0
        %v538 = vadd.f32 0.0, %v537
        %v539 = vpop.f32.mrb[0].mxu0
        %540 = vmatprep.mubr.f32.mxu0 0.0
        %541 = vmatmul.mubr.f32.gmra.mrb[0].mxu0 %v339
        %v542 = vpop.f32.mrb[0].mxu0
        %v543 = vadd.f32 0.0, %v542
        %v544 = vpop.f32.mrb[0].mxu0
        %545 = vmatprep.mubr.f32.mxu0 0.0
        %546 = vmatmul.mubr.f32.gmra.mrb[0].mxu0 %v342
        %v547 = vpop.f32.mrb[0].mxu0
        %v548 = vadd.f32 0.0, %v547
        %v549 = vpop.f32.mrb[0].mxu0
        %550 = vmatprep.mubr.f32.mxu0 0.0
        %551 = vmatmul.mubr.f32.gmra.mrb[0].mxu0 %v345
        %v552 = vpop.f32.mrb[0].mxu0
        %v553 = vadd.f32 0.0, %v552
        %v554 = vpop.f32.mrb[0].mxu0
        %555 = vmatprep.mubr.f32.mxu0 0.0
        %556 = vmatmul.mubr.f32.gmra.mrb[0].mxu0 %v348
        %v557 = vpop.f32.mrb[0].mxu0
        %v558 = vadd.f32 0.0, %v557
        %v559 = vpop.f32.mrb[0].mxu0
        %560 = vmatprep.mubr.f32.mxu0 0.0
        %561 = vmatmul.mubr.f32.gmra.mrb[0].mxu0 %v351
        %v562 = vpop.f32.mrb[0].mxu0
        %v563 = vadd.f32 0.0, %v562
        %v564 = vpop.f32.mrb[0].mxu0
        %565 = vmatprep.mubr.f32.mxu0 0.0
        %566 = vmatmul.mubr.f32.gmra.mrb[0].mxu0 %v354
        %v567 = vpop.f32.mrb[0].mxu0
        %v568 = vadd.f32 0.0, %v567
        %v569 = vpop.f32.mrb[0].mxu0
        %570 = vmatprep.mubr.f32.mxu0 0.0
        %571 = vmatmul.mubr.f32.gmra.mrb[0].mxu0 %v357
        %v572 = vpop.f32.mrb[0].mxu0
        %v573 = vadd.f32 0.0, %v572
        %v574 = vpop.f32.mrb[0].mxu0
        %575 = vmatprep.mubr.f32.mxu0 0.0
        %576 = vmatmul.mubr.f32.gmra.mrb[0].mxu0 %v360
        %v577 = vpop.f32.mrb[0].mxu0
        %v578 = vadd.f32 0.0, %v577
        %v579 = vpop.f32.mrb[0].mxu0
        %580 = vmatprep.mubr.f32.mxu0 0.0
        %581 = vmatmul.mubr.f32.gmra.mrb[0].mxu0 %v363
        %v582 = vpop.f32.mrb[0].mxu0
        %v583 = vadd.f32 0.0, %v582
        %v584 = vpop.f32.mrb[0].mxu0
        %585 = vmatprep.mubr.f32.mxu0 0.0
        %586 = vmatmul.mubr.f32.gmra.mrb[0].mxu0 %v366
        %v587 = vpop.f32.mrb[0].mxu0
        %v588 = vadd.f32 0.0, %v587
        %v589 = vpop.f32.mrb[0].mxu0
        %590 = vmatprep.mubr.f32.mxu0 0.0
        %591 = vmatmul.mubr.f32.gmra.mrb[0].mxu0 %v369
        %v592 = vpop.f32.mrb[0].mxu0
        %v593 = vadd.f32 0.0, %v592
        %v594 = vpop.f32.mrb[0].mxu0
        %595 = vmatprep.mubr.f32.mxu0 0.0
        %596 = vmatmul.mubr.f32.gmra.mrb[0].mxu0 %v372
        %v597 = vpop.f32.mrb[0].mxu0
        %v598 = vadd.f32 0.0, %v597
        %v599 = vpop.f32.mrb[0].mxu0
        %600 = vmatprep.mubr.f32.mxu0 0.0
        %601 = vmatmul.mubr.f32.gmra.mrb[0].mxu0 %v375
        %v602 = vpop.f32.mrb[0].mxu0
        %v603 = vadd.f32 0.0, %v602
        %v604 = vpop.f32.mrb[0].mxu0
        %605 = vdwg.mxu0
        %v606 = vadd.f32 %v247, %v448
        %v607 = vadd.f32 %v248, %v453
        %v608 = vadd.f32 %v249, %v458
        %v609 = vadd.f32 %v250, %v463
        %v610 = vadd.f32 %v251, %v468
        %v611 = vadd.f32 %v252, %v473
        %v612 = vadd.f32 %v253, %v478
        %v613 = vadd.f32 %v254, %v483
        %v614 = vadd.f32 %v255, %v488
        %v615 = vadd.f32 %v256, %v493
        %v616 = vadd.f32 %v257, %v498
        %v617 = vadd.f32 %v258, %v503
        %v618 = vadd.f32 %v259, %v508
        %v619 = vadd.f32 %v260, %v513
        %v620 = vadd.f32 %v261, %v518
        %v621 = vadd.f32 %v262, %v523
        %v622 = vadd.f32 %v263, %v528
        %v623 = vadd.f32 %v264, %v533
        %v624 = vadd.f32 %v265, %v538
        %v625 = vadd.f32 %v266, %v543
        %v626 = vadd.f32 %v267, %v548
        %v627 = vadd.f32 %v268, %v553
        %v628 = vadd.f32 %v269, %v558
        %v629 = vadd.f32 %v270, %v563
        %v630 = vadd.f32 %v271, %v568
        %v631 = vadd.f32 %v272, %v573
        %v632 = vadd.f32 %v273, %v578
        %v633 = vadd.f32 %v274, %v583
        %v634 = vadd.f32 %v275, %v588
        %v635 = vadd.f32 %v276, %v593
        %v636 = vadd.f32 %v277, %v598
        %v637 = vadd.f32 %v278, %v603
        %638 = vst.msk [vmem:[#allocation2] sm:$0xff] %vm182, %v606
        %639 = vst.msk [vmem:[#allocation2 + $0x8] sm:$0xff] %vm182, %v607
        %640 = vst.msk [vmem:[#allocation2 + $0x10] sm:$0xff] %vm182, %v608
        %641 = vst.msk [vmem:[#allocation2 + $0x18] sm:$0xff] %vm182, %v609
        %642 = vst.msk [vmem:[#allocation2 + $0x20] sm:$0xff] %vm182, %v610
        %643 = vst.msk [vmem:[#allocation2 + $0x28] sm:$0xff] %vm182, %v611
        %644 = vst.msk [vmem:[#allocation2 + $0x30] sm:$0xff] %vm182, %v612
        %645 = vst.msk [vmem:[#allocation2 + $0x38] sm:$0xff] %vm182, %v613
        %646 = vst.msk [vmem:[#allocation2 + $0x40] sm:$0xff] %vm182, %v614
        %647 = vst.msk [vmem:[#allocation2 + $0x48] sm:$0xff] %vm182, %v615
        %648 = vst.msk [vmem:[#allocation2 + $0x50] sm:$0xff] %vm182, %v616
        %649 = vst.msk [vmem:[#allocation2 + $0x58] sm:$0xff] %vm182, %v617
        %650 = vst.msk [vmem:[#allocation2 + $0x60] sm:$0xff] %vm182, %v618
        %651 = vst.msk [vmem:[#allocation2 + $0x68] sm:$0xff] %vm182, %v619
        %652 = vst.msk [vmem:[#allocation2 + $0x70] sm:$0xff] %vm182, %v620
        %653 = vst.msk [vmem:[#allocation2 + $0x78] sm:$0xff] %vm182, %v621
        %654 = vst.msk [vmem:[#allocation2 + $0x80] sm:$0xff] %vm182, %v622
        %655 = vst.msk [vmem:[#allocation2 + $0x88] sm:$0xff] %vm182, %v623
        %656 = vst.msk [vmem:[#allocation2 + $0x90] sm:$0xff] %vm182, %v624
        %657 = vst.msk [vmem:[#allocation2 + $0x98] sm:$0xff] %vm182, %v625
        %658 = vst.msk [vmem:[#allocation2 + $0xa0] sm:$0xff] %vm182, %v626
        %659 = vst.msk [vmem:[#allocation2 + $0xa8] sm:$0xff] %vm182, %v627
        %660 = vst.msk [vmem:[#allocation2 + $0xb0] sm:$0xff] %vm182, %v628
        %661 = vst.msk [vmem:[#allocation2 + $0xb8] sm:$0xff] %vm182, %v629
        %662 = vst.msk [vmem:[#allocation2 + $0xc0] sm:$0xff] %vm182, %v630
        %663 = vst.msk [vmem:[#allocation2 + $0xc8] sm:$0xff] %vm182, %v631
        %664 = vst.msk [vmem:[#allocation2 + $0xd0] sm:$0xff] %vm182, %v632
        %665 = vst.msk [vmem:[#allocation2 + $0xd8] sm:$0xff] %vm182, %v633
        %666 = vst.msk [vmem:[#allocation2 + $0xe0] sm:$0xff] %vm182, %v634
        %667 = vst.msk [vmem:[#allocation2 + $0xe8] sm:$0xff] %vm182, %v635
        %668 = vst.msk [vmem:[#allocation2 + $0xf0] sm:$0xff] %vm182, %v636
        %669 = vst.msk [vmem:[#allocation2 + $0xf8] sm:$0xff] %vm182, %v637
        %v670 = vld [vmem:[%s176 + $0x1] sm:$0xff]
        %v671 = vld [vmem:[%s176 + $0x9] sm:$0xff]
        %v672 = vld [vmem:[%s176 + $0x19] sm:$0xff]
        %v673 = vld [vmem:[%s176 + $0x21] sm:$0xff]
        %v674 = vld [vmem:[%s176 + $0x31] sm:$0xff]
        %v675 = vld [vmem:[%s176 + $0x39] sm:$0xff]
        %v676 = vld [vmem:[%s176 + $0x49] sm:$0xff]
        %v677 = vld [vmem:[%s176 + $0x51] sm:$0xff]
        %v678 = vld [vmem:[%s176 + $0x61] sm:$0xff]
        %v679 = vld [vmem:[%s176 + $0x69] sm:$0xff]
        %v680 = vld [vmem:[%s176 + $0x79] sm:$0xff]
        %v681 = vld [vmem:[%s176 + $0x81] sm:$0xff]
        %v682 = vld [vmem:[%s176 + $0x91] sm:$0xff]
        %v683 = vld [vmem:[%s176 + $0x99] sm:$0xff]
        %v684 = vld [vmem:[%s176 + $0xa9] sm:$0xff]
        %v685 = vld [vmem:[%s176 + $0xb1] sm:$0xff]
        %v686 = vld [vmem:[%s176 + $0xc1] sm:$0xff]
        %v687 = vld [vmem:[%s176 + $0xc9] sm:$0xff]
        %v688 = vld [vmem:[%s176 + $0xd9] sm:$0xff]
        %v689 = vld [vmem:[%s176 + $0xe1] sm:$0xff]
        %v690 = vld [vmem:[%s176 + $0xf1] sm:$0xff]
        %v691 = vld [vmem:[%s176 + $0xf9] sm:$0xff]
        %v692 = vld [vmem:[%s176 + $0x109] sm:$0xff]
        %v693 = vld [vmem:[%s176 + $0x111] sm:$0xff]
        %v694 = vld [vmem:[%s176 + $0x121] sm:$0xff]
        %v695 = vld [vmem:[%s176 + $0x129] sm:$0xff]
        %v696 = vld [vmem:[%s176 + $0x139] sm:$0xff]
        %v697 = vld [vmem:[%s176 + $0x141] sm:$0xff]
        %v698 = vld [vmem:[%s176 + $0x151] sm:$0xff]
        %v699 = vld [vmem:[%s176 + $0x159] sm:$0xff]
        %v700 = vld [vmem:[%s176 + $0x169] sm:$0xff]
        %v701 = vld [vmem:[%s176 + $0x171] sm:$0xff]
        %v702 = vld [vmem:[#allocation2] sm:$0xff]
        %v703 = vld [vmem:[#allocation2 + $0x8] sm:$0xff]
        %v704 = vld [vmem:[#allocation2 + $0x10] sm:$0xff]
        %v705 = vld [vmem:[#allocation2 + $0x18] sm:$0xff]
        %v706 = vld [vmem:[#allocation2 + $0x20] sm:$0xff]
        %v707 = vld [vmem:[#allocation2 + $0x28] sm:$0xff]
        %v708 = vld [vmem:[#allocation2 + $0x30] sm:$0xff]
        %v709 = vld [vmem:[#allocation2 + $0x38] sm:$0xff]
        %v710 = vld [vmem:[#allocation2 + $0x40] sm:$0xff]
        %v711 = vld [vmem:[#allocation2 + $0x48] sm:$0xff]
        %v712 = vld [vmem:[#allocation2 + $0x50] sm:$0xff]
        %v713 = vld [vmem:[#allocation2 + $0x58] sm:$0xff]
        %v714 = vld [vmem:[#allocation2 + $0x60] sm:$0xff]
        %v715 = vld [vmem:[#allocation2 + $0x68] sm:$0xff]
        %v716 = vld [vmem:[#allocation2 + $0x70] sm:$0xff]
        %v717 = vld [vmem:[#allocation2 + $0x78] sm:$0xff]
        %v718 = vld [vmem:[#allocation2 + $0x80] sm:$0xff]
        %v719 = vld [vmem:[#allocation2 + $0x88] sm:$0xff]
        %v720 = vld [vmem:[#allocation2 + $0x90] sm:$0xff]
        %v721 = vld [vmem:[#allocation2 + $0x98] sm:$0xff]
        %v722 = vld [vmem:[#allocation2 + $0xa0] sm:$0xff]
        %v723 = vld [vmem:[#allocation2 + $0xa8] sm:$0xff]
        %v724 = vld [vmem:[#allocation2 + $0xb0] sm:$0xff]
        %v725 = vld [vmem:[#allocation2 + $0xb8] sm:$0xff]
        %v726 = vld [vmem:[#allocation2 + $0xc0] sm:$0xff]
        %v727 = vld [vmem:[#allocation2 + $0xc8] sm:$0xff]
        %v728 = vld [vmem:[#allocation2 + $0xd0] sm:$0xff]
        %v729 = vld [vmem:[#allocation2 + $0xd8] sm:$0xff]
        %v730 = vld [vmem:[#allocation2 + $0xe0] sm:$0xff]
        %v731 = vld [vmem:[#allocation2 + $0xe8] sm:$0xff]
        %v732 = vld [vmem:[#allocation2 + $0xf0] sm:$0xff]
        %v733 = vld [vmem:[#allocation2 + $0xf8] sm:$0xff]
        %s734 = scalar_lea.vmem %s1, 4
        %v735 = vld [vmem:[%s734] sm:$0xf]
        %v737 = vsel %vm280, %v670, 0
        %v740 = vsel %vm280, %v671, 0
        %v743 = vsel %vm280, %v672, 0
        %v746 = vsel %vm280, %v673, 0
        %v749 = vsel %vm280, %v674, 0
        %v752 = vsel %vm280, %v675, 0
        %v755 = vsel %vm280, %v676, 0
        %v758 = vsel %vm280, %v677, 0
        %v761 = vsel %vm280, %v678, 0
        %v764 = vsel %vm280, %v679, 0
        %v767 = vsel %vm280, %v680, 0
        %v770 = vsel %vm280, %v681, 0
        %v773 = vsel %vm280, %v682, 0
        %v776 = vsel %vm280, %v683, 0
        %v779 = vsel %vm280, %v684, 0
        %v782 = vsel %vm280, %v685, 0
        %v785 = vsel %vm280, %v686, 0
        %v788 = vsel %vm280, %v687, 0
        %v791 = vsel %vm280, %v688, 0
        %v794 = vsel %vm280, %v689, 0
        %v797 = vsel %vm280, %v690, 0
        %v800 = vsel %vm280, %v691, 0
        %v803 = vsel %vm280, %v692, 0
        %v806 = vsel %vm280, %v693, 0
        %v809 = vsel %vm280, %v694, 0
        %v812 = vsel %vm280, %v695, 0
        %v815 = vsel %vm280, %v696, 0
        %v818 = vsel %vm280, %v697, 0
        %v821 = vsel %vm280, %v698, 0
        %v824 = vsel %vm280, %v699, 0
        %v827 = vsel %vm280, %v700, 0
        %v830 = vsel %vm280, %v701, 0
        %v833 = vsel %vm377, %v735, 0
        %835 = vmatprep.subr.mxu0 0.0
        %836 = vmatpush1.msra.mxu0 %v833
        %837 = vmatprep.subr.mxu0 0.0
        %838 = vmatpush1.msra.mxu0 0.0
        %839 = vmatprep.subr.mxu0 0.0
        %840 = vmatpush1.msra.mxu0 0.0
        %841 = vmatprep.subr.mxu0 0.0
        %842 = vmatpush1.msra.mxu0 0.0
        %843 = vmatprep.subr.mxu0 0.0
        %844 = vmatpush1.msra.mxu0 0.0
        %845 = vmatprep.subr.mxu0 0.0
        %846 = vmatpush1.msra.mxu0 0.0
        %847 = vmatprep.subr.mxu0 0.0
        %848 = vmatpush1.msra.mxu0 0.0
        %849 = vmatprep.subr.mxu0 0.0
        %850 = vmatpush1.msra.mxu0 0.0
        %851 = vmatprep.subr.mxu0 0.0
        %852 = vmatpush1.msra.mxu0 0.0
        %853 = vmatprep.subr.mxu0 0.0
        %854 = vmatpush1.msra.mxu0 0.0
        %855 = vmatprep.subr.mxu0 0.0
        %856 = vmatpush1.msra.mxu0 0.0
        %857 = vmatprep.subr.mxu0 0.0
        %858 = vmatpush1.msra.mxu0 0.0
        %859 = vmatprep.subr.mxu0 0.0
        %860 = vmatpush1.msra.mxu0 0.0
        %861 = vmatprep.subr.mxu0 0.0
        %862 = vmatpush1.msra.mxu0 0.0
        %863 = vmatprep.subr.mxu0 0.0
        %864 = vmatpush1.msra.mxu0 0.0
        %865 = vmatprep.subr.mxu0 0.0
        %866 = vmatpush1.msra.mxu0 0.0
        %867 = vmatprep.subr.mxu0 0.0
        %868 = vmatpush1.msra.mxu0 0.0
        %869 = vmatprep.subr.mxu0 0.0
        %870 = vmatpush1.msra.mxu0 0.0
        %871 = vmatprep.subr.mxu0 0.0
        %872 = vmatpush1.msra.mxu0 0.0
        %873 = vmatprep.subr.mxu0 0.0
        %874 = vmatpush1.msra.mxu0 0.0
        %875 = vmatprep.subr.mxu0 0.0
        %876 = vmatpush1.msra.mxu0 0.0
        %877 = vmatprep.subr.mxu0 0.0
        %878 = vmatpush1.msra.mxu0 0.0
        %879 = vmatprep.subr.mxu0 0.0
        %880 = vmatpush1.msra.mxu0 0.0
        %881 = vmatprep.subr.mxu0 0.0
        %882 = vmatpush1.msra.mxu0 0.0
        %883 = vmatprep.subr.mxu0 0.0
        %884 = vmatpush1.msra.mxu0 0.0
        %885 = vmatprep.subr.mxu0 0.0
        %886 = vmatpush1.msra.mxu0 0.0
        %887 = vmatprep.subr.mxu0 0.0
        %888 = vmatpush1.msra.mxu0 0.0
        %889 = vmatprep.subr.mxu0 0.0
        %890 = vmatpush1.msra.mxu0 0.0
        %891 = vmatprep.subr.mxu0 0.0
        %892 = vmatpush1.msra.mxu0 0.0
        %893 = vmatprep.subr.mxu0 0.0
        %894 = vmatpush1.msra.mxu0 0.0
        %895 = vmatprep.subr.mxu0 0.0
        %896 = vmatpush1.msra.mxu0 0.0
        %897 = vmatprep.subr.mxu0 0.0
        %898 = vmatpush1.msra.mxu0 0.0
        %899 = vmatprep.mubr.f32.mxu0 0.0
        %900 = vmatmul.mubr.f32.gmra.mrb[0].mxu0 %v737
        %v901 = vpop.f32.mrb[0].mxu0
        %v902 = vadd.f32 0.0, %v901
        %v903 = vpop.f32.mrb[0].mxu0
        %904 = vmatprep.mubr.f32.mxu0 0.0
        %905 = vmatmul.mubr.f32.gmra.mrb[0].mxu0 %v740
        %v906 = vpop.f32.mrb[0].mxu0
        %v907 = vadd.f32 0.0, %v906
        %v908 = vpop.f32.mrb[0].mxu0
        %909 = vmatprep.mubr.f32.mxu0 0.0
        %910 = vmatmul.mubr.f32.gmra.mrb[0].mxu0 %v743
        %v911 = vpop.f32.mrb[0].mxu0
        %v912 = vadd.f32 0.0, %v911
        %v913 = vpop.f32.mrb[0].mxu0
        %914 = vmatprep.mubr.f32.mxu0 0.0
        %915 = vmatmul.mubr.f32.gmra.mrb[0].mxu0 %v746
        %v916 = vpop.f32.mrb[0].mxu0
        %v917 = vadd.f32 0.0, %v916
        %v918 = vpop.f32.mrb[0].mxu0
        %919 = vmatprep.mubr.f32.mxu0 0.0
        %920 = vmatmul.mubr.f32.gmra.mrb[0].mxu0 %v749
        %v921 = vpop.f32.mrb[0].mxu0
        %v922 = vadd.f32 0.0, %v921
        %v923 = vpop.f32.mrb[0].mxu0
        %924 = vmatprep.mubr.f32.mxu0 0.0
        %925 = vmatmul.mubr.f32.gmra.mrb[0].mxu0 %v752
        %v926 = vpop.f32.mrb[0].mxu0
        %v927 = vadd.f32 0.0, %v926
        %v928 = vpop.f32.mrb[0].mxu0
        %929 = vmatprep.mubr.f32.mxu0 0.0
        %930 = vmatmul.mubr.f32.gmra.mrb[0].mxu0 %v755
        %v931 = vpop.f32.mrb[0].mxu0
        %v932 = vadd.f32 0.0, %v931
        %v933 = vpop.f32.mrb[0].mxu0
        %934 = vmatprep.mubr.f32.mxu0 0.0
        %935 = vmatmul.mubr.f32.gmra.mrb[0].mxu0 %v758
        %v936 = vpop.f32.mrb[0].mxu0
        %v937 = vadd.f32 0.0, %v936
        %v938 = vpop.f32.mrb[0].mxu0
        %939 = vmatprep.mubr.f32.mxu0 0.0
        %940 = vmatmul.mubr.f32.gmra.mrb[0].mxu0 %v761
        %v941 = vpop.f32.mrb[0].mxu0
        %v942 = vadd.f32 0.0, %v941
        %v943 = vpop.f32.mrb[0].mxu0
        %944 = vmatprep.mubr.f32.mxu0 0.0
        %945 = vmatmul.mubr.f32.gmra.mrb[0].mxu0 %v764
        %v946 = vpop.f32.mrb[0].mxu0
        %v947 = vadd.f32 0.0, %v946
        %v948 = vpop.f32.mrb[0].mxu0
        %949 = vmatprep.mubr.f32.mxu0 0.0
        %950 = vmatmul.mubr.f32.gmra.mrb[0].mxu0 %v767
        %v951 = vpop.f32.mrb[0].mxu0
        %v952 = vadd.f32 0.0, %v951
        %v953 = vpop.f32.mrb[0].mxu0
        %954 = vmatprep.mubr.f32.mxu0 0.0
        %955 = vmatmul.mubr.f32.gmra.mrb[0].mxu0 %v770
        %v956 = vpop.f32.mrb[0].mxu0
        %v957 = vadd.f32 0.0, %v956
        %v958 = vpop.f32.mrb[0].mxu0
        %959 = vmatprep.mubr.f32.mxu0 0.0
        %960 = vmatmul.mubr.f32.gmra.mrb[0].mxu0 %v773
        %v961 = vpop.f32.mrb[0].mxu0
        %v962 = vadd.f32 0.0, %v961
        %v963 = vpop.f32.mrb[0].mxu0
        %964 = vmatprep.mubr.f32.mxu0 0.0
        %965 = vmatmul.mubr.f32.gmra.mrb[0].mxu0 %v776
        %v966 = vpop.f32.mrb[0].mxu0
        %v967 = vadd.f32 0.0, %v966
        %v968 = vpop.f32.mrb[0].mxu0
        %969 = vmatprep.mubr.f32.mxu0 0.0
        %970 = vmatmul.mubr.f32.gmra.mrb[0].mxu0 %v779
        %v971 = vpop.f32.mrb[0].mxu0
        %v972 = vadd.f32 0.0, %v971
        %v973 = vpop.f32.mrb[0].mxu0
        %974 = vmatprep.mubr.f32.mxu0 0.0
        %975 = vmatmul.mubr.f32.gmra.mrb[0].mxu0 %v782
        %v976 = vpop.f32.mrb[0].mxu0
        %v977 = vadd.f32 0.0, %v976
        %v978 = vpop.f32.mrb[0].mxu0
        %979 = vmatprep.mubr.f32.mxu0 0.0
        %980 = vmatmul.mubr.f32.gmra.mrb[0].mxu0 %v785
        %v981 = vpop.f32.mrb[0].mxu0
        %v982 = vadd.f32 0.0, %v981
        %v983 = vpop.f32.mrb[0].mxu0
        %984 = vmatprep.mubr.f32.mxu0 0.0
        %985 = vmatmul.mubr.f32.gmra.mrb[0].mxu0 %v788
        %v986 = vpop.f32.mrb[0].mxu0
        %v987 = vadd.f32 0.0, %v986
        %v988 = vpop.f32.mrb[0].mxu0
        %989 = vmatprep.mubr.f32.mxu0 0.0
        %990 = vmatmul.mubr.f32.gmra.mrb[0].mxu0 %v791
        %v991 = vpop.f32.mrb[0].mxu0
        %v992 = vadd.f32 0.0, %v991
        %v993 = vpop.f32.mrb[0].mxu0
        %994 = vmatprep.mubr.f32.mxu0 0.0
        %995 = vmatmul.mubr.f32.gmra.mrb[0].mxu0 %v794
        %v996 = vpop.f32.mrb[0].mxu0
        %v997 = vadd.f32 0.0, %v996
        %v998 = vpop.f32.mrb[0].mxu0
        %999 = vmatprep.mubr.f32.mxu0 0.0
        %1000 = vmatmul.mubr.f32.gmra.mrb[0].mxu0 %v797
        %v1001 = vpop.f32.mrb[0].mxu0
        %v1002 = vadd.f32 0.0, %v1001
        %v1003 = vpop.f32.mrb[0].mxu0
        %1004 = vmatprep.mubr.f32.mxu0 0.0
        %1005 = vmatmul.mubr.f32.gmra.mrb[0].mxu0 %v800
        %v1006 = vpop.f32.mrb[0].mxu0
        %v1007 = vadd.f32 0.0, %v1006
        %v1008 = vpop.f32.mrb[0].mxu0
        %1009 = vmatprep.mubr.f32.mxu0 0.0
        %1010 = vmatmul.mubr.f32.gmra.mrb[0].mxu0 %v803
        %v1011 = vpop.f32.mrb[0].mxu0
        %v1012 = vadd.f32 0.0, %v1011
        %v1013 = vpop.f32.mrb[0].mxu0
        %1014 = vmatprep.mubr.f32.mxu0 0.0
        %1015 = vmatmul.mubr.f32.gmra.mrb[0].mxu0 %v806
        %v1016 = vpop.f32.mrb[0].mxu0
        %v1017 = vadd.f32 0.0, %v1016
        %v1018 = vpop.f32.mrb[0].mxu0
        %1019 = vmatprep.mubr.f32.mxu0 0.0
        %1020 = vmatmul.mubr.f32.gmra.mrb[0].mxu0 %v809
        %v1021 = vpop.f32.mrb[0].mxu0
        %v1022 = vadd.f32 0.0, %v1021
        %v1023 = vpop.f32.mrb[0].mxu0
        %1024 = vmatprep.mubr.f32.mxu0 0.0
        %1025 = vmatmul.mubr.f32.gmra.mrb[0].mxu0 %v812
        %v1026 = vpop.f32.mrb[0].mxu0
        %v1027 = vadd.f32 0.0, %v1026
        %v1028 = vpop.f32.mrb[0].mxu0
        %1029 = vmatprep.mubr.f32.mxu0 0.0
        %1030 = vmatmul.mubr.f32.gmra.mrb[0].mxu0 %v815
        %v1031 = vpop.f32.mrb[0].mxu0
        %v1032 = vadd.f32 0.0, %v1031
        %v1033 = vpop.f32.mrb[0].mxu0
        %1034 = vmatprep.mubr.f32.mxu0 0.0
        %1035 = vmatmul.mubr.f32.gmra.mrb[0].mxu0 %v818
        %v1036 = vpop.f32.mrb[0].mxu0
        %v1037 = vadd.f32 0.0, %v1036
        %v1038 = vpop.f32.mrb[0].mxu0
        %1039 = vmatprep.mubr.f32.mxu0 0.0
        %1040 = vmatmul.mubr.f32.gmra.mrb[0].mxu0 %v821
        %v1041 = vpop.f32.mrb[0].mxu0
        %v1042 = vadd.f32 0.0, %v1041
        %v1043 = vpop.f32.mrb[0].mxu0
        %1044 = vmatprep.mubr.f32.mxu0 0.0
        %1045 = vmatmul.mubr.f32.gmra.mrb[0].mxu0 %v824
        %v1046 = vpop.f32.mrb[0].mxu0
        %v1047 = vadd.f32 0.0, %v1046
        %v1048 = vpop.f32.mrb[0].mxu0
        %1049 = vmatprep.mubr.f32.mxu0 0.0
        %1050 = vmatmul.mubr.f32.gmra.mrb[0].mxu0 %v827
        %v1051 = vpop.f32.mrb[0].mxu0
        %v1052 = vadd.f32 0.0, %v1051
        %v1053 = vpop.f32.mrb[0].mxu0
        %1054 = vmatprep.mubr.f32.mxu0 0.0
        %1055 = vmatmul.mubr.f32.gmra.mrb[0].mxu0 %v830
        %v1056 = vpop.f32.mrb[0].mxu0
        %v1057 = vadd.f32 0.0, %v1056
        %v1058 = vpop.f32.mrb[0].mxu0
        %1059 = vdwg.mxu0
        %v1060 = vadd.f32 %v702, %v902
        %v1061 = vadd.f32 %v703, %v907
        %v1062 = vadd.f32 %v704, %v912
        %v1063 = vadd.f32 %v705, %v917
        %v1064 = vadd.f32 %v706, %v922
        %v1065 = vadd.f32 %v707, %v927
        %v1066 = vadd.f32 %v708, %v932
        %v1067 = vadd.f32 %v709, %v937
        %v1068 = vadd.f32 %v710, %v942
        %v1069 = vadd.f32 %v711, %v947
        %v1070 = vadd.f32 %v712, %v952
        %v1071 = vadd.f32 %v713, %v957
        %v1072 = vadd.f32 %v714, %v962
        %v1073 = vadd.f32 %v715, %v967
        %v1074 = vadd.f32 %v716, %v972
        %v1075 = vadd.f32 %v717, %v977
        %v1076 = vadd.f32 %v718, %v982
        %v1077 = vadd.f32 %v719, %v987
        %v1078 = vadd.f32 %v720, %v992
        %v1079 = vadd.f32 %v721, %v997
        %v1080 = vadd.f32 %v722, %v1002
        %v1081 = vadd.f32 %v723, %v1007
        %v1082 = vadd.f32 %v724, %v1012
        %v1083 = vadd.f32 %v725, %v1017
        %v1084 = vadd.f32 %v726, %v1022
        %v1085 = vadd.f32 %v727, %v1027
        %v1086 = vadd.f32 %v728, %v1032
        %v1087 = vadd.f32 %v729, %v1037
        %v1088 = vadd.f32 %v730, %v1042
        %v1089 = vadd.f32 %v731, %v1047
        %v1090 = vadd.f32 %v732, %v1052
        %v1091 = vadd.f32 %v733, %v1057
        %1092 = vst.msk [vmem:[#allocation2] sm:$0xff] %vm182, %v1060
        %1093 = vst.msk [vmem:[#allocation2 + $0x8] sm:$0xff] %vm182, %v1061
        %1094 = vst.msk [vmem:[#allocation2 + $0x10] sm:$0xff] %vm182, %v1062
        %1095 = vst.msk [vmem:[#allocation2 + $0x18] sm:$0xff] %vm182, %v1063
        %1096 = vst.msk [vmem:[#allocation2 + $0x20] sm:$0xff] %vm182, %v1064
        %1097 = vst.msk [vmem:[#allocation2 + $0x28] sm:$0xff] %vm182, %v1065
        %1098 = vst.msk [vmem:[#allocation2 + $0x30] sm:$0xff] %vm182, %v1066
        %1099 = vst.msk [vmem:[#allocation2 + $0x38] sm:$0xff] %vm182, %v1067
        %1100 = vst.msk [vmem:[#allocation2 + $0x40] sm:$0xff] %vm182, %v1068
        %1101 = vst.msk [vmem:[#allocation2 + $0x48] sm:$0xff] %vm182, %v1069
        %1102 = vst.msk [vmem:[#allocation2 + $0x50] sm:$0xff] %vm182, %v1070
        %1103 = vst.msk [vmem:[#allocation2 + $0x58] sm:$0xff] %vm182, %v1071
        %1104 = vst.msk [vmem:[#allocation2 + $0x60] sm:$0xff] %vm182, %v1072
        %1105 = vst.msk [vmem:[#allocation2 + $0x68] sm:$0xff] %vm182, %v1073
        %1106 = vst.msk [vmem:[#allocation2 + $0x70] sm:$0xff] %vm182, %v1074
        %1107 = vst.msk [vmem:[#allocation2 + $0x78] sm:$0xff] %vm182, %v1075
        %1108 = vst.msk [vmem:[#allocation2 + $0x80] sm:$0xff] %vm182, %v1076
        %1109 = vst.msk [vmem:[#allocation2 + $0x88] sm:$0xff] %vm182, %v1077
        %1110 = vst.msk [vmem:[#allocation2 + $0x90] sm:$0xff] %vm182, %v1078
        %1111 = vst.msk [vmem:[#allocation2 + $0x98] sm:$0xff] %vm182, %v1079
        %1112 = vst.msk [vmem:[#allocation2 + $0xa0] sm:$0xff] %vm182, %v1080
        %1113 = vst.msk [vmem:[#allocation2 + $0xa8] sm:$0xff] %vm182, %v1081
        %1114 = vst.msk [vmem:[#allocation2 + $0xb0] sm:$0xff] %vm182, %v1082
        %1115 = vst.msk [vmem:[#allocation2 + $0xb8] sm:$0xff] %vm182, %v1083
        %1116 = vst.msk [vmem:[#allocation2 + $0xc0] sm:$0xff] %vm182, %v1084
        %1117 = vst.msk [vmem:[#allocation2 + $0xc8] sm:$0xff] %vm182, %v1085
        %1118 = vst.msk [vmem:[#allocation2 + $0xd0] sm:$0xff] %vm182, %v1086
        %1119 = vst.msk [vmem:[#allocation2 + $0xd8] sm:$0xff] %vm182, %v1087
        %1120 = vst.msk [vmem:[#allocation2 + $0xe0] sm:$0xff] %vm182, %v1088
        %1121 = vst.msk [vmem:[#allocation2 + $0xe8] sm:$0xff] %vm182, %v1089
        %1122 = vst.msk [vmem:[#allocation2 + $0xf0] sm:$0xff] %vm182, %v1090
        %1123 = vst.msk [vmem:[#allocation2 + $0xf8] sm:$0xff] %vm182, %v1091
        %v1124 = vld [vmem:[%s176 + $0x2] sm:$0xff]
        %v1125 = vld [vmem:[%s176 + $0xa] sm:$0xff]
        %v1126 = vld [vmem:[%s176 + $0x1a] sm:$0xff]
        %v1127 = vld [vmem:[%s176 + $0x22] sm:$0xff]
        %v1128 = vld [vmem:[%s176 + $0x32] sm:$0xff]
        %v1129 = vld [vmem:[%s176 + $0x3a] sm:$0xff]
        %v1130 = vld [vmem:[%s176 + $0x4a] sm:$0xff]
        %v1131 = vld [vmem:[%s176 + $0x52] sm:$0xff]
        %v1132 = vld [vmem:[%s176 + $0x62] sm:$0xff]
        %v1133 = vld [vmem:[%s176 + $0x6a] sm:$0xff]
        %v1134 = vld [vmem:[%s176 + $0x7a] sm:$0xff]
        %v1135 = vld [vmem:[%s176 + $0x82] sm:$0xff]
        %v1136 = vld [vmem:[%s176 + $0x92] sm:$0xff]
        %v1137 = vld [vmem:[%s176 + $0x9a] sm:$0xff]
        %v1138 = vld [vmem:[%s176 + $0xaa] sm:$0xff]
        %v1139 = vld [vmem:[%s176 + $0xb2] sm:$0xff]
        %v1140 = vld [vmem:[%s176 + $0xc2] sm:$0xff]
        %v1141 = vld [vmem:[%s176 + $0xca] sm:$0xff]
        %v1142 = vld [vmem:[%s176 + $0xda] sm:$0xff]
        %v1143 = vld [vmem:[%s176 + $0xe2] sm:$0xff]
        %v1144 = vld [vmem:[%s176 + $0xf2] sm:$0xff]
        %v1145 = vld [vmem:[%s176 + $0xfa] sm:$0xff]
        %v1146 = vld [vmem:[%s176 + $0x10a] sm:$0xff]
        %v1147 = vld [vmem:[%s176 + $0x112] sm:$0xff]
        %v1148 = vld [vmem:[%s176 + $0x122] sm:$0xff]
        %v1149 = vld [vmem:[%s176 + $0x12a] sm:$0xff]
        %v1150 = vld [vmem:[%s176 + $0x13a] sm:$0xff]
        %v1151 = vld [vmem:[%s176 + $0x142] sm:$0xff]
        %v1152 = vld [vmem:[%s176 + $0x152] sm:$0xff]
        %v1153 = vld [vmem:[%s176 + $0x15a] sm:$0xff]
        %v1154 = vld [vmem:[%s176 + $0x16a] sm:$0xff]
        %v1155 = vld [vmem:[%s176 + $0x172] sm:$0xff]
        %v1156 = vld [vmem:[#allocation2] sm:$0xff]
        %v1157 = vld [vmem:[#allocation2 + $0x8] sm:$0xff]
        %v1158 = vld [vmem:[#allocation2 + $0x10] sm:$0xff]
        %v1159 = vld [vmem:[#allocation2 + $0x18] sm:$0xff]
        %v1160 = vld [vmem:[#allocation2 + $0x20] sm:$0xff]
        %v1161 = vld [vmem:[#allocation2 + $0x28] sm:$0xff]
        %v1162 = vld [vmem:[#allocation2 + $0x30] sm:$0xff]
        %v1163 = vld [vmem:[#allocation2 + $0x38] sm:$0xff]
        %v1164 = vld [vmem:[#allocation2 + $0x40] sm:$0xff]
        %v1165 = vld [vmem:[#allocation2 + $0x48] sm:$0xff]
        %v1166 = vld [vmem:[#allocation2 + $0x50] sm:$0xff]
        %v1167 = vld [vmem:[#allocation2 + $0x58] sm:$0xff]
        %v1168 = vld [vmem:[#allocation2 + $0x60] sm:$0xff]
        %v1169 = vld [vmem:[#allocation2 + $0x68] sm:$0xff]
        %v1170 = vld [vmem:[#allocation2 + $0x70] sm:$0xff]
        %v1171 = vld [vmem:[#allocation2 + $0x78] sm:$0xff]
        %v1172 = vld [vmem:[#allocation2 + $0x80] sm:$0xff]
        %v1173 = vld [vmem:[#allocation2 + $0x88] sm:$0xff]
        %v1174 = vld [vmem:[#allocation2 + $0x90] sm:$0xff]
        %v1175 = vld [vmem:[#allocation2 + $0x98] sm:$0xff]
        %v1176 = vld [vmem:[#allocation2 + $0xa0] sm:$0xff]
        %v1177 = vld [vmem:[#allocation2 + $0xa8] sm:$0xff]
        %v1178 = vld [vmem:[#allocation2 + $0xb0] sm:$0xff]
        %v1179 = vld [vmem:[#allocation2 + $0xb8] sm:$0xff]
        %v1180 = vld [vmem:[#allocation2 + $0xc0] sm:$0xff]
        %v1181 = vld [vmem:[#allocation2 + $0xc8] sm:$0xff]
        %v1182 = vld [vmem:[#allocation2 + $0xd0] sm:$0xff]
        %v1183 = vld [vmem:[#allocation2 + $0xd8] sm:$0xff]
        %v1184 = vld [vmem:[#allocation2 + $0xe0] sm:$0xff]
        %v1185 = vld [vmem:[#allocation2 + $0xe8] sm:$0xff]
        %v1186 = vld [vmem:[#allocation2 + $0xf0] sm:$0xff]
        %v1187 = vld [vmem:[#allocation2 + $0xf8] sm:$0xff]
        %s1188 = scalar_lea.vmem %s1, 8
        %v1189 = vld [vmem:[%s1188] sm:$0xf]
        %v1191 = vsel %vm280, %v1124, 0
        %v1194 = vsel %vm280, %v1125, 0
        %v1197 = vsel %vm280, %v1126, 0
        %v1200 = vsel %vm280, %v1127, 0
        %v1203 = vsel %vm280, %v1128, 0
        %v1206 = vsel %vm280, %v1129, 0
        %v1209 = vsel %vm280, %v1130, 0
        %v1212 = vsel %vm280, %v1131, 0
        %v1215 = vsel %vm280, %v1132, 0
        %v1218 = vsel %vm280, %v1133, 0
        %v1221 = vsel %vm280, %v1134, 0
        %v1224 = vsel %vm280, %v1135, 0
        %v1227 = vsel %vm280, %v1136, 0
        %v1230 = vsel %vm280, %v1137, 0
        %v1233 = vsel %vm280, %v1138, 0
        %v1236 = vsel %vm280, %v1139, 0
        %v1239 = vsel %vm280, %v1140, 0
        %v1242 = vsel %vm280, %v1141, 0
        %v1245 = vsel %vm280, %v1142, 0
        %v1248 = vsel %vm280, %v1143, 0
        %v1251 = vsel %vm280, %v1144, 0
        %v1254 = vsel %vm280, %v1145, 0
        %v1257 = vsel %vm280, %v1146, 0
        %v1260 = vsel %vm280, %v1147, 0
        %v1263 = vsel %vm280, %v1148, 0
        %v1266 = vsel %vm280, %v1149, 0
        %v1269 = vsel %vm280, %v1150, 0
        %v1272 = vsel %vm280, %v1151, 0
        %v1275 = vsel %vm280, %v1152, 0
        %v1278 = vsel %vm280, %v1153, 0
        %v1281 = vsel %vm280, %v1154, 0
        %v1284 = vsel %vm280, %v1155, 0
        %v1287 = vsel %vm377, %v1189, 0
        %1289 = vmatprep.subr.mxu0 0.0
        %1290 = vmatpush1.msra.mxu0 %v1287
        %1291 = vmatprep.subr.mxu0 0.0
        %1292 = vmatpush1.msra.mxu0 0.0
        %1293 = vmatprep.subr.mxu0 0.0
        %1294 = vmatpush1.msra.mxu0 0.0
        %1295 = vmatprep.subr.mxu0 0.0
        %1296 = vmatpush1.msra.mxu0 0.0
        %1297 = vmatprep.subr.mxu0 0.0
        %1298 = vmatpush1.msra.mxu0 0.0
        %1299 = vmatprep.subr.mxu0 0.0
        %1300 = vmatpush1.msra.mxu0 0.0
        %1301 = vmatprep.subr.mxu0 0.0
        %1302 = vmatpush1.msra.mxu0 0.0
        %1303 = vmatprep.subr.mxu0 0.0
        %1304 = vmatpush1.msra.mxu0 0.0
        %1305 = vmatprep.subr.mxu0 0.0
        %1306 = vmatpush1.msra.mxu0 0.0
        %1307 = vmatprep.subr.mxu0 0.0
        %1308 = vmatpush1.msra.mxu0 0.0
        %1309 = vmatprep.subr.mxu0 0.0
        %1310 = vmatpush1.msra.mxu0 0.0
        %1311 = vmatprep.subr.mxu0 0.0
        %1312 = vmatpush1.msra.mxu0 0.0
        %1313 = vmatprep.subr.mxu0 0.0
        %1314 = vmatpush1.msra.mxu0 0.0
        %1315 = vmatprep.subr.mxu0 0.0
        %1316 = vmatpush1.msra.mxu0 0.0
        %1317 = vmatprep.subr.mxu0 0.0
        %1318 = vmatpush1.msra.mxu0 0.0
        %1319 = vmatprep.subr.mxu0 0.0
        %1320 = vmatpush1.msra.mxu0 0.0
        %1321 = vmatprep.subr.mxu0 0.0
        %1322 = vmatpush1.msra.mxu0 0.0
        %1323 = vmatprep.subr.mxu0 0.0
        %1324 = vmatpush1.msra.mxu0 0.0
        %1325 = vmatprep.subr.mxu0 0.0
        %1326 = vmatpush1.msra.mxu0 0.0
        %1327 = vmatprep.subr.mxu0 0.0
        %1328 = vmatpush1.msra.mxu0 0.0
        %1329 = vmatprep.subr.mxu0 0.0
        %1330 = vmatpush1.msra.mxu0 0.0
        %1331 = vmatprep.subr.mxu0 0.0
        %1332 = vmatpush1.msra.mxu0 0.0
        %1333 = vmatprep.subr.mxu0 0.0
        %1334 = vmatpush1.msra.mxu0 0.0
        %1335 = vmatprep.subr.mxu0 0.0
        %1336 = vmatpush1.msra.mxu0 0.0
        %1337 = vmatprep.subr.mxu0 0.0
        %1338 = vmatpush1.msra.mxu0 0.0
        %1339 = vmatprep.subr.mxu0 0.0
        %1340 = vmatpush1.msra.mxu0 0.0
        %1341 = vmatprep.subr.mxu0 0.0
        %1342 = vmatpush1.msra.mxu0 0.0
        %1343 = vmatprep.subr.mxu0 0.0
        %1344 = vmatpush1.msra.mxu0 0.0
        %1345 = vmatprep.subr.mxu0 0.0
        %1346 = vmatpush1.msra.mxu0 0.0
        %1347 = vmatprep.subr.mxu0 0.0
        %1348 = vmatpush1.msra.mxu0 0.0
        %1349 = vmatprep.subr.mxu0 0.0
        %1350 = vmatpush1.msra.mxu0 0.0
        %1351 = vmatprep.subr.mxu0 0.0
        %1352 = vmatpush1.msra.mxu0 0.0
        %1353 = vmatprep.mubr.f32.mxu0 0.0
        %1354 = vmatmul.mubr.f32.gmra.mrb[0].mxu0 %v1191
        %v1355 = vpop.f32.mrb[0].mxu0
        %v1356 = vadd.f32 0.0, %v1355
        %v1357 = vpop.f32.mrb[0].mxu0
        %1358 = vmatprep.mubr.f32.mxu0 0.0
        %1359 = vmatmul.mubr.f32.gmra.mrb[0].mxu0 %v1194
        %v1360 = vpop.f32.mrb[0].mxu0
        %v1361 = vadd.f32 0.0, %v1360
        %v1362 = vpop.f32.mrb[0].mxu0
        %1363 = vmatprep.mubr.f32.mxu0 0.0
        %1364 = vmatmul.mubr.f32.gmra.mrb[0].mxu0 %v1197
        %v1365 = vpop.f32.mrb[0].mxu0
        %v1366 = vadd.f32 0.0, %v1365
        %v1367 = vpop.f32.mrb[0].mxu0
        %1368 = vmatprep.mubr.f32.mxu0 0.0
        %1369 = vmatmul.mubr.f32.gmra.mrb[0].mxu0 %v1200
        %v1370 = vpop.f32.mrb[0].mxu0
        %v1371 = vadd.f32 0.0, %v1370
        %v1372 = vpop.f32.mrb[0].mxu0
        %1373 = vmatprep.mubr.f32.mxu0 0.0
        %1374 = vmatmul.mubr.f32.gmra.mrb[0].mxu0 %v1203
        %v1375 = vpop.f32.mrb[0].mxu0
        %v1376 = vadd.f32 0.0, %v1375
        %v1377 = vpop.f32.mrb[0].mxu0
        %1378 = vmatprep.mubr.f32.mxu0 0.0
        %1379 = vmatmul.mubr.f32.gmra.mrb[0].mxu0 %v1206
        %v1380 = vpop.f32.mrb[0].mxu0
        %v1381 = vadd.f32 0.0, %v1380
        %v1382 = vpop.f32.mrb[0].mxu0
        %1383 = vmatprep.mubr.f32.mxu0 0.0
        %1384 = vmatmul.mubr.f32.gmra.mrb[0].mxu0 %v1209
        %v1385 = vpop.f32.mrb[0].mxu0
        %v1386 = vadd.f32 0.0, %v1385
        %v1387 = vpop.f32.mrb[0].mxu0
        %1388 = vmatprep.mubr.f32.mxu0 0.0
        %1389 = vmatmul.mubr.f32.gmra.mrb[0].mxu0 %v1212
        %v1390 = vpop.f32.mrb[0].mxu0
        %v1391 = vadd.f32 0.0, %v1390
        %v1392 = vpop.f32.mrb[0].mxu0
        %1393 = vmatprep.mubr.f32.mxu0 0.0
        %1394 = vmatmul.mubr.f32.gmra.mrb[0].mxu0 %v1215
        %v1395 = vpop.f32.mrb[0].mxu0
        %v1396 = vadd.f32 0.0, %v1395
        %v1397 = vpop.f32.mrb[0].mxu0
        %1398 = vmatprep.mubr.f32.mxu0 0.0
        %1399 = vmatmul.mubr.f32.gmra.mrb[0].mxu0 %v1218
        %v1400 = vpop.f32.mrb[0].mxu0
        %v1401 = vadd.f32 0.0, %v1400
        %v1402 = vpop.f32.mrb[0].mxu0
        %1403 = vmatprep.mubr.f32.mxu0 0.0
        %1404 = vmatmul.mubr.f32.gmra.mrb[0].mxu0 %v1221
        %v1405 = vpop.f32.mrb[0].mxu0
        %v1406 = vadd.f32 0.0, %v1405
        %v1407 = vpop.f32.mrb[0].mxu0
        %1408 = vmatprep.mubr.f32.mxu0 0.0
        %1409 = vmatmul.mubr.f32.gmra.mrb[0].mxu0 %v1224
        %v1410 = vpop.f32.mrb[0].mxu0
        %v1411 = vadd.f32 0.0, %v1410
        %v1412 = vpop.f32.mrb[0].mxu0
        %1413 = vmatprep.mubr.f32.mxu0 0.0
        %1414 = vmatmul.mubr.f32.gmra.mrb[0].mxu0 %v1227
        %v1415 = vpop.f32.mrb[0].mxu0
        %v1416 = vadd.f32 0.0, %v1415
        %v1417 = vpop.f32.mrb[0].mxu0
        %1418 = vmatprep.mubr.f32.mxu0 0.0
        %1419 = vmatmul.mubr.f32.gmra.mrb[0].mxu0 %v1230
        %v1420 = vpop.f32.mrb[0].mxu0
        %v1421 = vadd.f32 0.0, %v1420
        %v1422 = vpop.f32.mrb[0].mxu0
        %1423 = vmatprep.mubr.f32.mxu0 0.0
        %1424 = vmatmul.mubr.f32.gmra.mrb[0].mxu0 %v1233
        %v1425 = vpop.f32.mrb[0].mxu0
        %v1426 = vadd.f32 0.0, %v1425
        %v1427 = vpop.f32.mrb[0].mxu0
        %1428 = vmatprep.mubr.f32.mxu0 0.0
        %1429 = vmatmul.mubr.f32.gmra.mrb[0].mxu0 %v1236
        %v1430 = vpop.f32.mrb[0].mxu0
        %v1431 = vadd.f32 0.0, %v1430
        %v1432 = vpop.f32.mrb[0].mxu0
        %1433 = vmatprep.mubr.f32.mxu0 0.0
        %1434 = vmatmul.mubr.f32.gmra.mrb[0].mxu0 %v1239
        %v1435 = vpop.f32.mrb[0].mxu0
        %v1436 = vadd.f32 0.0, %v1435
        %v1437 = vpop.f32.mrb[0].mxu0
        %1438 = vmatprep.mubr.f32.mxu0 0.0
        %1439 = vmatmul.mubr.f32.gmra.mrb[0].mxu0 %v1242
        %v1440 = vpop.f32.mrb[0].mxu0
        %v1441 = vadd.f32 0.0, %v1440
        %v1442 = vpop.f32.mrb[0].mxu0
        %1443 = vmatprep.mubr.f32.mxu0 0.0
        %1444 = vmatmul.mubr.f32.gmra.mrb[0].mxu0 %v1245
        %v1445 = vpop.f32.mrb[0].mxu0
        %v1446 = vadd.f32 0.0, %v1445
        %v1447 = vpop.f32.mrb[0].mxu0
        %1448 = vmatprep.mubr.f32.mxu0 0.0
        %1449 = vmatmul.mubr.f32.gmra.mrb[0].mxu0 %v1248
        %v1450 = vpop.f32.mrb[0].mxu0
        %v1451 = vadd.f32 0.0, %v1450
        %v1452 = vpop.f32.mrb[0].mxu0
        %1453 = vmatprep.mubr.f32.mxu0 0.0
        %1454 = vmatmul.mubr.f32.gmra.mrb[0].mxu0 %v1251
        %v1455 = vpop.f32.mrb[0].mxu0
        %v1456 = vadd.f32 0.0, %v1455
        %v1457 = vpop.f32.mrb[0].mxu0
        %1458 = vmatprep.mubr.f32.mxu0 0.0
        %1459 = vmatmul.mubr.f32.gmra.mrb[0].mxu0 %v1254
        %v1460 = vpop.f32.mrb[0].mxu0
        %v1461 = vadd.f32 0.0, %v1460
        %v1462 = vpop.f32.mrb[0].mxu0
        %1463 = vmatprep.mubr.f32.mxu0 0.0
        %1464 = vmatmul.mubr.f32.gmra.mrb[0].mxu0 %v1257
        %v1465 = vpop.f32.mrb[0].mxu0
        %v1466 = vadd.f32 0.0, %v1465
        %v1467 = vpop.f32.mrb[0].mxu0
        %1468 = vmatprep.mubr.f32.mxu0 0.0
        %1469 = vmatmul.mubr.f32.gmra.mrb[0].mxu0 %v1260
        %v1470 = vpop.f32.mrb[0].mxu0
        %v1471 = vadd.f32 0.0, %v1470
        %v1472 = vpop.f32.mrb[0].mxu0
        %1473 = vmatprep.mubr.f32.mxu0 0.0
        %1474 = vmatmul.mubr.f32.gmra.mrb[0].mxu0 %v1263
        %v1475 = vpop.f32.mrb[0].mxu0
        %v1476 = vadd.f32 0.0, %v1475
        %v1477 = vpop.f32.mrb[0].mxu0
        %1478 = vmatprep.mubr.f32.mxu0 0.0
        %1479 = vmatmul.mubr.f32.gmra.mrb[0].mxu0 %v1266
        %v1480 = vpop.f32.mrb[0].mxu0
        %v1481 = vadd.f32 0.0, %v1480
        %v1482 = vpop.f32.mrb[0].mxu0
        %1483 = vmatprep.mubr.f32.mxu0 0.0
        %1484 = vmatmul.mubr.f32.gmra.mrb[0].mxu0 %v1269
        %v1485 = vpop.f32.mrb[0].mxu0
        %v1486 = vadd.f32 0.0, %v1485
        %v1487 = vpop.f32.mrb[0].mxu0
        %1488 = vmatprep.mubr.f32.mxu0 0.0
        %1489 = vmatmul.mubr.f32.gmra.mrb[0].mxu0 %v1272
        %v1490 = vpop.f32.mrb[0].mxu0
        %v1491 = vadd.f32 0.0, %v1490
        %v1492 = vpop.f32.mrb[0].mxu0
        %1493 = vmatprep.mubr.f32.mxu0 0.0
        %1494 = vmatmul.mubr.f32.gmra.mrb[0].mxu0 %v1275
        %v1495 = vpop.f32.mrb[0].mxu0
        %v1496 = vadd.f32 0.0, %v1495
        %v1497 = vpop.f32.mrb[0].mxu0
        %1498 = vmatprep.mubr.f32.mxu0 0.0
        %1499 = vmatmul.mubr.f32.gmra.mrb[0].mxu0 %v1278
        %v1500 = vpop.f32.mrb[0].mxu0
        %v1501 = vadd.f32 0.0, %v1500
        %v1502 = vpop.f32.mrb[0].mxu0
        %1503 = vmatprep.mubr.f32.mxu0 0.0
        %1504 = vmatmul.mubr.f32.gmra.mrb[0].mxu0 %v1281
        %v1505 = vpop.f32.mrb[0].mxu0
        %v1506 = vadd.f32 0.0, %v1505
        %v1507 = vpop.f32.mrb[0].mxu0
        %1508 = vmatprep.mubr.f32.mxu0 0.0
        %1509 = vmatmul.mubr.f32.gmra.mrb[0].mxu0 %v1284
        %v1510 = vpop.f32.mrb[0].mxu0
        %v1511 = vadd.f32 0.0, %v1510
        %v1512 = vpop.f32.mrb[0].mxu0
        %1513 = vdwg.mxu0
        %v1514 = vadd.f32 %v1156, %v1356
        %v1515 = vadd.f32 %v1157, %v1361
        %v1516 = vadd.f32 %v1158, %v1366
        %v1517 = vadd.f32 %v1159, %v1371
        %v1518 = vadd.f32 %v1160, %v1376
        %v1519 = vadd.f32 %v1161, %v1381
        %v1520 = vadd.f32 %v1162, %v1386
        %v1521 = vadd.f32 %v1163, %v1391
        %v1522 = vadd.f32 %v1164, %v1396
        %v1523 = vadd.f32 %v1165, %v1401
        %v1524 = vadd.f32 %v1166, %v1406
        %v1525 = vadd.f32 %v1167, %v1411
        %v1526 = vadd.f32 %v1168, %v1416
        %v1527 = vadd.f32 %v1169, %v1421
        %v1528 = vadd.f32 %v1170, %v1426
        %v1529 = vadd.f32 %v1171, %v1431
        %v1530 = vadd.f32 %v1172, %v1436
        %v1531 = vadd.f32 %v1173, %v1441
        %v1532 = vadd.f32 %v1174, %v1446
        %v1533 = vadd.f32 %v1175, %v1451
        %v1534 = vadd.f32 %v1176, %v1456
        %v1535 = vadd.f32 %v1177, %v1461
        %v1536 = vadd.f32 %v1178, %v1466
        %v1537 = vadd.f32 %v1179, %v1471
        %v1538 = vadd.f32 %v1180, %v1476
        %v1539 = vadd.f32 %v1181, %v1481
        %v1540 = vadd.f32 %v1182, %v1486
        %v1541 = vadd.f32 %v1183, %v1491
        %v1542 = vadd.f32 %v1184, %v1496
        %v1543 = vadd.f32 %v1185, %v1501
        %v1544 = vadd.f32 %v1186, %v1506
        %v1545 = vadd.f32 %v1187, %v1511
        %1546 = vst.msk [vmem:[#allocation2] sm:$0xff] %vm182, %v1514
        %1547 = vst.msk [vmem:[#allocation2 + $0x8] sm:$0xff] %vm182, %v1515
        %1548 = vst.msk [vmem:[#allocation2 + $0x10] sm:$0xff] %vm182, %v1516
        %1549 = vst.msk [vmem:[#allocation2 + $0x18] sm:$0xff] %vm182, %v1517
        %1550 = vst.msk [vmem:[#allocation2 + $0x20] sm:$0xff] %vm182, %v1518
        %1551 = vst.msk [vmem:[#allocation2 + $0x28] sm:$0xff] %vm182, %v1519
        %1552 = vst.msk [vmem:[#allocation2 + $0x30] sm:$0xff] %vm182, %v1520
        %1553 = vst.msk [vmem:[#allocation2 + $0x38] sm:$0xff] %vm182, %v1521
        %1554 = vst.msk [vmem:[#allocation2 + $0x40] sm:$0xff] %vm182, %v1522
        %1555 = vst.msk [vmem:[#allocation2 + $0x48] sm:$0xff] %vm182, %v1523
        %1556 = vst.msk [vmem:[#allocation2 + $0x50] sm:$0xff] %vm182, %v1524
        %1557 = vst.msk [vmem:[#allocation2 + $0x58] sm:$0xff] %vm182, %v1525
        %1558 = vst.msk [vmem:[#allocation2 + $0x60] sm:$0xff] %vm182, %v1526
        %1559 = vst.msk [vmem:[#allocation2 + $0x68] sm:$0xff] %vm182, %v1527
        %1560 = vst.msk [vmem:[#allocation2 + $0x70] sm:$0xff] %vm182, %v1528
        %1561 = vst.msk [vmem:[#allocation2 + $0x78] sm:$0xff] %vm182, %v1529
        %1562 = vst.msk [vmem:[#allocation2 + $0x80] sm:$0xff] %vm182, %v1530
        %1563 = vst.msk [vmem:[#allocation2 + $0x88] sm:$0xff] %vm182, %v1531
        %1564 = vst.msk [vmem:[#allocation2 + $0x90] sm:$0xff] %vm182, %v1532
        %1565 = vst.msk [vmem:[#allocation2 + $0x98] sm:$0xff] %vm182, %v1533
        %1566 = vst.msk [vmem:[#allocation2 + $0xa0] sm:$0xff] %vm182, %v1534
        %1567 = vst.msk [vmem:[#allocation2 + $0xa8] sm:$0xff] %vm182, %v1535
        %1568 = vst.msk [vmem:[#allocation2 + $0xb0] sm:$0xff] %vm182, %v1536
        %1569 = vst.msk [vmem:[#allocation2 + $0xb8] sm:$0xff] %vm182, %v1537
        %1570 = vst.msk [vmem:[#allocation2 + $0xc0] sm:$0xff] %vm182, %v1538
        %1571 = vst.msk [vmem:[#allocation2 + $0xc8] sm:$0xff] %vm182, %v1539
        %1572 = vst.msk [vmem:[#allocation2 + $0xd0] sm:$0xff] %vm182, %v1540
        %1573 = vst.msk [vmem:[#allocation2 + $0xd8] sm:$0xff] %vm182, %v1541
        %1574 = vst.msk [vmem:[#allocation2 + $0xe0] sm:$0xff] %vm182, %v1542
        %1575 = vst.msk [vmem:[#allocation2 + $0xe8] sm:$0xff] %vm182, %v1543
        %1576 = vst.msk [vmem:[#allocation2 + $0xf0] sm:$0xff] %vm182, %v1544
        %1577 = vst.msk [vmem:[#allocation2 + $0xf8] sm:$0xff] %vm182, %v1545
        %s1578 = scalar_lea.vmem %s176, 24
        %v1579 = vld [vmem:[%s1578] sm:$0xff]
        %v1580 = vld [vmem:[%s1578 + $0x8] sm:$0xff]
        %v1581 = vld [vmem:[%s1578 + $0x18] sm:$0xff]
        %v1582 = vld [vmem:[%s1578 + $0x20] sm:$0xff]
        %v1583 = vld [vmem:[%s1578 + $0x30] sm:$0xff]
        %v1584 = vld [vmem:[%s1578 + $0x38] sm:$0xff]
        %v1585 = vld [vmem:[%s1578 + $0x48] sm:$0xff]
        %v1586 = vld [vmem:[%s1578 + $0x50] sm:$0xff]
        %v1587 = vld [vmem:[%s1578 + $0x60] sm:$0xff]
        %v1588 = vld [vmem:[%s1578 + $0x68] sm:$0xff]
        %v1589 = vld [vmem:[%s1578 + $0x78] sm:$0xff]
        %v1590 = vld [vmem:[%s1578 + $0x80] sm:$0xff]
        %v1591 = vld [vmem:[%s1578 + $0x90] sm:$0xff]
        %v1592 = vld [vmem:[%s1578 + $0x98] sm:$0xff]
        %v1593 = vld [vmem:[%s1578 + $0xa8] sm:$0xff]
        %v1594 = vld [vmem:[%s1578 + $0xb0] sm:$0xff]
        %v1595 = vld [vmem:[%s1578 + $0xc0] sm:$0xff]
        %v1596 = vld [vmem:[%s1578 + $0xc8] sm:$0xff]
        %v1597 = vld [vmem:[%s1578 + $0xd8] sm:$0xff]
        %v1598 = vld [vmem:[%s1578 + $0xe0] sm:$0xff]
        %v1599 = vld [vmem:[%s1578 + $0xf0] sm:$0xff]
        %v1600 = vld [vmem:[%s1578 + $0xf8] sm:$0xff]
        %v1601 = vld [vmem:[%s1578 + $0x108] sm:$0xff]
        %v1602 = vld [vmem:[%s1578 + $0x110] sm:$0xff]
        %v1603 = vld [vmem:[%s1578 + $0x120] sm:$0xff]
        %v1604 = vld [vmem:[%s1578 + $0x128] sm:$0xff]
        %v1605 = vld [vmem:[%s1578 + $0x138] sm:$0xff]
        %v1606 = vld [vmem:[%s1578 + $0x140] sm:$0xff]
        %v1607 = vld [vmem:[%s1578 + $0x150] sm:$0xff]
        %v1608 = vld [vmem:[%s1578 + $0x158] sm:$0xff]
        %v1609 = vld [vmem:[%s1578 + $0x168] sm:$0xff]
        %v1610 = vld [vmem:[%s1578 + $0x170] sm:$0xff]
        %v1611 = vld [vmem:[#allocation2] sm:$0xff]
        %v1612 = vld [vmem:[#allocation2 + $0x8] sm:$0xff]
        %v1613 = vld [vmem:[#allocation2 + $0x10] sm:$0xff]
        %v1614 = vld [vmem:[#allocation2 + $0x18] sm:$0xff]
        %v1615 = vld [vmem:[#allocation2 + $0x20] sm:$0xff]
        %v1616 = vld [vmem:[#allocation2 + $0x28] sm:$0xff]
        %v1617 = vld [vmem:[#allocation2 + $0x30] sm:$0xff]
        %v1618 = vld [vmem:[#allocation2 + $0x38] sm:$0xff]
        %v1619 = vld [vmem:[#allocation2 + $0x40] sm:$0xff]
        %v1620 = vld [vmem:[#allocation2 + $0x48] sm:$0xff]
        %v1621 = vld [vmem:[#allocation2 + $0x50] sm:$0xff]
        %v1622 = vld [vmem:[#allocation2 + $0x58] sm:$0xff]
        %v1623 = vld [vmem:[#allocation2 + $0x60] sm:$0xff]
        %v1624 = vld [vmem:[#allocation2 + $0x68] sm:$0xff]
        %v1625 = vld [vmem:[#allocation2 + $0x70] sm:$0xff]
        %v1626 = vld [vmem:[#allocation2 + $0x78] sm:$0xff]
        %v1627 = vld [vmem:[#allocation2 + $0x80] sm:$0xff]
        %v1628 = vld [vmem:[#allocation2 + $0x88] sm:$0xff]
        %v1629 = vld [vmem:[#allocation2 + $0x90] sm:$0xff]
        %v1630 = vld [vmem:[#allocation2 + $0x98] sm:$0xff]
        %v1631 = vld [vmem:[#allocation2 + $0xa0] sm:$0xff]
        %v1632 = vld [vmem:[#allocation2 + $0xa8] sm:$0xff]
        %v1633 = vld [vmem:[#allocation2 + $0xb0] sm:$0xff]
        %v1634 = vld [vmem:[#allocation2 + $0xb8] sm:$0xff]
        %v1635 = vld [vmem:[#allocation2 + $0xc0] sm:$0xff]
        %v1636 = vld [vmem:[#allocation2 + $0xc8] sm:$0xff]
        %v1637 = vld [vmem:[#allocation2 + $0xd0] sm:$0xff]
        %v1638 = vld [vmem:[#allocation2 + $0xd8] sm:$0xff]
        %v1639 = vld [vmem:[#allocation2 + $0xe0] sm:$0xff]
        %v1640 = vld [vmem:[#allocation2 + $0xe8] sm:$0xff]
        %v1641 = vld [vmem:[#allocation2 + $0xf0] sm:$0xff]
        %v1642 = vld [vmem:[#allocation2 + $0xf8] sm:$0xff]
        %s1643 = scalar_lea.vmem %s1, 12
        %v1644 = vld [vmem:[%s1643] sm:$0xf]
        %v1646 = vsel %vm280, %v1579, 0
        %v1649 = vsel %vm280, %v1580, 0
        %v1652 = vsel %vm280, %v1581, 0
        %v1655 = vsel %vm280, %v1582, 0
        %v1658 = vsel %vm280, %v1583, 0
        %v1661 = vsel %vm280, %v1584, 0
        %v1664 = vsel %vm280, %v1585, 0
        %v1667 = vsel %vm280, %v1586, 0
        %v1670 = vsel %vm280, %v1587, 0
        %v1673 = vsel %vm280, %v1588, 0
        %v1676 = vsel %vm280, %v1589, 0
        %v1679 = vsel %vm280, %v1590, 0
        %v1682 = vsel %vm280, %v1591, 0
        %v1685 = vsel %vm280, %v1592, 0
        %v1688 = vsel %vm280, %v1593, 0
        %v1691 = vsel %vm280, %v1594, 0
        %v1694 = vsel %vm280, %v1595, 0
        %v1697 = vsel %vm280, %v1596, 0
        %v1700 = vsel %vm280, %v1597, 0
        %v1703 = vsel %vm280, %v1598, 0
        %v1706 = vsel %vm280, %v1599, 0
        %v1709 = vsel %vm280, %v1600, 0
        %v1712 = vsel %vm280, %v1601, 0
        %v1715 = vsel %vm280, %v1602, 0
        %v1718 = vsel %vm280, %v1603, 0
        %v1721 = vsel %vm280, %v1604, 0
        %v1724 = vsel %vm280, %v1605, 0
        %v1727 = vsel %vm280, %v1606, 0
        %v1730 = vsel %vm280, %v1607, 0
        %v1733 = vsel %vm280, %v1608, 0
        %v1736 = vsel %vm280, %v1609, 0
        %v1739 = vsel %vm280, %v1610, 0
        %v1742 = vsel %vm377, %v1644, 0
        %1744 = vmatprep.subr.mxu0 0.0
        %1745 = vmatpush1.msra.mxu0 %v1742
        %1746 = vmatprep.subr.mxu0 0.0
        %1747 = vmatpush1.msra.mxu0 0.0
        %1748 = vmatprep.subr.mxu0 0.0
        %1749 = vmatpush1.msra.mxu0 0.0
        %1750 = vmatprep.subr.mxu0 0.0
        %1751 = vmatpush1.msra.mxu0 0.0
        %1752 = vmatprep.subr.mxu0 0.0
        %1753 = vmatpush1.msra.mxu0 0.0
        %1754 = vmatprep.subr.mxu0 0.0
        %1755 = vmatpush1.msra.mxu0 0.0
        %1756 = vmatprep.subr.mxu0 0.0
        %1757 = vmatpush1.msra.mxu0 0.0
        %1758 = vmatprep.subr.mxu0 0.0
        %1759 = vmatpush1.msra.mxu0 0.0
        %1760 = vmatprep.subr.mxu0 0.0
        %1761 = vmatpush1.msra.mxu0 0.0
        %1762 = vmatprep.subr.mxu0 0.0
        %1763 = vmatpush1.msra.mxu0 0.0
        %1764 = vmatprep.subr.mxu0 0.0
        %1765 = vmatpush1.msra.mxu0 0.0
        %1766 = vmatprep.subr.mxu0 0.0
        %1767 = vmatpush1.msra.mxu0 0.0
        %1768 = vmatprep.subr.mxu0 0.0
        %1769 = vmatpush1.msra.mxu0 0.0
        %1770 = vmatprep.subr.mxu0 0.0
        %1771 = vmatpush1.msra.mxu0 0.0
        %1772 = vmatprep.subr.mxu0 0.0
        %1773 = vmatpush1.msra.mxu0 0.0
        %1774 = vmatprep.subr.mxu0 0.0
        %1775 = vmatpush1.msra.mxu0 0.0
        %1776 = vmatprep.subr.mxu0 0.0
        %1777 = vmatpush1.msra.mxu0 0.0
        %1778 = vmatprep.subr.mxu0 0.0
        %1779 = vmatpush1.msra.mxu0 0.0
        %1780 = vmatprep.subr.mxu0 0.0
        %1781 = vmatpush1.msra.mxu0 0.0
        %1782 = vmatprep.subr.mxu0 0.0
        %1783 = vmatpush1.msra.mxu0 0.0
        %1784 = vmatprep.subr.mxu0 0.0
        %1785 = vmatpush1.msra.mxu0 0.0
        %1786 = vmatprep.subr.mxu0 0.0
        %1787 = vmatpush1.msra.mxu0 0.0
        %1788 = vmatprep.subr.mxu0 0.0
        %1789 = vmatpush1.msra.mxu0 0.0
        %1790 = vmatprep.subr.mxu0 0.0
        %1791 = vmatpush1.msra.mxu0 0.0
        %1792 = vmatprep.subr.mxu0 0.0
        %1793 = vmatpush1.msra.mxu0 0.0
        %1794 = vmatprep.subr.mxu0 0.0
        %1795 = vmatpush1.msra.mxu0 0.0
        %1796 = vmatprep.subr.mxu0 0.0
        %1797 = vmatpush1.msra.mxu0 0.0
        %1798 = vmatprep.subr.mxu0 0.0
        %1799 = vmatpush1.msra.mxu0 0.0
        %1800 = vmatprep.subr.mxu0 0.0
        %1801 = vmatpush1.msra.mxu0 0.0
        %1802 = vmatprep.subr.mxu0 0.0
        %1803 = vmatpush1.msra.mxu0 0.0
        %1804 = vmatprep.subr.mxu0 0.0
        %1805 = vmatpush1.msra.mxu0 0.0
        %1806 = vmatprep.subr.mxu0 0.0
        %1807 = vmatpush1.msra.mxu0 0.0
        %1808 = vmatprep.mubr.f32.mxu0 0.0
        %1809 = vmatmul.mubr.f32.gmra.mrb[0].mxu0 %v1646
        %v1810 = vpop.f32.mrb[0].mxu0
        %v1811 = vadd.f32 0.0, %v1810
        %v1812 = vpop.f32.mrb[0].mxu0
        %1813 = vmatprep.mubr.f32.mxu0 0.0
        %1814 = vmatmul.mubr.f32.gmra.mrb[0].mxu0 %v1649
        %v1815 = vpop.f32.mrb[0].mxu0
        %v1816 = vadd.f32 0.0, %v1815
        %v1817 = vpop.f32.mrb[0].mxu0
        %1818 = vmatprep.mubr.f32.mxu0 0.0
        %1819 = vmatmul.mubr.f32.gmra.mrb[0].mxu0 %v1652
        %v1820 = vpop.f32.mrb[0].mxu0
        %v1821 = vadd.f32 0.0, %v1820
        %v1822 = vpop.f32.mrb[0].mxu0
        %1823 = vmatprep.mubr.f32.mxu0 0.0
        %1824 = vmatmul.mubr.f32.gmra.mrb[0].mxu0 %v1655
        %v1825 = vpop.f32.mrb[0].mxu0
        %v1826 = vadd.f32 0.0, %v1825
        %v1827 = vpop.f32.mrb[0].mxu0
        %1828 = vmatprep.mubr.f32.mxu0 0.0
        %1829 = vmatmul.mubr.f32.gmra.mrb[0].mxu0 %v1658
        %v1830 = vpop.f32.mrb[0].mxu0
        %v1831 = vadd.f32 0.0, %v1830
        %v1832 = vpop.f32.mrb[0].mxu0
        %1833 = vmatprep.mubr.f32.mxu0 0.0
        %1834 = vmatmul.mubr.f32.gmra.mrb[0].mxu0 %v1661
        %v1835 = vpop.f32.mrb[0].mxu0
        %v1836 = vadd.f32 0.0, %v1835
        %v1837 = vpop.f32.mrb[0].mxu0
        %1838 = vmatprep.mubr.f32.mxu0 0.0
        %1839 = vmatmul.mubr.f32.gmra.mrb[0].mxu0 %v1664
        %v1840 = vpop.f32.mrb[0].mxu0
        %v1841 = vadd.f32 0.0, %v1840
        %v1842 = vpop.f32.mrb[0].mxu0
        %1843 = vmatprep.mubr.f32.mxu0 0.0
        %1844 = vmatmul.mubr.f32.gmra.mrb[0].mxu0 %v1667
        %v1845 = vpop.f32.mrb[0].mxu0
        %v1846 = vadd.f32 0.0, %v1845
        %v1847 = vpop.f32.mrb[0].mxu0
        %1848 = vmatprep.mubr.f32.mxu0 0.0
        %1849 = vmatmul.mubr.f32.gmra.mrb[0].mxu0 %v1670
        %v1850 = vpop.f32.mrb[0].mxu0
        %v1851 = vadd.f32 0.0, %v1850
        %v1852 = vpop.f32.mrb[0].mxu0
        %1853 = vmatprep.mubr.f32.mxu0 0.0
        %1854 = vmatmul.mubr.f32.gmra.mrb[0].mxu0 %v1673
        %v1855 = vpop.f32.mrb[0].mxu0
        %v1856 = vadd.f32 0.0, %v1855
        %v1857 = vpop.f32.mrb[0].mxu0
        %1858 = vmatprep.mubr.f32.mxu0 0.0
        %1859 = vmatmul.mubr.f32.gmra.mrb[0].mxu0 %v1676
        %v1860 = vpop.f32.mrb[0].mxu0
        %v1861 = vadd.f32 0.0, %v1860
        %v1862 = vpop.f32.mrb[0].mxu0
        %1863 = vmatprep.mubr.f32.mxu0 0.0
        %1864 = vmatmul.mubr.f32.gmra.mrb[0].mxu0 %v1679
        %v1865 = vpop.f32.mrb[0].mxu0
        %v1866 = vadd.f32 0.0, %v1865
        %v1867 = vpop.f32.mrb[0].mxu0
        %1868 = vmatprep.mubr.f32.mxu0 0.0
        %1869 = vmatmul.mubr.f32.gmra.mrb[0].mxu0 %v1682
        %v1870 = vpop.f32.mrb[0].mxu0
        %v1871 = vadd.f32 0.0, %v1870
        %v1872 = vpop.f32.mrb[0].mxu0
        %1873 = vmatprep.mubr.f32.mxu0 0.0
        %1874 = vmatmul.mubr.f32.gmra.mrb[0].mxu0 %v1685
        %v1875 = vpop.f32.mrb[0].mxu0
        %v1876 = vadd.f32 0.0, %v1875
        %v1877 = vpop.f32.mrb[0].mxu0
        %1878 = vmatprep.mubr.f32.mxu0 0.0
        %1879 = vmatmul.mubr.f32.gmra.mrb[0].mxu0 %v1688
        %v1880 = vpop.f32.mrb[0].mxu0
        %v1881 = vadd.f32 0.0, %v1880
        %v1882 = vpop.f32.mrb[0].mxu0
        %1883 = vmatprep.mubr.f32.mxu0 0.0
        %1884 = vmatmul.mubr.f32.gmra.mrb[0].mxu0 %v1691
        %v1885 = vpop.f32.mrb[0].mxu0
        %v1886 = vadd.f32 0.0, %v1885
        %v1887 = vpop.f32.mrb[0].mxu0
        %1888 = vmatprep.mubr.f32.mxu0 0.0
        %1889 = vmatmul.mubr.f32.gmra.mrb[0].mxu0 %v1694
        %v1890 = vpop.f32.mrb[0].mxu0
        %v1891 = vadd.f32 0.0, %v1890
        %v1892 = vpop.f32.mrb[0].mxu0
        %1893 = vmatprep.mubr.f32.mxu0 0.0
        %1894 = vmatmul.mubr.f32.gmra.mrb[0].mxu0 %v1697
        %v1895 = vpop.f32.mrb[0].mxu0
        %v1896 = vadd.f32 0.0, %v1895
        %v1897 = vpop.f32.mrb[0].mxu0
        %1898 = vmatprep.mubr.f32.mxu0 0.0
        %1899 = vmatmul.mubr.f32.gmra.mrb[0].mxu0 %v1700
        %v1900 = vpop.f32.mrb[0].mxu0
        %v1901 = vadd.f32 0.0, %v1900
        %v1902 = vpop.f32.mrb[0].mxu0
        %1903 = vmatprep.mubr.f32.mxu0 0.0
        %1904 = vmatmul.mubr.f32.gmra.mrb[0].mxu0 %v1703
        %v1905 = vpop.f32.mrb[0].mxu0
        %v1906 = vadd.f32 0.0, %v1905
        %v1907 = vpop.f32.mrb[0].mxu0
        %1908 = vmatprep.mubr.f32.mxu0 0.0
        %1909 = vmatmul.mubr.f32.gmra.mrb[0].mxu0 %v1706
        %v1910 = vpop.f32.mrb[0].mxu0
        %v1911 = vadd.f32 0.0, %v1910
        %v1912 = vpop.f32.mrb[0].mxu0
        %1913 = vmatprep.mubr.f32.mxu0 0.0
        %1914 = vmatmul.mubr.f32.gmra.mrb[0].mxu0 %v1709
        %v1915 = vpop.f32.mrb[0].mxu0
        %v1916 = vadd.f32 0.0, %v1915
        %v1917 = vpop.f32.mrb[0].mxu0
        %1918 = vmatprep.mubr.f32.mxu0 0.0
        %1919 = vmatmul.mubr.f32.gmra.mrb[0].mxu0 %v1712
        %v1920 = vpop.f32.mrb[0].mxu0
        %v1921 = vadd.f32 0.0, %v1920
        %v1922 = vpop.f32.mrb[0].mxu0
        %1923 = vmatprep.mubr.f32.mxu0 0.0
        %1924 = vmatmul.mubr.f32.gmra.mrb[0].mxu0 %v1715
        %v1925 = vpop.f32.mrb[0].mxu0
        %v1926 = vadd.f32 0.0, %v1925
        %v1927 = vpop.f32.mrb[0].mxu0
        %1928 = vmatprep.mubr.f32.mxu0 0.0
        %1929 = vmatmul.mubr.f32.gmra.mrb[0].mxu0 %v1718
        %v1930 = vpop.f32.mrb[0].mxu0
        %v1931 = vadd.f32 0.0, %v1930
        %v1932 = vpop.f32.mrb[0].mxu0
        %1933 = vmatprep.mubr.f32.mxu0 0.0
        %1934 = vmatmul.mubr.f32.gmra.mrb[0].mxu0 %v1721
        %v1935 = vpop.f32.mrb[0].mxu0
        %v1936 = vadd.f32 0.0, %v1935
        %v1937 = vpop.f32.mrb[0].mxu0
        %1938 = vmatprep.mubr.f32.mxu0 0.0
        %1939 = vmatmul.mubr.f32.gmra.mrb[0].mxu0 %v1724
        %v1940 = vpop.f32.mrb[0].mxu0
        %v1941 = vadd.f32 0.0, %v1940
        %v1942 = vpop.f32.mrb[0].mxu0
        %1943 = vmatprep.mubr.f32.mxu0 0.0
        %1944 = vmatmul.mubr.f32.gmra.mrb[0].mxu0 %v1727
        %v1945 = vpop.f32.mrb[0].mxu0
        %v1946 = vadd.f32 0.0, %v1945
        %v1947 = vpop.f32.mrb[0].mxu0
        %1948 = vmatprep.mubr.f32.mxu0 0.0
        %1949 = vmatmul.mubr.f32.gmra.mrb[0].mxu0 %v1730
        %v1950 = vpop.f32.mrb[0].mxu0
        %v1951 = vadd.f32 0.0, %v1950
        %v1952 = vpop.f32.mrb[0].mxu0
        %1953 = vmatprep.mubr.f32.mxu0 0.0
        %1954 = vmatmul.mubr.f32.gmra.mrb[0].mxu0 %v1733
        %v1955 = vpop.f32.mrb[0].mxu0
        %v1956 = vadd.f32 0.0, %v1955
        %v1957 = vpop.f32.mrb[0].mxu0
        %1958 = vmatprep.mubr.f32.mxu0 0.0
        %1959 = vmatmul.mubr.f32.gmra.mrb[0].mxu0 %v1736
        %v1960 = vpop.f32.mrb[0].mxu0
        %v1961 = vadd.f32 0.0, %v1960
        %v1962 = vpop.f32.mrb[0].mxu0
        %1963 = vmatprep.mubr.f32.mxu0 0.0
        %1964 = vmatmul.mubr.f32.gmra.mrb[0].mxu0 %v1739
        %v1965 = vpop.f32.mrb[0].mxu0
        %v1966 = vadd.f32 0.0, %v1965
        %v1967 = vpop.f32.mrb[0].mxu0
        %1968 = vdwg.mxu0
        %v1969 = vadd.f32 %v1611, %v1811
        %v1970 = vadd.f32 %v1612, %v1816
        %v1971 = vadd.f32 %v1613, %v1821
        %v1972 = vadd.f32 %v1614, %v1826
        %v1973 = vadd.f32 %v1615, %v1831
        %v1974 = vadd.f32 %v1616, %v1836
        %v1975 = vadd.f32 %v1617, %v1841
        %v1976 = vadd.f32 %v1618, %v1846
        %v1977 = vadd.f32 %v1619, %v1851
        %v1978 = vadd.f32 %v1620, %v1856
        %v1979 = vadd.f32 %v1621, %v1861
        %v1980 = vadd.f32 %v1622, %v1866
        %v1981 = vadd.f32 %v1623, %v1871
        %v1982 = vadd.f32 %v1624, %v1876
        %v1983 = vadd.f32 %v1625, %v1881
        %v1984 = vadd.f32 %v1626, %v1886
        %v1985 = vadd.f32 %v1627, %v1891
        %v1986 = vadd.f32 %v1628, %v1896
        %v1987 = vadd.f32 %v1629, %v1901
        %v1988 = vadd.f32 %v1630, %v1906
        %v1989 = vadd.f32 %v1631, %v1911
        %v1990 = vadd.f32 %v1632, %v1916
        %v1991 = vadd.f32 %v1633, %v1921
        %v1992 = vadd.f32 %v1634, %v1926
        %v1993 = vadd.f32 %v1635, %v1931
        %v1994 = vadd.f32 %v1636, %v1936
        %v1995 = vadd.f32 %v1637, %v1941
        %v1996 = vadd.f32 %v1638, %v1946
        %v1997 = vadd.f32 %v1639, %v1951
        %v1998 = vadd.f32 %v1640, %v1956
        %v1999 = vadd.f32 %v1641, %v1961
        %v2000 = vadd.f32 %v1642, %v1966
        %2001 = vst.msk [vmem:[#allocation2] sm:$0xff] %vm182, %v1969
        %2002 = vst.msk [vmem:[#allocation2 + $0x8] sm:$0xff] %vm182, %v1970
        %2003 = vst.msk [vmem:[#allocation2 + $0x10] sm:$0xff] %vm182, %v1971
        %2004 = vst.msk [vmem:[#allocation2 + $0x18] sm:$0xff] %vm182, %v1972
        %2005 = vst.msk [vmem:[#allocation2 + $0x20] sm:$0xff] %vm182, %v1973
        %2006 = vst.msk [vmem:[#allocation2 + $0x28] sm:$0xff] %vm182, %v1974
        %2007 = vst.msk [vmem:[#allocation2 + $0x30] sm:$0xff] %vm182, %v1975
        %2008 = vst.msk [vmem:[#allocation2 + $0x38] sm:$0xff] %vm182, %v1976
        %2009 = vst.msk [vmem:[#allocation2 + $0x40] sm:$0xff] %vm182, %v1977
        %2010 = vst.msk [vmem:[#allocation2 + $0x48] sm:$0xff] %vm182, %v1978
        %2011 = vst.msk [vmem:[#allocation2 + $0x50] sm:$0xff] %vm182, %v1979
        %2012 = vst.msk [vmem:[#allocation2 + $0x58] sm:$0xff] %vm182, %v1980
        %2013 = vst.msk [vmem:[#allocation2 + $0x60] sm:$0xff] %vm182, %v1981
        %2014 = vst.msk [vmem:[#allocation2 + $0x68] sm:$0xff] %vm182, %v1982
        %2015 = vst.msk [vmem:[#allocation2 + $0x70] sm:$0xff] %vm182, %v1983
        %2016 = vst.msk [vmem:[#allocation2 + $0x78] sm:$0xff] %vm182, %v1984
        %2017 = vst.msk [vmem:[#allocation2 + $0x80] sm:$0xff] %vm182, %v1985
        %2018 = vst.msk [vmem:[#allocation2 + $0x88] sm:$0xff] %vm182, %v1986
        %2019 = vst.msk [vmem:[#allocation2 + $0x90] sm:$0xff] %vm182, %v1987
        %2020 = vst.msk [vmem:[#allocation2 + $0x98] sm:$0xff] %vm182, %v1988
        %2021 = vst.msk [vmem:[#allocation2 + $0xa0] sm:$0xff] %vm182, %v1989
        %2022 = vst.msk [vmem:[#allocation2 + $0xa8] sm:$0xff] %vm182, %v1990
        %2023 = vst.msk [vmem:[#allocation2 + $0xb0] sm:$0xff] %vm182, %v1991
        %2024 = vst.msk [vmem:[#allocation2 + $0xb8] sm:$0xff] %vm182, %v1992
        %2025 = vst.msk [vmem:[#allocation2 + $0xc0] sm:$0xff] %vm182, %v1993
        %2026 = vst.msk [vmem:[#allocation2 + $0xc8] sm:$0xff] %vm182, %v1994
        %2027 = vst.msk [vmem:[#allocation2 + $0xd0] sm:$0xff] %vm182, %v1995
        %2028 = vst.msk [vmem:[#allocation2 + $0xd8] sm:$0xff] %vm182, %v1996
        %2029 = vst.msk [vmem:[#allocation2 + $0xe0] sm:$0xff] %vm182, %v1997
        %2030 = vst.msk [vmem:[#allocation2 + $0xe8] sm:$0xff] %vm182, %v1998
        %2031 = vst.msk [vmem:[#allocation2 + $0xf0] sm:$0xff] %vm182, %v1999
        %2032 = vst.msk [vmem:[#allocation2 + $0xf8] sm:$0xff] %vm182, %v2000
        %v2033 = vld [vmem:[%s1578 + $0x1] sm:$0xff]
        %v2034 = vld [vmem:[%s1578 + $0x9] sm:$0xff]
        %v2035 = vld [vmem:[%s1578 + $0x19] sm:$0xff]
        %v2036 = vld [vmem:[%s1578 + $0x21] sm:$0xff]
        %v2037 = vld [vmem:[%s1578 + $0x31] sm:$0xff]
        %v2038 = vld [vmem:[%s1578 + $0x39] sm:$0xff]
        %v2039 = vld [vmem:[%s1578 + $0x49] sm:$0xff]
        %v2040 = vld [vmem:[%s1578 + $0x51] sm:$0xff]
        %v2041 = vld [vmem:[%s1578 + $0x61] sm:$0xff]
        %v2042 = vld [vmem:[%s1578 + $0x69] sm:$0xff]
        %v2043 = vld [vmem:[%s1578 + $0x79] sm:$0xff]
        %v2044 = vld [vmem:[%s1578 + $0x81] sm:$0xff]
        %v2045 = vld [vmem:[%s1578 + $0x91] sm:$0xff]
        %v2046 = vld [vmem:[%s1578 + $0x99] sm:$0xff]
        %v2047 = vld [vmem:[%s1578 + $0xa9] sm:$0xff]
        %v2048 = vld [vmem:[%s1578 + $0xb1] sm:$0xff]
        %v2049 = vld [vmem:[%s1578 + $0xc1] sm:$0xff]
        %v2050 = vld [vmem:[%s1578 + $0xc9] sm:$0xff]
        %v2051 = vld [vmem:[%s1578 + $0xd9] sm:$0xff]
        %v2052 = vld [vmem:[%s1578 + $0xe1] sm:$0xff]
        %v2053 = vld [vmem:[%s1578 + $0xf1] sm:$0xff]
        %v2054 = vld [vmem:[%s1578 + $0xf9] sm:$0xff]
        %v2055 = vld [vmem:[%s1578 + $0x109] sm:$0xff]
        %v2056 = vld [vmem:[%s1578 + $0x111] sm:$0xff]
        %v2057 = vld [vmem:[%s1578 + $0x121] sm:$0xff]
        %v2058 = vld [vmem:[%s1578 + $0x129] sm:$0xff]
        %v2059 = vld [vmem:[%s1578 + $0x139] sm:$0xff]
        %v2060 = vld [vmem:[%s1578 + $0x141] sm:$0xff]
        %v2061 = vld [vmem:[%s1578 + $0x151] sm:$0xff]
        %v2062 = vld [vmem:[%s1578 + $0x159] sm:$0xff]
        %v2063 = vld [vmem:[%s1578 + $0x169] sm:$0xff]
        %v2064 = vld [vmem:[%s1578 + $0x171] sm:$0xff]
        %v2065 = vld [vmem:[#allocation2] sm:$0xff]
        %v2066 = vld [vmem:[#allocation2 + $0x8] sm:$0xff]
        %v2067 = vld [vmem:[#allocation2 + $0x10] sm:$0xff]
        %v2068 = vld [vmem:[#allocation2 + $0x18] sm:$0xff]
        %v2069 = vld [vmem:[#allocation2 + $0x20] sm:$0xff]
        %v2070 = vld [vmem:[#allocation2 + $0x28] sm:$0xff]
        %v2071 = vld [vmem:[#allocation2 + $0x30] sm:$0xff]
        %v2072 = vld [vmem:[#allocation2 + $0x38] sm:$0xff]
        %v2073 = vld [vmem:[#allocation2 + $0x40] sm:$0xff]
        %v2074 = vld [vmem:[#allocation2 + $0x48] sm:$0xff]
        %v2075 = vld [vmem:[#allocation2 + $0x50] sm:$0xff]
        %v2076 = vld [vmem:[#allocation2 + $0x58] sm:$0xff]
        %v2077 = vld [vmem:[#allocation2 + $0x60] sm:$0xff]
        %v2078 = vld [vmem:[#allocation2 + $0x68] sm:$0xff]
        %v2079 = vld [vmem:[#allocation2 + $0x70] sm:$0xff]
        %v2080 = vld [vmem:[#allocation2 + $0x78] sm:$0xff]
        %v2081 = vld [vmem:[#allocation2 + $0x80] sm:$0xff]
        %v2082 = vld [vmem:[#allocation2 + $0x88] sm:$0xff]
        %v2083 = vld [vmem:[#allocation2 + $0x90] sm:$0xff]
        %v2084 = vld [vmem:[#allocation2 + $0x98] sm:$0xff]
        %v2085 = vld [vmem:[#allocation2 + $0xa0] sm:$0xff]
        %v2086 = vld [vmem:[#allocation2 + $0xa8] sm:$0xff]
        %v2087 = vld [vmem:[#allocation2 + $0xb0] sm:$0xff]
        %v2088 = vld [vmem:[#allocation2 + $0xb8] sm:$0xff]
        %v2089 = vld [vmem:[#allocation2 + $0xc0] sm:$0xff]
        %v2090 = vld [vmem:[#allocation2 + $0xc8] sm:$0xff]
        %v2091 = vld [vmem:[#allocation2 + $0xd0] sm:$0xff]
        %v2092 = vld [vmem:[#allocation2 + $0xd8] sm:$0xff]
        %v2093 = vld [vmem:[#allocation2 + $0xe0] sm:$0xff]
        %v2094 = vld [vmem:[#allocation2 + $0xe8] sm:$0xff]
        %v2095 = vld [vmem:[#allocation2 + $0xf0] sm:$0xff]
        %v2096 = vld [vmem:[#allocation2 + $0xf8] sm:$0xff]
        %s2097 = scalar_lea.vmem %s1, 16
        %v2098 = vld [vmem:[%s2097] sm:$0xf]
        %v2100 = vsel %vm280, %v2033, 0
        %v2103 = vsel %vm280, %v2034, 0
        %v2106 = vsel %vm280, %v2035, 0
        %v2109 = vsel %vm280, %v2036, 0
        %v2112 = vsel %vm280, %v2037, 0
        %v2115 = vsel %vm280, %v2038, 0
        %v2118 = vsel %vm280, %v2039, 0
        %v2121 = vsel %vm280, %v2040, 0
        %v2124 = vsel %vm280, %v2041, 0
        %v2127 = vsel %vm280, %v2042, 0
        %v2130 = vsel %vm280, %v2043, 0
        %v2133 = vsel %vm280, %v2044, 0
        %v2136 = vsel %vm280, %v2045, 0
        %v2139 = vsel %vm280, %v2046, 0
        %v2142 = vsel %vm280, %v2047, 0
        %v2145 = vsel %vm280, %v2048, 0
        %v2148 = vsel %vm280, %v2049, 0
        %v2151 = vsel %vm280, %v2050, 0
        %v2154 = vsel %vm280, %v2051, 0
        %v2157 = vsel %vm280, %v2052, 0
        %v2160 = vsel %vm280, %v2053, 0
        %v2163 = vsel %vm280, %v2054, 0
        %v2166 = vsel %vm280, %v2055, 0
        %v2169 = vsel %vm280, %v2056, 0
        %v2172 = vsel %vm280, %v2057, 0
        %v2175 = vsel %vm280, %v2058, 0
        %v2178 = vsel %vm280, %v2059, 0
        %v2181 = vsel %vm280, %v2060, 0
        %v2184 = vsel %vm280, %v2061, 0
        %v2187 = vsel %vm280, %v2062, 0
        %v2190 = vsel %vm280, %v2063, 0
        %v2193 = vsel %vm280, %v2064, 0
        %v2196 = vsel %vm377, %v2098, 0
        %2198 = vmatprep.subr.mxu0 0.0
        %2199 = vmatpush1.msra.mxu0 %v2196
        %2200 = vmatprep.subr.mxu0 0.0
        %2201 = vmatpush1.msra.mxu0 0.0
        %2202 = vmatprep.subr.mxu0 0.0
        %2203 = vmatpush1.msra.mxu0 0.0
        %2204 = vmatprep.subr.mxu0 0.0
        %2205 = vmatpush1.msra.mxu0 0.0
        %2206 = vmatprep.subr.mxu0 0.0
        %2207 = vmatpush1.msra.mxu0 0.0
        %2208 = vmatprep.subr.mxu0 0.0
        %2209 = vmatpush1.msra.mxu0 0.0
        %2210 = vmatprep.subr.mxu0 0.0
        %2211 = vmatpush1.msra.mxu0 0.0
        %2212 = vmatprep.subr.mxu0 0.0
        %2213 = vmatpush1.msra.mxu0 0.0
        %2214 = vmatprep.subr.mxu0 0.0
        %2215 = vmatpush1.msra.mxu0 0.0
        %2216 = vmatprep.subr.mxu0 0.0
        %2217 = vmatpush1.msra.mxu0 0.0
        %2218 = vmatprep.subr.mxu0 0.0
        %2219 = vmatpush1.msra.mxu0 0.0
        %2220 = vmatprep.subr.mxu0 0.0
        %2221 = vmatpush1.msra.mxu0 0.0
        %2222 = vmatprep.subr.mxu0 0.0
        %2223 = vmatpush1.msra.mxu0 0.0
        %2224 = vmatprep.subr.mxu0 0.0
        %2225 = vmatpush1.msra.mxu0 0.0
        %2226 = vmatprep.subr.mxu0 0.0
        %2227 = vmatpush1.msra.mxu0 0.0
        %2228 = vmatprep.subr.mxu0 0.0
        %2229 = vmatpush1.msra.mxu0 0.0
        %2230 = vmatprep.subr.mxu0 0.0
        %2231 = vmatpush1.msra.mxu0 0.0
        %2232 = vmatprep.subr.mxu0 0.0
        %2233 = vmatpush1.msra.mxu0 0.0
        %2234 = vmatprep.subr.mxu0 0.0
        %2235 = vmatpush1.msra.mxu0 0.0
        %2236 = vmatprep.subr.mxu0 0.0
        %2237 = vmatpush1.msra.mxu0 0.0
        %2238 = vmatprep.subr.mxu0 0.0
        %2239 = vmatpush1.msra.mxu0 0.0
        %2240 = vmatprep.subr.mxu0 0.0
        %2241 = vmatpush1.msra.mxu0 0.0
        %2242 = vmatprep.subr.mxu0 0.0
        %2243 = vmatpush1.msra.mxu0 0.0
        %2244 = vmatprep.subr.mxu0 0.0
        %2245 = vmatpush1.msra.mxu0 0.0
        %2246 = vmatprep.subr.mxu0 0.0
        %2247 = vmatpush1.msra.mxu0 0.0
        %2248 = vmatprep.subr.mxu0 0.0
        %2249 = vmatpush1.msra.mxu0 0.0
        %2250 = vmatprep.subr.mxu0 0.0
        %2251 = vmatpush1.msra.mxu0 0.0
        %2252 = vmatprep.subr.mxu0 0.0
        %2253 = vmatpush1.msra.mxu0 0.0
        %2254 = vmatprep.subr.mxu0 0.0
        %2255 = vmatpush1.msra.mxu0 0.0
        %2256 = vmatprep.subr.mxu0 0.0
        %2257 = vmatpush1.msra.mxu0 0.0
        %2258 = vmatprep.subr.mxu0 0.0
        %2259 = vmatpush1.msra.mxu0 0.0
        %2260 = vmatprep.subr.mxu0 0.0
        %2261 = vmatpush1.msra.mxu0 0.0
        %2262 = vmatprep.mubr.f32.mxu0 0.0
        %2263 = vmatmul.mubr.f32.gmra.mrb[0].mxu0 %v2100
        %v2264 = vpop.f32.mrb[0].mxu0
        %v2265 = vadd.f32 0.0, %v2264
        %v2266 = vpop.f32.mrb[0].mxu0
        %2267 = vmatprep.mubr.f32.mxu0 0.0
        %2268 = vmatmul.mubr.f32.gmra.mrb[0].mxu0 %v2103
        %v2269 = vpop.f32.mrb[0].mxu0
        %v2270 = vadd.f32 0.0, %v2269
        %v2271 = vpop.f32.mrb[0].mxu0
        %2272 = vmatprep.mubr.f32.mxu0 0.0
        %2273 = vmatmul.mubr.f32.gmra.mrb[0].mxu0 %v2106
        %v2274 = vpop.f32.mrb[0].mxu0
        %v2275 = vadd.f32 0.0, %v2274
        %v2276 = vpop.f32.mrb[0].mxu0
        %2277 = vmatprep.mubr.f32.mxu0 0.0
        %2278 = vmatmul.mubr.f32.gmra.mrb[0].mxu0 %v2109
        %v2279 = vpop.f32.mrb[0].mxu0
        %v2280 = vadd.f32 0.0, %v2279
        %v2281 = vpop.f32.mrb[0].mxu0
        %2282 = vmatprep.mubr.f32.mxu0 0.0
        %2283 = vmatmul.mubr.f32.gmra.mrb[0].mxu0 %v2112
        %v2284 = vpop.f32.mrb[0].mxu0
        %v2285 = vadd.f32 0.0, %v2284
        %v2286 = vpop.f32.mrb[0].mxu0
        %2287 = vmatprep.mubr.f32.mxu0 0.0
        %2288 = vmatmul.mubr.f32.gmra.mrb[0].mxu0 %v2115
        %v2289 = vpop.f32.mrb[0].mxu0
        %v2290 = vadd.f32 0.0, %v2289
        %v2291 = vpop.f32.mrb[0].mxu0
        %2292 = vmatprep.mubr.f32.mxu0 0.0
        %2293 = vmatmul.mubr.f32.gmra.mrb[0].mxu0 %v2118
        %v2294 = vpop.f32.mrb[0].mxu0
        %v2295 = vadd.f32 0.0, %v2294
        %v2296 = vpop.f32.mrb[0].mxu0
        %2297 = vmatprep.mubr.f32.mxu0 0.0
        %2298 = vmatmul.mubr.f32.gmra.mrb[0].mxu0 %v2121
        %v2299 = vpop.f32.mrb[0].mxu0
        %v2300 = vadd.f32 0.0, %v2299
        %v2301 = vpop.f32.mrb[0].mxu0
        %2302 = vmatprep.mubr.f32.mxu0 0.0
        %2303 = vmatmul.mubr.f32.gmra.mrb[0].mxu0 %v2124
        %v2304 = vpop.f32.mrb[0].mxu0
        %v2305 = vadd.f32 0.0, %v2304
        %v2306 = vpop.f32.mrb[0].mxu0
        %2307 = vmatprep.mubr.f32.mxu0 0.0
        %2308 = vmatmul.mubr.f32.gmra.mrb[0].mxu0 %v2127
        %v2309 = vpop.f32.mrb[0].mxu0
        %v2310 = vadd.f32 0.0, %v2309
        %v2311 = vpop.f32.mrb[0].mxu0
        %2312 = vmatprep.mubr.f32.mxu0 0.0
        %2313 = vmatmul.mubr.f32.gmra.mrb[0].mxu0 %v2130
        %v2314 = vpop.f32.mrb[0].mxu0
        %v2315 = vadd.f32 0.0, %v2314
        %v2316 = vpop.f32.mrb[0].mxu0
        %2317 = vmatprep.mubr.f32.mxu0 0.0
        %2318 = vmatmul.mubr.f32.gmra.mrb[0].mxu0 %v2133
        %v2319 = vpop.f32.mrb[0].mxu0
        %v2320 = vadd.f32 0.0, %v2319
        %v2321 = vpop.f32.mrb[0].mxu0
        %2322 = vmatprep.mubr.f32.mxu0 0.0
        %2323 = vmatmul.mubr.f32.gmra.mrb[0].mxu0 %v2136
        %v2324 = vpop.f32.mrb[0].mxu0
        %v2325 = vadd.f32 0.0, %v2324
        %v2326 = vpop.f32.mrb[0].mxu0
        %2327 = vmatprep.mubr.f32.mxu0 0.0
        %2328 = vmatmul.mubr.f32.gmra.mrb[0].mxu0 %v2139
        %v2329 = vpop.f32.mrb[0].mxu0
        %v2330 = vadd.f32 0.0, %v2329
        %v2331 = vpop.f32.mrb[0].mxu0
        %2332 = vmatprep.mubr.f32.mxu0 0.0
        %2333 = vmatmul.mubr.f32.gmra.mrb[0].mxu0 %v2142
        %v2334 = vpop.f32.mrb[0].mxu0
        %v2335 = vadd.f32 0.0, %v2334
        %v2336 = vpop.f32.mrb[0].mxu0
        %2337 = vmatprep.mubr.f32.mxu0 0.0
        %2338 = vmatmul.mubr.f32.gmra.mrb[0].mxu0 %v2145
        %v2339 = vpop.f32.mrb[0].mxu0
        %v2340 = vadd.f32 0.0, %v2339
        %v2341 = vpop.f32.mrb[0].mxu0
        %2342 = vmatprep.mubr.f32.mxu0 0.0
        %2343 = vmatmul.mubr.f32.gmra.mrb[0].mxu0 %v2148
        %v2344 = vpop.f32.mrb[0].mxu0
        %v2345 = vadd.f32 0.0, %v2344
        %v2346 = vpop.f32.mrb[0].mxu0
        %2347 = vmatprep.mubr.f32.mxu0 0.0
        %2348 = vmatmul.mubr.f32.gmra.mrb[0].mxu0 %v2151
        %v2349 = vpop.f32.mrb[0].mxu0
        %v2350 = vadd.f32 0.0, %v2349
        %v2351 = vpop.f32.mrb[0].mxu0
        %2352 = vmatprep.mubr.f32.mxu0 0.0
        %2353 = vmatmul.mubr.f32.gmra.mrb[0].mxu0 %v2154
        %v2354 = vpop.f32.mrb[0].mxu0
        %v2355 = vadd.f32 0.0, %v2354
        %v2356 = vpop.f32.mrb[0].mxu0
        %2357 = vmatprep.mubr.f32.mxu0 0.0
        %2358 = vmatmul.mubr.f32.gmra.mrb[0].mxu0 %v2157
        %v2359 = vpop.f32.mrb[0].mxu0
        %v2360 = vadd.f32 0.0, %v2359
        %v2361 = vpop.f32.mrb[0].mxu0
        %2362 = vmatprep.mubr.f32.mxu0 0.0
        %2363 = vmatmul.mubr.f32.gmra.mrb[0].mxu0 %v2160
        %v2364 = vpop.f32.mrb[0].mxu0
        %v2365 = vadd.f32 0.0, %v2364
        %v2366 = vpop.f32.mrb[0].mxu0
        %2367 = vmatprep.mubr.f32.mxu0 0.0
        %2368 = vmatmul.mubr.f32.gmra.mrb[0].mxu0 %v2163
        %v2369 = vpop.f32.mrb[0].mxu0
        %v2370 = vadd.f32 0.0, %v2369
        %v2371 = vpop.f32.mrb[0].mxu0
        %2372 = vmatprep.mubr.f32.mxu0 0.0
        %2373 = vmatmul.mubr.f32.gmra.mrb[0].mxu0 %v2166
        %v2374 = vpop.f32.mrb[0].mxu0
        %v2375 = vadd.f32 0.0, %v2374
        %v2376 = vpop.f32.mrb[0].mxu0
        %2377 = vmatprep.mubr.f32.mxu0 0.0
        %2378 = vmatmul.mubr.f32.gmra.mrb[0].mxu0 %v2169
        %v2379 = vpop.f32.mrb[0].mxu0
        %v2380 = vadd.f32 0.0, %v2379
        %v2381 = vpop.f32.mrb[0].mxu0
        %2382 = vmatprep.mubr.f32.mxu0 0.0
        %2383 = vmatmul.mubr.f32.gmra.mrb[0].mxu0 %v2172
        %v2384 = vpop.f32.mrb[0].mxu0
        %v2385 = vadd.f32 0.0, %v2384
        %v2386 = vpop.f32.mrb[0].mxu0
        %2387 = vmatprep.mubr.f32.mxu0 0.0
        %2388 = vmatmul.mubr.f32.gmra.mrb[0].mxu0 %v2175
        %v2389 = vpop.f32.mrb[0].mxu0
        %v2390 = vadd.f32 0.0, %v2389
        %v2391 = vpop.f32.mrb[0].mxu0
        %2392 = vmatprep.mubr.f32.mxu0 0.0
        %2393 = vmatmul.mubr.f32.gmra.mrb[0].mxu0 %v2178
        %v2394 = vpop.f32.mrb[0].mxu0
        %v2395 = vadd.f32 0.0, %v2394
        %v2396 = vpop.f32.mrb[0].mxu0
        %2397 = vmatprep.mubr.f32.mxu0 0.0
        %2398 = vmatmul.mubr.f32.gmra.mrb[0].mxu0 %v2181
        %v2399 = vpop.f32.mrb[0].mxu0
        %v2400 = vadd.f32 0.0, %v2399
        %v2401 = vpop.f32.mrb[0].mxu0
        %2402 = vmatprep.mubr.f32.mxu0 0.0
        %2403 = vmatmul.mubr.f32.gmra.mrb[0].mxu0 %v2184
        %v2404 = vpop.f32.mrb[0].mxu0
        %v2405 = vadd.f32 0.0, %v2404
        %v2406 = vpop.f32.mrb[0].mxu0
        %2407 = vmatprep.mubr.f32.mxu0 0.0
        %2408 = vmatmul.mubr.f32.gmra.mrb[0].mxu0 %v2187
        %v2409 = vpop.f32.mrb[0].mxu0
        %v2410 = vadd.f32 0.0, %v2409
        %v2411 = vpop.f32.mrb[0].mxu0
        %2412 = vmatprep.mubr.f32.mxu0 0.0
        %2413 = vmatmul.mubr.f32.gmra.mrb[0].mxu0 %v2190
        %v2414 = vpop.f32.mrb[0].mxu0
        %v2415 = vadd.f32 0.0, %v2414
        %v2416 = vpop.f32.mrb[0].mxu0
        %2417 = vmatprep.mubr.f32.mxu0 0.0
        %2418 = vmatmul.mubr.f32.gmra.mrb[0].mxu0 %v2193
        %v2419 = vpop.f32.mrb[0].mxu0
        %v2420 = vadd.f32 0.0, %v2419
        %v2421 = vpop.f32.mrb[0].mxu0
        %2422 = vdwg.mxu0
        %v2423 = vadd.f32 %v2065, %v2265
        %v2424 = vadd.f32 %v2066, %v2270
        %v2425 = vadd.f32 %v2067, %v2275
        %v2426 = vadd.f32 %v2068, %v2280
        %v2427 = vadd.f32 %v2069, %v2285
        %v2428 = vadd.f32 %v2070, %v2290
        %v2429 = vadd.f32 %v2071, %v2295
        %v2430 = vadd.f32 %v2072, %v2300
        %v2431 = vadd.f32 %v2073, %v2305
        %v2432 = vadd.f32 %v2074, %v2310
        %v2433 = vadd.f32 %v2075, %v2315
        %v2434 = vadd.f32 %v2076, %v2320
        %v2435 = vadd.f32 %v2077, %v2325
        %v2436 = vadd.f32 %v2078, %v2330
        %v2437 = vadd.f32 %v2079, %v2335
        %v2438 = vadd.f32 %v2080, %v2340
        %v2439 = vadd.f32 %v2081, %v2345
        %v2440 = vadd.f32 %v2082, %v2350
        %v2441 = vadd.f32 %v2083, %v2355
        %v2442 = vadd.f32 %v2084, %v2360
        %v2443 = vadd.f32 %v2085, %v2365
        %v2444 = vadd.f32 %v2086, %v2370
        %v2445 = vadd.f32 %v2087, %v2375
        %v2446 = vadd.f32 %v2088, %v2380
        %v2447 = vadd.f32 %v2089, %v2385
        %v2448 = vadd.f32 %v2090, %v2390
        %v2449 = vadd.f32 %v2091, %v2395
        %v2450 = vadd.f32 %v2092, %v2400
        %v2451 = vadd.f32 %v2093, %v2405
        %v2452 = vadd.f32 %v2094, %v2410
        %v2453 = vadd.f32 %v2095, %v2415
        %v2454 = vadd.f32 %v2096, %v2420
        %2455 = vst.msk [vmem:[#allocation2] sm:$0xff] %vm182, %v2423
        %2456 = vst.msk [vmem:[#allocation2 + $0x8] sm:$0xff] %vm182, %v2424
        %2457 = vst.msk [vmem:[#allocation2 + $0x10] sm:$0xff] %vm182, %v2425
        %2458 = vst.msk [vmem:[#allocation2 + $0x18] sm:$0xff] %vm182, %v2426
        %2459 = vst.msk [vmem:[#allocation2 + $0x20] sm:$0xff] %vm182, %v2427
        %2460 = vst.msk [vmem:[#allocation2 + $0x28] sm:$0xff] %vm182, %v2428
        %2461 = vst.msk [vmem:[#allocation2 + $0x30] sm:$0xff] %vm182, %v2429
        %2462 = vst.msk [vmem:[#allocation2 + $0x38] sm:$0xff] %vm182, %v2430
        %2463 = vst.msk [vmem:[#allocation2 + $0x40] sm:$0xff] %vm182, %v2431
        %2464 = vst.msk [vmem:[#allocation2 + $0x48] sm:$0xff] %vm182, %v2432
        %2465 = vst.msk [vmem:[#allocation2 + $0x50] sm:$0xff] %vm182, %v2433
        %2466 = vst.msk [vmem:[#allocation2 + $0x58] sm:$0xff] %vm182, %v2434
        %2467 = vst.msk [vmem:[#allocation2 + $0x60] sm:$0xff] %vm182, %v2435
        %2468 = vst.msk [vmem:[#allocation2 + $0x68] sm:$0xff] %vm182, %v2436
        %2469 = vst.msk [vmem:[#allocation2 + $0x70] sm:$0xff] %vm182, %v2437
        %2470 = vst.msk [vmem:[#allocation2 + $0x78] sm:$0xff] %vm182, %v2438
        %2471 = vst.msk [vmem:[#allocation2 + $0x80] sm:$0xff] %vm182, %v2439
        %2472 = vst.msk [vmem:[#allocation2 + $0x88] sm:$0xff] %vm182, %v2440
        %2473 = vst.msk [vmem:[#allocation2 + $0x90] sm:$0xff] %vm182, %v2441
        %2474 = vst.msk [vmem:[#allocation2 + $0x98] sm:$0xff] %vm182, %v2442
        %2475 = vst.msk [vmem:[#allocation2 + $0xa0] sm:$0xff] %vm182, %v2443
        %2476 = vst.msk [vmem:[#allocation2 + $0xa8] sm:$0xff] %vm182, %v2444
        %2477 = vst.msk [vmem:[#allocation2 + $0xb0] sm:$0xff] %vm182, %v2445
        %2478 = vst.msk [vmem:[#allocation2 + $0xb8] sm:$0xff] %vm182, %v2446
        %2479 = vst.msk [vmem:[#allocation2 + $0xc0] sm:$0xff] %vm182, %v2447
        %2480 = vst.msk [vmem:[#allocation2 + $0xc8] sm:$0xff] %vm182, %v2448
        %2481 = vst.msk [vmem:[#allocation2 + $0xd0] sm:$0xff] %vm182, %v2449
        %2482 = vst.msk [vmem:[#allocation2 + $0xd8] sm:$0xff] %vm182, %v2450
        %2483 = vst.msk [vmem:[#allocation2 + $0xe0] sm:$0xff] %vm182, %v2451
        %2484 = vst.msk [vmem:[#allocation2 + $0xe8] sm:$0xff] %vm182, %v2452
        %2485 = vst.msk [vmem:[#allocation2 + $0xf0] sm:$0xff] %vm182, %v2453
        %2486 = vst.msk [vmem:[#allocation2 + $0xf8] sm:$0xff] %vm182, %v2454
        %v2487 = vld [vmem:[%s1578 + $0x2] sm:$0xff]
        %v2488 = vld [vmem:[%s1578 + $0xa] sm:$0xff]
        %v2489 = vld [vmem:[%s1578 + $0x1a] sm:$0xff]
        %v2490 = vld [vmem:[%s1578 + $0x22] sm:$0xff]
        %v2491 = vld [vmem:[%s1578 + $0x32] sm:$0xff]
        %v2492 = vld [vmem:[%s1578 + $0x3a] sm:$0xff]
        %v2493 = vld [vmem:[%s1578 + $0x4a] sm:$0xff]
        %v2494 = vld [vmem:[%s1578 + $0x52] sm:$0xff]
        %v2495 = vld [vmem:[%s1578 + $0x62] sm:$0xff]
        %v2496 = vld [vmem:[%s1578 + $0x6a] sm:$0xff]
        %v2497 = vld [vmem:[%s1578 + $0x7a] sm:$0xff]
        %v2498 = vld [vmem:[%s1578 + $0x82] sm:$0xff]
        %v2499 = vld [vmem:[%s1578 + $0x92] sm:$0xff]
        %v2500 = vld [vmem:[%s1578 + $0x9a] sm:$0xff]
        %v2501 = vld [vmem:[%s1578 + $0xaa] sm:$0xff]
        %v2502 = vld [vmem:[%s1578 + $0xb2] sm:$0xff]
        %v2503 = vld [vmem:[%s1578 + $0xc2] sm:$0xff]
        %v2504 = vld [vmem:[%s1578 + $0xca] sm:$0xff]
        %v2505 = vld [vmem:[%s1578 + $0xda] sm:$0xff]
        %v2506 = vld [vmem:[%s1578 + $0xe2] sm:$0xff]
        %v2507 = vld [vmem:[%s1578 + $0xf2] sm:$0xff]
        %v2508 = vld [vmem:[%s1578 + $0xfa] sm:$0xff]
        %v2509 = vld [vmem:[%s1578 + $0x10a] sm:$0xff]
        %v2510 = vld [vmem:[%s1578 + $0x112] sm:$0xff]
        %v2511 = vld [vmem:[%s1578 + $0x122] sm:$0xff]
        %v2512 = vld [vmem:[%s1578 + $0x12a] sm:$0xff]
        %v2513 = vld [vmem:[%s1578 + $0x13a] sm:$0xff]
        %v2514 = vld [vmem:[%s1578 + $0x142] sm:$0xff]
        %v2515 = vld [vmem:[%s1578 + $0x152] sm:$0xff]
        %v2516 = vld [vmem:[%s1578 + $0x15a] sm:$0xff]
        %v2517 = vld [vmem:[%s1578 + $0x16a] sm:$0xff]
        %v2518 = vld [vmem:[%s1578 + $0x172] sm:$0xff]
        %v2519 = vld [vmem:[#allocation2] sm:$0xff]
        %v2520 = vld [vmem:[#allocation2 + $0x8] sm:$0xff]
        %v2521 = vld [vmem:[#allocation2 + $0x10] sm:$0xff]
        %v2522 = vld [vmem:[#allocation2 + $0x18] sm:$0xff]
        %v2523 = vld [vmem:[#allocation2 + $0x20] sm:$0xff]
        %v2524 = vld [vmem:[#allocation2 + $0x28] sm:$0xff]
        %v2525 = vld [vmem:[#allocation2 + $0x30] sm:$0xff]
        %v2526 = vld [vmem:[#allocation2 + $0x38] sm:$0xff]
        %v2527 = vld [vmem:[#allocation2 + $0x40] sm:$0xff]
        %v2528 = vld [vmem:[#allocation2 + $0x48] sm:$0xff]
        %v2529 = vld [vmem:[#allocation2 + $0x50] sm:$0xff]
        %v2530 = vld [vmem:[#allocation2 + $0x58] sm:$0xff]
        %v2531 = vld [vmem:[#allocation2 + $0x60] sm:$0xff]
        %v2532 = vld [vmem:[#allocation2 + $0x68] sm:$0xff]
        %v2533 = vld [vmem:[#allocation2 + $0x70] sm:$0xff]
        %v2534 = vld [vmem:[#allocation2 + $0x78] sm:$0xff]
        %v2535 = vld [vmem:[#allocation2 + $0x80] sm:$0xff]
        %v2536 = vld [vmem:[#allocation2 + $0x88] sm:$0xff]
        %v2537 = vld [vmem:[#allocation2 + $0x90] sm:$0xff]
        %v2538 = vld [vmem:[#allocation2 + $0x98] sm:$0xff]
        %v2539 = vld [vmem:[#allocation2 + $0xa0] sm:$0xff]
        %v2540 = vld [vmem:[#allocation2 + $0xa8] sm:$0xff]
        %v2541 = vld [vmem:[#allocation2 + $0xb0] sm:$0xff]
        %v2542 = vld [vmem:[#allocation2 + $0xb8] sm:$0xff]
        %v2543 = vld [vmem:[#allocation2 + $0xc0] sm:$0xff]
        %v2544 = vld [vmem:[#allocation2 + $0xc8] sm:$0xff]
        %v2545 = vld [vmem:[#allocation2 + $0xd0] sm:$0xff]
        %v2546 = vld [vmem:[#allocation2 + $0xd8] sm:$0xff]
        %v2547 = vld [vmem:[#allocation2 + $0xe0] sm:$0xff]
        %v2548 = vld [vmem:[#allocation2 + $0xe8] sm:$0xff]
        %v2549 = vld [vmem:[#allocation2 + $0xf0] sm:$0xff]
        %v2550 = vld [vmem:[#allocation2 + $0xf8] sm:$0xff]
        %s2551 = scalar_lea.vmem %s1, 20
        %v2552 = vld [vmem:[%s2551] sm:$0xf]
        %v2554 = vsel %vm280, %v2487, 0
        %v2557 = vsel %vm280, %v2488, 0
        %v2560 = vsel %vm280, %v2489, 0
        %v2563 = vsel %vm280, %v2490, 0
        %v2566 = vsel %vm280, %v2491, 0
        %v2569 = vsel %vm280, %v2492, 0
        %v2572 = vsel %vm280, %v2493, 0
        %v2575 = vsel %vm280, %v2494, 0
        %v2578 = vsel %vm280, %v2495, 0
        %v2581 = vsel %vm280, %v2496, 0
        %v2584 = vsel %vm280, %v2497, 0
        %v2587 = vsel %vm280, %v2498, 0
        %v2590 = vsel %vm280, %v2499, 0
        %v2593 = vsel %vm280, %v2500, 0
        %v2596 = vsel %vm280, %v2501, 0
        %v2599 = vsel %vm280, %v2502, 0
        %v2602 = vsel %vm280, %v2503, 0
        %v2605 = vsel %vm280, %v2504, 0
        %v2608 = vsel %vm280, %v2505, 0
        %v2611 = vsel %vm280, %v2506, 0
        %v2614 = vsel %vm280, %v2507, 0
        %v2617 = vsel %vm280, %v2508, 0
        %v2620 = vsel %vm280, %v2509, 0
        %v2623 = vsel %vm280, %v2510, 0
        %v2626 = vsel %vm280, %v2511, 0
        %v2629 = vsel %vm280, %v2512, 0
        %v2632 = vsel %vm280, %v2513, 0
        %v2635 = vsel %vm280, %v2514, 0
        %v2638 = vsel %vm280, %v2515, 0
        %v2641 = vsel %vm280, %v2516, 0
        %v2644 = vsel %vm280, %v2517, 0
        %v2647 = vsel %vm280, %v2518, 0
        %v2650 = vsel %vm377, %v2552, 0
        %2652 = vmatprep.subr.mxu0 0.0
        %2653 = vmatpush1.msra.mxu0 %v2650
        %2654 = vmatprep.subr.mxu0 0.0
        %2655 = vmatpush1.msra.mxu0 0.0
        %2656 = vmatprep.subr.mxu0 0.0
        %2657 = vmatpush1.msra.mxu0 0.0
        %2658 = vmatprep.subr.mxu0 0.0
        %2659 = vmatpush1.msra.mxu0 0.0
        %2660 = vmatprep.subr.mxu0 0.0
        %2661 = vmatpush1.msra.mxu0 0.0
        %2662 = vmatprep.subr.mxu0 0.0
        %2663 = vmatpush1.msra.mxu0 0.0
        %2664 = vmatprep.subr.mxu0 0.0
        %2665 = vmatpush1.msra.mxu0 0.0
        %2666 = vmatprep.subr.mxu0 0.0
        %2667 = vmatpush1.msra.mxu0 0.0
        %2668 = vmatprep.subr.mxu0 0.0
        %2669 = vmatpush1.msra.mxu0 0.0
        %2670 = vmatprep.subr.mxu0 0.0
        %2671 = vmatpush1.msra.mxu0 0.0
        %2672 = vmatprep.subr.mxu0 0.0
        %2673 = vmatpush1.msra.mxu0 0.0
        %2674 = vmatprep.subr.mxu0 0.0
        %2675 = vmatpush1.msra.mxu0 0.0
        %2676 = vmatprep.subr.mxu0 0.0
        %2677 = vmatpush1.msra.mxu0 0.0
        %2678 = vmatprep.subr.mxu0 0.0
        %2679 = vmatpush1.msra.mxu0 0.0
        %2680 = vmatprep.subr.mxu0 0.0
        %2681 = vmatpush1.msra.mxu0 0.0
        %2682 = vmatprep.subr.mxu0 0.0
        %2683 = vmatpush1.msra.mxu0 0.0
        %2684 = vmatprep.subr.mxu0 0.0
        %2685 = vmatpush1.msra.mxu0 0.0
        %2686 = vmatprep.subr.mxu0 0.0
        %2687 = vmatpush1.msra.mxu0 0.0
        %2688 = vmatprep.subr.mxu0 0.0
        %2689 = vmatpush1.msra.mxu0 0.0
        %2690 = vmatprep.subr.mxu0 0.0
        %2691 = vmatpush1.msra.mxu0 0.0
        %2692 = vmatprep.subr.mxu0 0.0
        %2693 = vmatpush1.msra.mxu0 0.0
        %2694 = vmatprep.subr.mxu0 0.0
        %2695 = vmatpush1.msra.mxu0 0.0
        %2696 = vmatprep.subr.mxu0 0.0
        %2697 = vmatpush1.msra.mxu0 0.0
        %2698 = vmatprep.subr.mxu0 0.0
        %2699 = vmatpush1.msra.mxu0 0.0
        %2700 = vmatprep.subr.mxu0 0.0
        %2701 = vmatpush1.msra.mxu0 0.0
        %2702 = vmatprep.subr.mxu0 0.0
        %2703 = vmatpush1.msra.mxu0 0.0
        %2704 = vmatprep.subr.mxu0 0.0
        %2705 = vmatpush1.msra.mxu0 0.0
        %2706 = vmatprep.subr.mxu0 0.0
        %2707 = vmatpush1.msra.mxu0 0.0
        %2708 = vmatprep.subr.mxu0 0.0
        %2709 = vmatpush1.msra.mxu0 0.0
        %2710 = vmatprep.subr.mxu0 0.0
        %2711 = vmatpush1.msra.mxu0 0.0
        %2712 = vmatprep.subr.mxu0 0.0
        %2713 = vmatpush1.msra.mxu0 0.0
        %2714 = vmatprep.subr.mxu0 0.0
        %2715 = vmatpush1.msra.mxu0 0.0
        %2716 = vmatprep.mubr.f32.mxu0 0.0
        %2717 = vmatmul.mubr.f32.gmra.mrb[0].mxu0 %v2554
        %v2718 = vpop.f32.mrb[0].mxu0
        %v2719 = vadd.f32 0.0, %v2718
        %v2720 = vpop.f32.mrb[0].mxu0
        %2721 = vmatprep.mubr.f32.mxu0 0.0
        %2722 = vmatmul.mubr.f32.gmra.mrb[0].mxu0 %v2557
        %v2723 = vpop.f32.mrb[0].mxu0
        %v2724 = vadd.f32 0.0, %v2723
        %v2725 = vpop.f32.mrb[0].mxu0
        %2726 = vmatprep.mubr.f32.mxu0 0.0
        %2727 = vmatmul.mubr.f32.gmra.mrb[0].mxu0 %v2560
        %v2728 = vpop.f32.mrb[0].mxu0
        %v2729 = vadd.f32 0.0, %v2728
        %v2730 = vpop.f32.mrb[0].mxu0
        %2731 = vmatprep.mubr.f32.mxu0 0.0
        %2732 = vmatmul.mubr.f32.gmra.mrb[0].mxu0 %v2563
        %v2733 = vpop.f32.mrb[0].mxu0
        %v2734 = vadd.f32 0.0, %v2733
        %v2735 = vpop.f32.mrb[0].mxu0
        %2736 = vmatprep.mubr.f32.mxu0 0.0
        %2737 = vmatmul.mubr.f32.gmra.mrb[0].mxu0 %v2566
        %v2738 = vpop.f32.mrb[0].mxu0
        %v2739 = vadd.f32 0.0, %v2738
        %v2740 = vpop.f32.mrb[0].mxu0
        %2741 = vmatprep.mubr.f32.mxu0 0.0
        %2742 = vmatmul.mubr.f32.gmra.mrb[0].mxu0 %v2569
        %v2743 = vpop.f32.mrb[0].mxu0
        %v2744 = vadd.f32 0.0, %v2743
        %v2745 = vpop.f32.mrb[0].mxu0
        %2746 = vmatprep.mubr.f32.mxu0 0.0
        %2747 = vmatmul.mubr.f32.gmra.mrb[0].mxu0 %v2572
        %v2748 = vpop.f32.mrb[0].mxu0
        %v2749 = vadd.f32 0.0, %v2748
        %v2750 = vpop.f32.mrb[0].mxu0
        %2751 = vmatprep.mubr.f32.mxu0 0.0
        %2752 = vmatmul.mubr.f32.gmra.mrb[0].mxu0 %v2575
        %v2753 = vpop.f32.mrb[0].mxu0
        %v2754 = vadd.f32 0.0, %v2753
        %v2755 = vpop.f32.mrb[0].mxu0
        %2756 = vmatprep.mubr.f32.mxu0 0.0
        %2757 = vmatmul.mubr.f32.gmra.mrb[0].mxu0 %v2578
        %v2758 = vpop.f32.mrb[0].mxu0
        %v2759 = vadd.f32 0.0, %v2758
        %v2760 = vpop.f32.mrb[0].mxu0
        %2761 = vmatprep.mubr.f32.mxu0 0.0
        %2762 = vmatmul.mubr.f32.gmra.mrb[0].mxu0 %v2581
        %v2763 = vpop.f32.mrb[0].mxu0
        %v2764 = vadd.f32 0.0, %v2763
        %v2765 = vpop.f32.mrb[0].mxu0
        %2766 = vmatprep.mubr.f32.mxu0 0.0
        %2767 = vmatmul.mubr.f32.gmra.mrb[0].mxu0 %v2584
        %v2768 = vpop.f32.mrb[0].mxu0
        %v2769 = vadd.f32 0.0, %v2768
        %v2770 = vpop.f32.mrb[0].mxu0
        %2771 = vmatprep.mubr.f32.mxu0 0.0
        %2772 = vmatmul.mubr.f32.gmra.mrb[0].mxu0 %v2587
        %v2773 = vpop.f32.mrb[0].mxu0
        %v2774 = vadd.f32 0.0, %v2773
        %v2775 = vpop.f32.mrb[0].mxu0
        %2776 = vmatprep.mubr.f32.mxu0 0.0
        %2777 = vmatmul.mubr.f32.gmra.mrb[0].mxu0 %v2590
        %v2778 = vpop.f32.mrb[0].mxu0
        %v2779 = vadd.f32 0.0, %v2778
        %v2780 = vpop.f32.mrb[0].mxu0
        %2781 = vmatprep.mubr.f32.mxu0 0.0
        %2782 = vmatmul.mubr.f32.gmra.mrb[0].mxu0 %v2593
        %v2783 = vpop.f32.mrb[0].mxu0
        %v2784 = vadd.f32 0.0, %v2783
        %v2785 = vpop.f32.mrb[0].mxu0
        %2786 = vmatprep.mubr.f32.mxu0 0.0
        %2787 = vmatmul.mubr.f32.gmra.mrb[0].mxu0 %v2596
        %v2788 = vpop.f32.mrb[0].mxu0
        %v2789 = vadd.f32 0.0, %v2788
        %v2790 = vpop.f32.mrb[0].mxu0
        %2791 = vmatprep.mubr.f32.mxu0 0.0
        %2792 = vmatmul.mubr.f32.gmra.mrb[0].mxu0 %v2599
        %v2793 = vpop.f32.mrb[0].mxu0
        %v2794 = vadd.f32 0.0, %v2793
        %v2795 = vpop.f32.mrb[0].mxu0
        %2796 = vmatprep.mubr.f32.mxu0 0.0
        %2797 = vmatmul.mubr.f32.gmra.mrb[0].mxu0 %v2602
        %v2798 = vpop.f32.mrb[0].mxu0
        %v2799 = vadd.f32 0.0, %v2798
        %v2800 = vpop.f32.mrb[0].mxu0
        %2801 = vmatprep.mubr.f32.mxu0 0.0
        %2802 = vmatmul.mubr.f32.gmra.mrb[0].mxu0 %v2605
        %v2803 = vpop.f32.mrb[0].mxu0
        %v2804 = vadd.f32 0.0, %v2803
        %v2805 = vpop.f32.mrb[0].mxu0
        %2806 = vmatprep.mubr.f32.mxu0 0.0
        %2807 = vmatmul.mubr.f32.gmra.mrb[0].mxu0 %v2608
        %v2808 = vpop.f32.mrb[0].mxu0
        %v2809 = vadd.f32 0.0, %v2808
        %v2810 = vpop.f32.mrb[0].mxu0
        %2811 = vmatprep.mubr.f32.mxu0 0.0
        %2812 = vmatmul.mubr.f32.gmra.mrb[0].mxu0 %v2611
        %v2813 = vpop.f32.mrb[0].mxu0
        %v2814 = vadd.f32 0.0, %v2813
        %v2815 = vpop.f32.mrb[0].mxu0
        %2816 = vmatprep.mubr.f32.mxu0 0.0
        %2817 = vmatmul.mubr.f32.gmra.mrb[0].mxu0 %v2614
        %v2818 = vpop.f32.mrb[0].mxu0
        %v2819 = vadd.f32 0.0, %v2818
        %v2820 = vpop.f32.mrb[0].mxu0
        %2821 = vmatprep.mubr.f32.mxu0 0.0
        %2822 = vmatmul.mubr.f32.gmra.mrb[0].mxu0 %v2617
        %v2823 = vpop.f32.mrb[0].mxu0
        %v2824 = vadd.f32 0.0, %v2823
        %v2825 = vpop.f32.mrb[0].mxu0
        %2826 = vmatprep.mubr.f32.mxu0 0.0
        %2827 = vmatmul.mubr.f32.gmra.mrb[0].mxu0 %v2620
        %v2828 = vpop.f32.mrb[0].mxu0
        %v2829 = vadd.f32 0.0, %v2828
        %v2830 = vpop.f32.mrb[0].mxu0
        %2831 = vmatprep.mubr.f32.mxu0 0.0
        %2832 = vmatmul.mubr.f32.gmra.mrb[0].mxu0 %v2623
        %v2833 = vpop.f32.mrb[0].mxu0
        %v2834 = vadd.f32 0.0, %v2833
        %v2835 = vpop.f32.mrb[0].mxu0
        %2836 = vmatprep.mubr.f32.mxu0 0.0
        %2837 = vmatmul.mubr.f32.gmra.mrb[0].mxu0 %v2626
        %v2838 = vpop.f32.mrb[0].mxu0
        %v2839 = vadd.f32 0.0, %v2838
        %v2840 = vpop.f32.mrb[0].mxu0
        %2841 = vmatprep.mubr.f32.mxu0 0.0
        %2842 = vmatmul.mubr.f32.gmra.mrb[0].mxu0 %v2629
        %v2843 = vpop.f32.mrb[0].mxu0
        %v2844 = vadd.f32 0.0, %v2843
        %v2845 = vpop.f32.mrb[0].mxu0
        %2846 = vmatprep.mubr.f32.mxu0 0.0
        %2847 = vmatmul.mubr.f32.gmra.mrb[0].mxu0 %v2632
        %v2848 = vpop.f32.mrb[0].mxu0
        %v2849 = vadd.f32 0.0, %v2848
        %v2850 = vpop.f32.mrb[0].mxu0
        %2851 = vmatprep.mubr.f32.mxu0 0.0
        %2852 = vmatmul.mubr.f32.gmra.mrb[0].mxu0 %v2635
        %v2853 = vpop.f32.mrb[0].mxu0
        %v2854 = vadd.f32 0.0, %v2853
        %v2855 = vpop.f32.mrb[0].mxu0
        %2856 = vmatprep.mubr.f32.mxu0 0.0
        %2857 = vmatmul.mubr.f32.gmra.mrb[0].mxu0 %v2638
        %v2858 = vpop.f32.mrb[0].mxu0
        %v2859 = vadd.f32 0.0, %v2858
        %v2860 = vpop.f32.mrb[0].mxu0
        %2861 = vmatprep.mubr.f32.mxu0 0.0
        %2862 = vmatmul.mubr.f32.gmra.mrb[0].mxu0 %v2641
        %v2863 = vpop.f32.mrb[0].mxu0
        %v2864 = vadd.f32 0.0, %v2863
        %v2865 = vpop.f32.mrb[0].mxu0
        %2866 = vmatprep.mubr.f32.mxu0 0.0
        %2867 = vmatmul.mubr.f32.gmra.mrb[0].mxu0 %v2644
        %v2868 = vpop.f32.mrb[0].mxu0
        %v2869 = vadd.f32 0.0, %v2868
        %v2870 = vpop.f32.mrb[0].mxu0
        %2871 = vmatprep.mubr.f32.mxu0 0.0
        %2872 = vmatmul.mubr.f32.gmra.mrb[0].mxu0 %v2647
        %v2873 = vpop.f32.mrb[0].mxu0
        %v2874 = vadd.f32 0.0, %v2873
        %v2875 = vpop.f32.mrb[0].mxu0
        %2876 = vdwg.mxu0
        %v2877 = vadd.f32 %v2519, %v2719
        %v2878 = vadd.f32 %v2520, %v2724
        %v2879 = vadd.f32 %v2521, %v2729
        %v2880 = vadd.f32 %v2522, %v2734
        %v2881 = vadd.f32 %v2523, %v2739
        %v2882 = vadd.f32 %v2524, %v2744
        %v2883 = vadd.f32 %v2525, %v2749
        %v2884 = vadd.f32 %v2526, %v2754
        %v2885 = vadd.f32 %v2527, %v2759
        %v2886 = vadd.f32 %v2528, %v2764
        %v2887 = vadd.f32 %v2529, %v2769
        %v2888 = vadd.f32 %v2530, %v2774
        %v2889 = vadd.f32 %v2531, %v2779
        %v2890 = vadd.f32 %v2532, %v2784
        %v2891 = vadd.f32 %v2533, %v2789
        %v2892 = vadd.f32 %v2534, %v2794
        %v2893 = vadd.f32 %v2535, %v2799
        %v2894 = vadd.f32 %v2536, %v2804
        %v2895 = vadd.f32 %v2537, %v2809
        %v2896 = vadd.f32 %v2538, %v2814
        %v2897 = vadd.f32 %v2539, %v2819
        %v2898 = vadd.f32 %v2540, %v2824
        %v2899 = vadd.f32 %v2541, %v2829
        %v2900 = vadd.f32 %v2542, %v2834
        %v2901 = vadd.f32 %v2543, %v2839
        %v2902 = vadd.f32 %v2544, %v2844
        %v2903 = vadd.f32 %v2545, %v2849
        %v2904 = vadd.f32 %v2546, %v2854
        %v2905 = vadd.f32 %v2547, %v2859
        %v2906 = vadd.f32 %v2548, %v2864
        %v2907 = vadd.f32 %v2549, %v2869
        %v2908 = vadd.f32 %v2550, %v2874
        %2909 = vst.msk [vmem:[#allocation2] sm:$0xff] %vm182, %v2877
        %2910 = vst.msk [vmem:[#allocation2 + $0x8] sm:$0xff] %vm182, %v2878
        %2911 = vst.msk [vmem:[#allocation2 + $0x10] sm:$0xff] %vm182, %v2879
        %2912 = vst.msk [vmem:[#allocation2 + $0x18] sm:$0xff] %vm182, %v2880
        %2913 = vst.msk [vmem:[#allocation2 + $0x20] sm:$0xff] %vm182, %v2881
        %2914 = vst.msk [vmem:[#allocation2 + $0x28] sm:$0xff] %vm182, %v2882
        %2915 = vst.msk [vmem:[#allocation2 + $0x30] sm:$0xff] %vm182, %v2883
        %2916 = vst.msk [vmem:[#allocation2 + $0x38] sm:$0xff] %vm182, %v2884
        %2917 = vst.msk [vmem:[#allocation2 + $0x40] sm:$0xff] %vm182, %v2885
        %2918 = vst.msk [vmem:[#allocation2 + $0x48] sm:$0xff] %vm182, %v2886
        %2919 = vst.msk [vmem:[#allocation2 + $0x50] sm:$0xff] %vm182, %v2887
        %2920 = vst.msk [vmem:[#allocation2 + $0x58] sm:$0xff] %vm182, %v2888
        %2921 = vst.msk [vmem:[#allocation2 + $0x60] sm:$0xff] %vm182, %v2889
        %2922 = vst.msk [vmem:[#allocation2 + $0x68] sm:$0xff] %vm182, %v2890
        %2923 = vst.msk [vmem:[#allocation2 + $0x70] sm:$0xff] %vm182, %v2891
        %2924 = vst.msk [vmem:[#allocation2 + $0x78] sm:$0xff] %vm182, %v2892
        %2925 = vst.msk [vmem:[#allocation2 + $0x80] sm:$0xff] %vm182, %v2893
        %2926 = vst.msk [vmem:[#allocation2 + $0x88] sm:$0xff] %vm182, %v2894
        %2927 = vst.msk [vmem:[#allocation2 + $0x90] sm:$0xff] %vm182, %v2895
        %2928 = vst.msk [vmem:[#allocation2 + $0x98] sm:$0xff] %vm182, %v2896
        %2929 = vst.msk [vmem:[#allocation2 + $0xa0] sm:$0xff] %vm182, %v2897
        %2930 = vst.msk [vmem:[#allocation2 + $0xa8] sm:$0xff] %vm182, %v2898
        %2931 = vst.msk [vmem:[#allocation2 + $0xb0] sm:$0xff] %vm182, %v2899
        %2932 = vst.msk [vmem:[#allocation2 + $0xb8] sm:$0xff] %vm182, %v2900
        %2933 = vst.msk [vmem:[#allocation2 + $0xc0] sm:$0xff] %vm182, %v2901
        %2934 = vst.msk [vmem:[#allocation2 + $0xc8] sm:$0xff] %vm182, %v2902
        %2935 = vst.msk [vmem:[#allocation2 + $0xd0] sm:$0xff] %vm182, %v2903
        %2936 = vst.msk [vmem:[#allocation2 + $0xd8] sm:$0xff] %vm182, %v2904
        %2937 = vst.msk [vmem:[#allocation2 + $0xe0] sm:$0xff] %vm182, %v2905
        %2938 = vst.msk [vmem:[#allocation2 + $0xe8] sm:$0xff] %vm182, %v2906
        %2939 = vst.msk [vmem:[#allocation2 + $0xf0] sm:$0xff] %vm182, %v2907
        %2940 = vst.msk [vmem:[#allocation2 + $0xf8] sm:$0xff] %vm182, %v2908
        %s2941 = scalar_lea.vmem %s176, 48
        %v2942 = vld [vmem:[%s2941] sm:$0xff]
        %v2943 = vld [vmem:[%s2941 + $0x8] sm:$0xff]
        %v2944 = vld [vmem:[%s2941 + $0x18] sm:$0xff]
        %v2945 = vld [vmem:[%s2941 + $0x20] sm:$0xff]
        %v2946 = vld [vmem:[%s2941 + $0x30] sm:$0xff]
        %v2947 = vld [vmem:[%s2941 + $0x38] sm:$0xff]
        %v2948 = vld [vmem:[%s2941 + $0x48] sm:$0xff]
        %v2949 = vld [vmem:[%s2941 + $0x50] sm:$0xff]
        %v2950 = vld [vmem:[%s2941 + $0x60] sm:$0xff]
        %v2951 = vld [vmem:[%s2941 + $0x68] sm:$0xff]
        %v2952 = vld [vmem:[%s2941 + $0x78] sm:$0xff]
        %v2953 = vld [vmem:[%s2941 + $0x80] sm:$0xff]
        %v2954 = vld [vmem:[%s2941 + $0x90] sm:$0xff]
        %v2955 = vld [vmem:[%s2941 + $0x98] sm:$0xff]
        %v2956 = vld [vmem:[%s2941 + $0xa8] sm:$0xff]
        %v2957 = vld [vmem:[%s2941 + $0xb0] sm:$0xff]
        %v2958 = vld [vmem:[%s2941 + $0xc0] sm:$0xff]
        %v2959 = vld [vmem:[%s2941 + $0xc8] sm:$0xff]
        %v2960 = vld [vmem:[%s2941 + $0xd8] sm:$0xff]
        %v2961 = vld [vmem:[%s2941 + $0xe0] sm:$0xff]
        %v2962 = vld [vmem:[%s2941 + $0xf0] sm:$0xff]
        %v2963 = vld [vmem:[%s2941 + $0xf8] sm:$0xff]
        %v2964 = vld [vmem:[%s2941 + $0x108] sm:$0xff]
        %v2965 = vld [vmem:[%s2941 + $0x110] sm:$0xff]
        %v2966 = vld [vmem:[%s2941 + $0x120] sm:$0xff]
        %v2967 = vld [vmem:[%s2941 + $0x128] sm:$0xff]
        %v2968 = vld [vmem:[%s2941 + $0x138] sm:$0xff]
        %v2969 = vld [vmem:[%s2941 + $0x140] sm:$0xff]
        %v2970 = vld [vmem:[%s2941 + $0x150] sm:$0xff]
        %v2971 = vld [vmem:[%s2941 + $0x158] sm:$0xff]
        %v2972 = vld [vmem:[%s2941 + $0x168] sm:$0xff]
        %v2973 = vld [vmem:[%s2941 + $0x170] sm:$0xff]
        %v2974 = vld [vmem:[#allocation2] sm:$0xff]
        %v2975 = vld [vmem:[#allocation2 + $0x8] sm:$0xff]
        %v2976 = vld [vmem:[#allocation2 + $0x10] sm:$0xff]
        %v2977 = vld [vmem:[#allocation2 + $0x18] sm:$0xff]
        %v2978 = vld [vmem:[#allocation2 + $0x20] sm:$0xff]
        %v2979 = vld [vmem:[#allocation2 + $0x28] sm:$0xff]
        %v2980 = vld [vmem:[#allocation2 + $0x30] sm:$0xff]
        %v2981 = vld [vmem:[#allocation2 + $0x38] sm:$0xff]
        %v2982 = vld [vmem:[#allocation2 + $0x40] sm:$0xff]
        %v2983 = vld [vmem:[#allocation2 + $0x48] sm:$0xff]
        %v2984 = vld [vmem:[#allocation2 + $0x50] sm:$0xff]
        %v2985 = vld [vmem:[#allocation2 + $0x58] sm:$0xff]
        %v2986 = vld [vmem:[#allocation2 + $0x60] sm:$0xff]
        %v2987 = vld [vmem:[#allocation2 + $0x68] sm:$0xff]
        %v2988 = vld [vmem:[#allocation2 + $0x70] sm:$0xff]
        %v2989 = vld [vmem:[#allocation2 + $0x78] sm:$0xff]
        %v2990 = vld [vmem:[#allocation2 + $0x80] sm:$0xff]
        %v2991 = vld [vmem:[#allocation2 + $0x88] sm:$0xff]
        %v2992 = vld [vmem:[#allocation2 + $0x90] sm:$0xff]
        %v2993 = vld [vmem:[#allocation2 + $0x98] sm:$0xff]
        %v2994 = vld [vmem:[#allocation2 + $0xa0] sm:$0xff]
        %v2995 = vld [vmem:[#allocation2 + $0xa8] sm:$0xff]
        %v2996 = vld [vmem:[#allocation2 + $0xb0] sm:$0xff]
        %v2997 = vld [vmem:[#allocation2 + $0xb8] sm:$0xff]
        %v2998 = vld [vmem:[#allocation2 + $0xc0] sm:$0xff]
        %v2999 = vld [vmem:[#allocation2 + $0xc8] sm:$0xff]
        %v3000 = vld [vmem:[#allocation2 + $0xd0] sm:$0xff]
        %v3001 = vld [vmem:[#allocation2 + $0xd8] sm:$0xff]
        %v3002 = vld [vmem:[#allocation2 + $0xe0] sm:$0xff]
        %v3003 = vld [vmem:[#allocation2 + $0xe8] sm:$0xff]
        %v3004 = vld [vmem:[#allocation2 + $0xf0] sm:$0xff]
        %v3005 = vld [vmem:[#allocation2 + $0xf8] sm:$0xff]
        %s3006 = scalar_lea.vmem %s1, 24
        %v3007 = vld [vmem:[%s3006] sm:$0xf]
        %v3009 = vsel %vm280, %v2942, 0
        %v3012 = vsel %vm280, %v2943, 0
        %v3015 = vsel %vm280, %v2944, 0
        %v3018 = vsel %vm280, %v2945, 0
        %v3021 = vsel %vm280, %v2946, 0
        %v3024 = vsel %vm280, %v2947, 0
        %v3027 = vsel %vm280, %v2948, 0
        %v3030 = vsel %vm280, %v2949, 0
        %v3033 = vsel %vm280, %v2950, 0
        %v3036 = vsel %vm280, %v2951, 0
        %v3039 = vsel %vm280, %v2952, 0
        %v3042 = vsel %vm280, %v2953, 0
        %v3045 = vsel %vm280, %v2954, 0
        %v3048 = vsel %vm280, %v2955, 0
        %v3051 = vsel %vm280, %v2956, 0
        %v3054 = vsel %vm280, %v2957, 0
        %v3057 = vsel %vm280, %v2958, 0
        %v3060 = vsel %vm280, %v2959, 0
        %v3063 = vsel %vm280, %v2960, 0
        %v3066 = vsel %vm280, %v2961, 0
        %v3069 = vsel %vm280, %v2962, 0
        %v3072 = vsel %vm280, %v2963, 0
        %v3075 = vsel %vm280, %v2964, 0
        %v3078 = vsel %vm280, %v2965, 0
        %v3081 = vsel %vm280, %v2966, 0
        %v3084 = vsel %vm280, %v2967, 0
        %v3087 = vsel %vm280, %v2968, 0
        %v3090 = vsel %vm280, %v2969, 0
        %v3093 = vsel %vm280, %v2970, 0
        %v3096 = vsel %vm280, %v2971, 0
        %v3099 = vsel %vm280, %v2972, 0
        %v3102 = vsel %vm280, %v2973, 0
        %v3105 = vsel %vm377, %v3007, 0
        %3107 = vmatprep.subr.mxu0 0.0
        %3108 = vmatpush1.msra.mxu0 %v3105
        %3109 = vmatprep.subr.mxu0 0.0
        %3110 = vmatpush1.msra.mxu0 0.0
        %3111 = vmatprep.subr.mxu0 0.0
        %3112 = vmatpush1.msra.mxu0 0.0
        %3113 = vmatprep.subr.mxu0 0.0
        %3114 = vmatpush1.msra.mxu0 0.0
        %3115 = vmatprep.subr.mxu0 0.0
        %3116 = vmatpush1.msra.mxu0 0.0
        %3117 = vmatprep.subr.mxu0 0.0
        %3118 = vmatpush1.msra.mxu0 0.0
        %3119 = vmatprep.subr.mxu0 0.0
        %3120 = vmatpush1.msra.mxu0 0.0
        %3121 = vmatprep.subr.mxu0 0.0
        %3122 = vmatpush1.msra.mxu0 0.0
        %3123 = vmatprep.subr.mxu0 0.0
        %3124 = vmatpush1.msra.mxu0 0.0
        %3125 = vmatprep.subr.mxu0 0.0
        %3126 = vmatpush1.msra.mxu0 0.0
        %3127 = vmatprep.subr.mxu0 0.0
        %3128 = vmatpush1.msra.mxu0 0.0
        %3129 = vmatprep.subr.mxu0 0.0
        %3130 = vmatpush1.msra.mxu0 0.0
        %3131 = vmatprep.subr.mxu0 0.0
        %3132 = vmatpush1.msra.mxu0 0.0
        %3133 = vmatprep.subr.mxu0 0.0
        %3134 = vmatpush1.msra.mxu0 0.0
        %3135 = vmatprep.subr.mxu0 0.0
        %3136 = vmatpush1.msra.mxu0 0.0
        %3137 = vmatprep.subr.mxu0 0.0
        %3138 = vmatpush1.msra.mxu0 0.0
        %3139 = vmatprep.subr.mxu0 0.0
        %3140 = vmatpush1.msra.mxu0 0.0
        %3141 = vmatprep.subr.mxu0 0.0
        %3142 = vmatpush1.msra.mxu0 0.0
        %3143 = vmatprep.subr.mxu0 0.0
        %3144 = vmatpush1.msra.mxu0 0.0
        %3145 = vmatprep.subr.mxu0 0.0
        %3146 = vmatpush1.msra.mxu0 0.0
        %3147 = vmatprep.subr.mxu0 0.0
        %3148 = vmatpush1.msra.mxu0 0.0
        %3149 = vmatprep.subr.mxu0 0.0
        %3150 = vmatpush1.msra.mxu0 0.0
        %3151 = vmatprep.subr.mxu0 0.0
        %3152 = vmatpush1.msra.mxu0 0.0
        %3153 = vmatprep.subr.mxu0 0.0
        %3154 = vmatpush1.msra.mxu0 0.0
        %3155 = vmatprep.subr.mxu0 0.0
        %3156 = vmatpush1.msra.mxu0 0.0
        %3157 = vmatprep.subr.mxu0 0.0
        %3158 = vmatpush1.msra.mxu0 0.0
        %3159 = vmatprep.subr.mxu0 0.0
        %3160 = vmatpush1.msra.mxu0 0.0
        %3161 = vmatprep.subr.mxu0 0.0
        %3162 = vmatpush1.msra.mxu0 0.0
        %3163 = vmatprep.subr.mxu0 0.0
        %3164 = vmatpush1.msra.mxu0 0.0
        %3165 = vmatprep.subr.mxu0 0.0
        %3166 = vmatpush1.msra.mxu0 0.0
        %3167 = vmatprep.subr.mxu0 0.0
        %3168 = vmatpush1.msra.mxu0 0.0
        %3169 = vmatprep.subr.mxu0 0.0
        %3170 = vmatpush1.msra.mxu0 0.0
        %3171 = vmatprep.mubr.f32.mxu0 0.0
        %3172 = vmatmul.mubr.f32.gmra.mrb[0].mxu0 %v3009
        %v3173 = vpop.f32.mrb[0].mxu0
        %v3174 = vadd.f32 0.0, %v3173
        %v3175 = vpop.f32.mrb[0].mxu0
        %3176 = vmatprep.mubr.f32.mxu0 0.0
        %3177 = vmatmul.mubr.f32.gmra.mrb[0].mxu0 %v3012
        %v3178 = vpop.f32.mrb[0].mxu0
        %v3179 = vadd.f32 0.0, %v3178
        %v3180 = vpop.f32.mrb[0].mxu0
        %3181 = vmatprep.mubr.f32.mxu0 0.0
        %3182 = vmatmul.mubr.f32.gmra.mrb[0].mxu0 %v3015
        %v3183 = vpop.f32.mrb[0].mxu0
        %v3184 = vadd.f32 0.0, %v3183
        %v3185 = vpop.f32.mrb[0].mxu0
        %3186 = vmatprep.mubr.f32.mxu0 0.0
        %3187 = vmatmul.mubr.f32.gmra.mrb[0].mxu0 %v3018
        %v3188 = vpop.f32.mrb[0].mxu0
        %v3189 = vadd.f32 0.0, %v3188
        %v3190 = vpop.f32.mrb[0].mxu0
        %3191 = vmatprep.mubr.f32.mxu0 0.0
        %3192 = vmatmul.mubr.f32.gmra.mrb[0].mxu0 %v3021
        %v3193 = vpop.f32.mrb[0].mxu0
        %v3194 = vadd.f32 0.0, %v3193
        %v3195 = vpop.f32.mrb[0].mxu0
        %3196 = vmatprep.mubr.f32.mxu0 0.0
        %3197 = vmatmul.mubr.f32.gmra.mrb[0].mxu0 %v3024
        %v3198 = vpop.f32.mrb[0].mxu0
        %v3199 = vadd.f32 0.0, %v3198
        %v3200 = vpop.f32.mrb[0].mxu0
        %3201 = vmatprep.mubr.f32.mxu0 0.0
        %3202 = vmatmul.mubr.f32.gmra.mrb[0].mxu0 %v3027
        %v3203 = vpop.f32.mrb[0].mxu0
        %v3204 = vadd.f32 0.0, %v3203
        %v3205 = vpop.f32.mrb[0].mxu0
        %3206 = vmatprep.mubr.f32.mxu0 0.0
        %3207 = vmatmul.mubr.f32.gmra.mrb[0].mxu0 %v3030
        %v3208 = vpop.f32.mrb[0].mxu0
        %v3209 = vadd.f32 0.0, %v3208
        %v3210 = vpop.f32.mrb[0].mxu0
        %3211 = vmatprep.mubr.f32.mxu0 0.0
        %3212 = vmatmul.mubr.f32.gmra.mrb[0].mxu0 %v3033
        %v3213 = vpop.f32.mrb[0].mxu0
        %v3214 = vadd.f32 0.0, %v3213
        %v3215 = vpop.f32.mrb[0].mxu0
        %3216 = vmatprep.mubr.f32.mxu0 0.0
        %3217 = vmatmul.mubr.f32.gmra.mrb[0].mxu0 %v3036
        %v3218 = vpop.f32.mrb[0].mxu0
        %v3219 = vadd.f32 0.0, %v3218
        %v3220 = vpop.f32.mrb[0].mxu0
        %3221 = vmatprep.mubr.f32.mxu0 0.0
        %3222 = vmatmul.mubr.f32.gmra.mrb[0].mxu0 %v3039
        %v3223 = vpop.f32.mrb[0].mxu0
        %v3224 = vadd.f32 0.0, %v3223
        %v3225 = vpop.f32.mrb[0].mxu0
        %3226 = vmatprep.mubr.f32.mxu0 0.0
        %3227 = vmatmul.mubr.f32.gmra.mrb[0].mxu0 %v3042
        %v3228 = vpop.f32.mrb[0].mxu0
        %v3229 = vadd.f32 0.0, %v3228
        %v3230 = vpop.f32.mrb[0].mxu0
        %3231 = vmatprep.mubr.f32.mxu0 0.0
        %3232 = vmatmul.mubr.f32.gmra.mrb[0].mxu0 %v3045
        %v3233 = vpop.f32.mrb[0].mxu0
        %v3234 = vadd.f32 0.0, %v3233
        %v3235 = vpop.f32.mrb[0].mxu0
        %3236 = vmatprep.mubr.f32.mxu0 0.0
        %3237 = vmatmul.mubr.f32.gmra.mrb[0].mxu0 %v3048
        %v3238 = vpop.f32.mrb[0].mxu0
        %v3239 = vadd.f32 0.0, %v3238
        %v3240 = vpop.f32.mrb[0].mxu0
        %3241 = vmatprep.mubr.f32.mxu0 0.0
        %3242 = vmatmul.mubr.f32.gmra.mrb[0].mxu0 %v3051
        %v3243 = vpop.f32.mrb[0].mxu0
        %v3244 = vadd.f32 0.0, %v3243
        %v3245 = vpop.f32.mrb[0].mxu0
        %3246 = vmatprep.mubr.f32.mxu0 0.0
        %3247 = vmatmul.mubr.f32.gmra.mrb[0].mxu0 %v3054
        %v3248 = vpop.f32.mrb[0].mxu0
        %v3249 = vadd.f32 0.0, %v3248
        %v3250 = vpop.f32.mrb[0].mxu0
        %3251 = vmatprep.mubr.f32.mxu0 0.0
        %3252 = vmatmul.mubr.f32.gmra.mrb[0].mxu0 %v3057
        %v3253 = vpop.f32.mrb[0].mxu0
        %v3254 = vadd.f32 0.0, %v3253
        %v3255 = vpop.f32.mrb[0].mxu0
        %3256 = vmatprep.mubr.f32.mxu0 0.0
        %3257 = vmatmul.mubr.f32.gmra.mrb[0].mxu0 %v3060
        %v3258 = vpop.f32.mrb[0].mxu0
        %v3259 = vadd.f32 0.0, %v3258
        %v3260 = vpop.f32.mrb[0].mxu0
        %3261 = vmatprep.mubr.f32.mxu0 0.0
        %3262 = vmatmul.mubr.f32.gmra.mrb[0].mxu0 %v3063
        %v3263 = vpop.f32.mrb[0].mxu0
        %v3264 = vadd.f32 0.0, %v3263
        %v3265 = vpop.f32.mrb[0].mxu0
        %3266 = vmatprep.mubr.f32.mxu0 0.0
        %3267 = vmatmul.mubr.f32.gmra.mrb[0].mxu0 %v3066
        %v3268 = vpop.f32.mrb[0].mxu0
        %v3269 = vadd.f32 0.0, %v3268
        %v3270 = vpop.f32.mrb[0].mxu0
        %3271 = vmatprep.mubr.f32.mxu0 0.0
        %3272 = vmatmul.mubr.f32.gmra.mrb[0].mxu0 %v3069
        %v3273 = vpop.f32.mrb[0].mxu0
        %v3274 = vadd.f32 0.0, %v3273
        %v3275 = vpop.f32.mrb[0].mxu0
        %3276 = vmatprep.mubr.f32.mxu0 0.0
        %3277 = vmatmul.mubr.f32.gmra.mrb[0].mxu0 %v3072
        %v3278 = vpop.f32.mrb[0].mxu0
        %v3279 = vadd.f32 0.0, %v3278
        %v3280 = vpop.f32.mrb[0].mxu0
        %3281 = vmatprep.mubr.f32.mxu0 0.0
        %3282 = vmatmul.mubr.f32.gmra.mrb[0].mxu0 %v3075
        %v3283 = vpop.f32.mrb[0].mxu0
        %v3284 = vadd.f32 0.0, %v3283
        %v3285 = vpop.f32.mrb[0].mxu0
        %3286 = vmatprep.mubr.f32.mxu0 0.0
        %3287 = vmatmul.mubr.f32.gmra.mrb[0].mxu0 %v3078
        %v3288 = vpop.f32.mrb[0].mxu0
        %v3289 = vadd.f32 0.0, %v3288
        %v3290 = vpop.f32.mrb[0].mxu0
        %3291 = vmatprep.mubr.f32.mxu0 0.0
        %3292 = vmatmul.mubr.f32.gmra.mrb[0].mxu0 %v3081
        %v3293 = vpop.f32.mrb[0].mxu0
        %v3294 = vadd.f32 0.0, %v3293
        %v3295 = vpop.f32.mrb[0].mxu0
        %3296 = vmatprep.mubr.f32.mxu0 0.0
        %3297 = vmatmul.mubr.f32.gmra.mrb[0].mxu0 %v3084
        %v3298 = vpop.f32.mrb[0].mxu0
        %v3299 = vadd.f32 0.0, %v3298
        %v3300 = vpop.f32.mrb[0].mxu0
        %3301 = vmatprep.mubr.f32.mxu0 0.0
        %3302 = vmatmul.mubr.f32.gmra.mrb[0].mxu0 %v3087
        %v3303 = vpop.f32.mrb[0].mxu0
        %v3304 = vadd.f32 0.0, %v3303
        %v3305 = vpop.f32.mrb[0].mxu0
        %3306 = vmatprep.mubr.f32.mxu0 0.0
        %3307 = vmatmul.mubr.f32.gmra.mrb[0].mxu0 %v3090
        %v3308 = vpop.f32.mrb[0].mxu0
        %v3309 = vadd.f32 0.0, %v3308
        %v3310 = vpop.f32.mrb[0].mxu0
        %3311 = vmatprep.mubr.f32.mxu0 0.0
        %3312 = vmatmul.mubr.f32.gmra.mrb[0].mxu0 %v3093
        %v3313 = vpop.f32.mrb[0].mxu0
        %v3314 = vadd.f32 0.0, %v3313
        %v3315 = vpop.f32.mrb[0].mxu0
        %3316 = vmatprep.mubr.f32.mxu0 0.0
        %3317 = vmatmul.mubr.f32.gmra.mrb[0].mxu0 %v3096
        %v3318 = vpop.f32.mrb[0].mxu0
        %v3319 = vadd.f32 0.0, %v3318
        %v3320 = vpop.f32.mrb[0].mxu0
        %3321 = vmatprep.mubr.f32.mxu0 0.0
        %3322 = vmatmul.mubr.f32.gmra.mrb[0].mxu0 %v3099
        %v3323 = vpop.f32.mrb[0].mxu0
        %v3324 = vadd.f32 0.0, %v3323
        %v3325 = vpop.f32.mrb[0].mxu0
        %3326 = vmatprep.mubr.f32.mxu0 0.0
        %3327 = vmatmul.mubr.f32.gmra.mrb[0].mxu0 %v3102
        %v3328 = vpop.f32.mrb[0].mxu0
        %v3329 = vadd.f32 0.0, %v3328
        %v3330 = vpop.f32.mrb[0].mxu0
        %3331 = vdwg.mxu0
        %v3332 = vadd.f32 %v2974, %v3174
        %v3333 = vadd.f32 %v2975, %v3179
        %v3334 = vadd.f32 %v2976, %v3184
        %v3335 = vadd.f32 %v2977, %v3189
        %v3336 = vadd.f32 %v2978, %v3194
        %v3337 = vadd.f32 %v2979, %v3199
        %v3338 = vadd.f32 %v2980, %v3204
        %v3339 = vadd.f32 %v2981, %v3209
        %v3340 = vadd.f32 %v2982, %v3214
        %v3341 = vadd.f32 %v2983, %v3219
        %v3342 = vadd.f32 %v2984, %v3224
        %v3343 = vadd.f32 %v2985, %v3229
        %v3344 = vadd.f32 %v2986, %v3234
        %v3345 = vadd.f32 %v2987, %v3239
        %v3346 = vadd.f32 %v2988, %v3244
        %v3347 = vadd.f32 %v2989, %v3249
        %v3348 = vadd.f32 %v2990, %v3254
        %v3349 = vadd.f32 %v2991, %v3259
        %v3350 = vadd.f32 %v2992, %v3264
        %v3351 = vadd.f32 %v2993, %v3269
        %v3352 = vadd.f32 %v2994, %v3274
        %v3353 = vadd.f32 %v2995, %v3279
        %v3354 = vadd.f32 %v2996, %v3284
        %v3355 = vadd.f32 %v2997, %v3289
        %v3356 = vadd.f32 %v2998, %v3294
        %v3357 = vadd.f32 %v2999, %v3299
        %v3358 = vadd.f32 %v3000, %v3304
        %v3359 = vadd.f32 %v3001, %v3309
        %v3360 = vadd.f32 %v3002, %v3314
        %v3361 = vadd.f32 %v3003, %v3319
        %v3362 = vadd.f32 %v3004, %v3324
        %v3363 = vadd.f32 %v3005, %v3329
        %3364 = vst.msk [vmem:[#allocation2] sm:$0xff] %vm182, %v3332
        %3365 = vst.msk [vmem:[#allocation2 + $0x8] sm:$0xff] %vm182, %v3333
        %3366 = vst.msk [vmem:[#allocation2 + $0x10] sm:$0xff] %vm182, %v3334
        %3367 = vst.msk [vmem:[#allocation2 + $0x18] sm:$0xff] %vm182, %v3335
        %3368 = vst.msk [vmem:[#allocation2 + $0x20] sm:$0xff] %vm182, %v3336
        %3369 = vst.msk [vmem:[#allocation2 + $0x28] sm:$0xff] %vm182, %v3337
        %3370 = vst.msk [vmem:[#allocation2 + $0x30] sm:$0xff] %vm182, %v3338
        %3371 = vst.msk [vmem:[#allocation2 + $0x38] sm:$0xff] %vm182, %v3339
        %3372 = vst.msk [vmem:[#allocation2 + $0x40] sm:$0xff] %vm182, %v3340
        %3373 = vst.msk [vmem:[#allocation2 + $0x48] sm:$0xff] %vm182, %v3341
        %3374 = vst.msk [vmem:[#allocation2 + $0x50] sm:$0xff] %vm182, %v3342
        %3375 = vst.msk [vmem:[#allocation2 + $0x58] sm:$0xff] %vm182, %v3343
        %3376 = vst.msk [vmem:[#allocation2 + $0x60] sm:$0xff] %vm182, %v3344
        %3377 = vst.msk [vmem:[#allocation2 + $0x68] sm:$0xff] %vm182, %v3345
        %3378 = vst.msk [vmem:[#allocation2 + $0x70] sm:$0xff] %vm182, %v3346
        %3379 = vst.msk [vmem:[#allocation2 + $0x78] sm:$0xff] %vm182, %v3347
        %3380 = vst.msk [vmem:[#allocation2 + $0x80] sm:$0xff] %vm182, %v3348
        %3381 = vst.msk [vmem:[#allocation2 + $0x88] sm:$0xff] %vm182, %v3349
        %3382 = vst.msk [vmem:[#allocation2 + $0x90] sm:$0xff] %vm182, %v3350
        %3383 = vst.msk [vmem:[#allocation2 + $0x98] sm:$0xff] %vm182, %v3351
        %3384 = vst.msk [vmem:[#allocation2 + $0xa0] sm:$0xff] %vm182, %v3352
        %3385 = vst.msk [vmem:[#allocation2 + $0xa8] sm:$0xff] %vm182, %v3353
        %3386 = vst.msk [vmem:[#allocation2 + $0xb0] sm:$0xff] %vm182, %v3354
        %3387 = vst.msk [vmem:[#allocation2 + $0xb8] sm:$0xff] %vm182, %v3355
        %3388 = vst.msk [vmem:[#allocation2 + $0xc0] sm:$0xff] %vm182, %v3356
        %3389 = vst.msk [vmem:[#allocation2 + $0xc8] sm:$0xff] %vm182, %v3357
        %3390 = vst.msk [vmem:[#allocation2 + $0xd0] sm:$0xff] %vm182, %v3358
        %3391 = vst.msk [vmem:[#allocation2 + $0xd8] sm:$0xff] %vm182, %v3359
        %3392 = vst.msk [vmem:[#allocation2 + $0xe0] sm:$0xff] %vm182, %v3360
        %3393 = vst.msk [vmem:[#allocation2 + $0xe8] sm:$0xff] %vm182, %v3361
        %3394 = vst.msk [vmem:[#allocation2 + $0xf0] sm:$0xff] %vm182, %v3362
        %3395 = vst.msk [vmem:[#allocation2 + $0xf8] sm:$0xff] %vm182, %v3363
        %v3396 = vld [vmem:[%s2941 + $0x1] sm:$0xff]
        %v3397 = vld [vmem:[%s2941 + $0x9] sm:$0xff]
        %v3398 = vld [vmem:[%s2941 + $0x19] sm:$0xff]
        %v3399 = vld [vmem:[%s2941 + $0x21] sm:$0xff]
        %v3400 = vld [vmem:[%s2941 + $0x31] sm:$0xff]
        %v3401 = vld [vmem:[%s2941 + $0x39] sm:$0xff]
        %v3402 = vld [vmem:[%s2941 + $0x49] sm:$0xff]
        %v3403 = vld [vmem:[%s2941 + $0x51] sm:$0xff]
        %v3404 = vld [vmem:[%s2941 + $0x61] sm:$0xff]
        %v3405 = vld [vmem:[%s2941 + $0x69] sm:$0xff]
        %v3406 = vld [vmem:[%s2941 + $0x79] sm:$0xff]
        %v3407 = vld [vmem:[%s2941 + $0x81] sm:$0xff]
        %v3408 = vld [vmem:[%s2941 + $0x91] sm:$0xff]
        %v3409 = vld [vmem:[%s2941 + $0x99] sm:$0xff]
        %v3410 = vld [vmem:[%s2941 + $0xa9] sm:$0xff]
        %v3411 = vld [vmem:[%s2941 + $0xb1] sm:$0xff]
        %v3412 = vld [vmem:[%s2941 + $0xc1] sm:$0xff]
        %v3413 = vld [vmem:[%s2941 + $0xc9] sm:$0xff]
        %v3414 = vld [vmem:[%s2941 + $0xd9] sm:$0xff]
        %v3415 = vld [vmem:[%s2941 + $0xe1] sm:$0xff]
        %v3416 = vld [vmem:[%s2941 + $0xf1] sm:$0xff]
        %v3417 = vld [vmem:[%s2941 + $0xf9] sm:$0xff]
        %v3418 = vld [vmem:[%s2941 + $0x109] sm:$0xff]
        %v3419 = vld [vmem:[%s2941 + $0x111] sm:$0xff]
        %v3420 = vld [vmem:[%s2941 + $0x121] sm:$0xff]
        %v3421 = vld [vmem:[%s2941 + $0x129] sm:$0xff]
        %v3422 = vld [vmem:[%s2941 + $0x139] sm:$0xff]
        %v3423 = vld [vmem:[%s2941 + $0x141] sm:$0xff]
        %v3424 = vld [vmem:[%s2941 + $0x151] sm:$0xff]
        %v3425 = vld [vmem:[%s2941 + $0x159] sm:$0xff]
        %v3426 = vld [vmem:[%s2941 + $0x169] sm:$0xff]
        %v3427 = vld [vmem:[%s2941 + $0x171] sm:$0xff]
        %v3428 = vld [vmem:[#allocation2] sm:$0xff]
        %v3429 = vld [vmem:[#allocation2 + $0x8] sm:$0xff]
        %v3430 = vld [vmem:[#allocation2 + $0x10] sm:$0xff]
        %v3431 = vld [vmem:[#allocation2 + $0x18] sm:$0xff]
        %v3432 = vld [vmem:[#allocation2 + $0x20] sm:$0xff]
        %v3433 = vld [vmem:[#allocation2 + $0x28] sm:$0xff]
        %v3434 = vld [vmem:[#allocation2 + $0x30] sm:$0xff]
        %v3435 = vld [vmem:[#allocation2 + $0x38] sm:$0xff]
        %v3436 = vld [vmem:[#allocation2 + $0x40] sm:$0xff]
        %v3437 = vld [vmem:[#allocation2 + $0x48] sm:$0xff]
        %v3438 = vld [vmem:[#allocation2 + $0x50] sm:$0xff]
        %v3439 = vld [vmem:[#allocation2 + $0x58] sm:$0xff]
        %v3440 = vld [vmem:[#allocation2 + $0x60] sm:$0xff]
        %v3441 = vld [vmem:[#allocation2 + $0x68] sm:$0xff]
        %v3442 = vld [vmem:[#allocation2 + $0x70] sm:$0xff]
        %v3443 = vld [vmem:[#allocation2 + $0x78] sm:$0xff]
        %v3444 = vld [vmem:[#allocation2 + $0x80] sm:$0xff]
        %v3445 = vld [vmem:[#allocation2 + $0x88] sm:$0xff]
        %v3446 = vld [vmem:[#allocation2 + $0x90] sm:$0xff]
        %v3447 = vld [vmem:[#allocation2 + $0x98] sm:$0xff]
        %v3448 = vld [vmem:[#allocation2 + $0xa0] sm:$0xff]
        %v3449 = vld [vmem:[#allocation2 + $0xa8] sm:$0xff]
        %v3450 = vld [vmem:[#allocation2 + $0xb0] sm:$0xff]
        %v3451 = vld [vmem:[#allocation2 + $0xb8] sm:$0xff]
        %v3452 = vld [vmem:[#allocation2 + $0xc0] sm:$0xff]
        %v3453 = vld [vmem:[#allocation2 + $0xc8] sm:$0xff]
        %v3454 = vld [vmem:[#allocation2 + $0xd0] sm:$0xff]
        %v3455 = vld [vmem:[#allocation2 + $0xd8] sm:$0xff]
        %v3456 = vld [vmem:[#allocation2 + $0xe0] sm:$0xff]
        %v3457 = vld [vmem:[#allocation2 + $0xe8] sm:$0xff]
        %v3458 = vld [vmem:[#allocation2 + $0xf0] sm:$0xff]
        %v3459 = vld [vmem:[#allocation2 + $0xf8] sm:$0xff]
        %s3460 = scalar_lea.vmem %s1, 28
        %v3461 = vld [vmem:[%s3460] sm:$0xf]
        %v3463 = vsel %vm280, %v3396, 0
        %v3466 = vsel %vm280, %v3397, 0
        %v3469 = vsel %vm280, %v3398, 0
        %v3472 = vsel %vm280, %v3399, 0
        %v3475 = vsel %vm280, %v3400, 0
        %v3478 = vsel %vm280, %v3401, 0
        %v3481 = vsel %vm280, %v3402, 0
        %v3484 = vsel %vm280, %v3403, 0
        %v3487 = vsel %vm280, %v3404, 0
        %v3490 = vsel %vm280, %v3405, 0
        %v3493 = vsel %vm280, %v3406, 0
        %v3496 = vsel %vm280, %v3407, 0
        %v3499 = vsel %vm280, %v3408, 0
        %v3502 = vsel %vm280, %v3409, 0
        %v3505 = vsel %vm280, %v3410, 0
        %v3508 = vsel %vm280, %v3411, 0
        %v3511 = vsel %vm280, %v3412, 0
        %v3514 = vsel %vm280, %v3413, 0
        %v3517 = vsel %vm280, %v3414, 0
        %v3520 = vsel %vm280, %v3415, 0
        %v3523 = vsel %vm280, %v3416, 0
        %v3526 = vsel %vm280, %v3417, 0
        %v3529 = vsel %vm280, %v3418, 0
        %v3532 = vsel %vm280, %v3419, 0
        %v3535 = vsel %vm280, %v3420, 0
        %v3538 = vsel %vm280, %v3421, 0
        %v3541 = vsel %vm280, %v3422, 0
        %v3544 = vsel %vm280, %v3423, 0
        %v3547 = vsel %vm280, %v3424, 0
        %v3550 = vsel %vm280, %v3425, 0
        %v3553 = vsel %vm280, %v3426, 0
        %v3556 = vsel %vm280, %v3427, 0
        %v3559 = vsel %vm377, %v3461, 0
        %3561 = vmatprep.subr.mxu0 0.0
        %3562 = vmatpush1.msra.mxu0 %v3559
        %3563 = vmatprep.subr.mxu0 0.0
        %3564 = vmatpush1.msra.mxu0 0.0
        %3565 = vmatprep.subr.mxu0 0.0
        %3566 = vmatpush1.msra.mxu0 0.0
        %3567 = vmatprep.subr.mxu0 0.0
        %3568 = vmatpush1.msra.mxu0 0.0
        %3569 = vmatprep.subr.mxu0 0.0
        %3570 = vmatpush1.msra.mxu0 0.0
        %3571 = vmatprep.subr.mxu0 0.0
        %3572 = vmatpush1.msra.mxu0 0.0
        %3573 = vmatprep.subr.mxu0 0.0
        %3574 = vmatpush1.msra.mxu0 0.0
        %3575 = vmatprep.subr.mxu0 0.0
        %3576 = vmatpush1.msra.mxu0 0.0
        %3577 = vmatprep.subr.mxu0 0.0
        %3578 = vmatpush1.msra.mxu0 0.0
        %3579 = vmatprep.subr.mxu0 0.0
        %3580 = vmatpush1.msra.mxu0 0.0
        %3581 = vmatprep.subr.mxu0 0.0
        %3582 = vmatpush1.msra.mxu0 0.0
        %3583 = vmatprep.subr.mxu0 0.0
        %3584 = vmatpush1.msra.mxu0 0.0
        %3585 = vmatprep.subr.mxu0 0.0
        %3586 = vmatpush1.msra.mxu0 0.0
        %3587 = vmatprep.subr.mxu0 0.0
        %3588 = vmatpush1.msra.mxu0 0.0
        %3589 = vmatprep.subr.mxu0 0.0
        %3590 = vmatpush1.msra.mxu0 0.0
        %3591 = vmatprep.subr.mxu0 0.0
        %3592 = vmatpush1.msra.mxu0 0.0
        %3593 = vmatprep.subr.mxu0 0.0
        %3594 = vmatpush1.msra.mxu0 0.0
        %3595 = vmatprep.subr.mxu0 0.0
        %3596 = vmatpush1.msra.mxu0 0.0
        %3597 = vmatprep.subr.mxu0 0.0
        %3598 = vmatpush1.msra.mxu0 0.0
        %3599 = vmatprep.subr.mxu0 0.0
        %3600 = vmatpush1.msra.mxu0 0.0
        %3601 = vmatprep.subr.mxu0 0.0
        %3602 = vmatpush1.msra.mxu0 0.0
        %3603 = vmatprep.subr.mxu0 0.0
        %3604 = vmatpush1.msra.mxu0 0.0
        %3605 = vmatprep.subr.mxu0 0.0
        %3606 = vmatpush1.msra.mxu0 0.0
        %3607 = vmatprep.subr.mxu0 0.0
        %3608 = vmatpush1.msra.mxu0 0.0
        %3609 = vmatprep.subr.mxu0 0.0
        %3610 = vmatpush1.msra.mxu0 0.0
        %3611 = vmatprep.subr.mxu0 0.0
        %3612 = vmatpush1.msra.mxu0 0.0
        %3613 = vmatprep.subr.mxu0 0.0
        %3614 = vmatpush1.msra.mxu0 0.0
        %3615 = vmatprep.subr.mxu0 0.0
        %3616 = vmatpush1.msra.mxu0 0.0
        %3617 = vmatprep.subr.mxu0 0.0
        %3618 = vmatpush1.msra.mxu0 0.0
        %3619 = vmatprep.subr.mxu0 0.0
        %3620 = vmatpush1.msra.mxu0 0.0
        %3621 = vmatprep.subr.mxu0 0.0
        %3622 = vmatpush1.msra.mxu0 0.0
        %3623 = vmatprep.subr.mxu0 0.0
        %3624 = vmatpush1.msra.mxu0 0.0
        %3625 = vmatprep.mubr.f32.mxu0 0.0
        %3626 = vmatmul.mubr.f32.gmra.mrb[0].mxu0 %v3463
        %v3627 = vpop.f32.mrb[0].mxu0
        %v3628 = vadd.f32 0.0, %v3627
        %v3629 = vpop.f32.mrb[0].mxu0
        %3630 = vmatprep.mubr.f32.mxu0 0.0
        %3631 = vmatmul.mubr.f32.gmra.mrb[0].mxu0 %v3466
        %v3632 = vpop.f32.mrb[0].mxu0
        %v3633 = vadd.f32 0.0, %v3632
        %v3634 = vpop.f32.mrb[0].mxu0
        %3635 = vmatprep.mubr.f32.mxu0 0.0
        %3636 = vmatmul.mubr.f32.gmra.mrb[0].mxu0 %v3469
        %v3637 = vpop.f32.mrb[0].mxu0
        %v3638 = vadd.f32 0.0, %v3637
        %v3639 = vpop.f32.mrb[0].mxu0
        %3640 = vmatprep.mubr.f32.mxu0 0.0
        %3641 = vmatmul.mubr.f32.gmra.mrb[0].mxu0 %v3472
        %v3642 = vpop.f32.mrb[0].mxu0
        %v3643 = vadd.f32 0.0, %v3642
        %v3644 = vpop.f32.mrb[0].mxu0
        %3645 = vmatprep.mubr.f32.mxu0 0.0
        %3646 = vmatmul.mubr.f32.gmra.mrb[0].mxu0 %v3475
        %v3647 = vpop.f32.mrb[0].mxu0
        %v3648 = vadd.f32 0.0, %v3647
        %v3649 = vpop.f32.mrb[0].mxu0
        %3650 = vmatprep.mubr.f32.mxu0 0.0
        %3651 = vmatmul.mubr.f32.gmra.mrb[0].mxu0 %v3478
        %v3652 = vpop.f32.mrb[0].mxu0
        %v3653 = vadd.f32 0.0, %v3652
        %v3654 = vpop.f32.mrb[0].mxu0
        %3655 = vmatprep.mubr.f32.mxu0 0.0
        %3656 = vmatmul.mubr.f32.gmra.mrb[0].mxu0 %v3481
        %v3657 = vpop.f32.mrb[0].mxu0
        %v3658 = vadd.f32 0.0, %v3657
        %v3659 = vpop.f32.mrb[0].mxu0
        %3660 = vmatprep.mubr.f32.mxu0 0.0
        %3661 = vmatmul.mubr.f32.gmra.mrb[0].mxu0 %v3484
        %v3662 = vpop.f32.mrb[0].mxu0
        %v3663 = vadd.f32 0.0, %v3662
        %v3664 = vpop.f32.mrb[0].mxu0
        %3665 = vmatprep.mubr.f32.mxu0 0.0
        %3666 = vmatmul.mubr.f32.gmra.mrb[0].mxu0 %v3487
        %v3667 = vpop.f32.mrb[0].mxu0
        %v3668 = vadd.f32 0.0, %v3667
        %v3669 = vpop.f32.mrb[0].mxu0
        %3670 = vmatprep.mubr.f32.mxu0 0.0
        %3671 = vmatmul.mubr.f32.gmra.mrb[0].mxu0 %v3490
        %v3672 = vpop.f32.mrb[0].mxu0
        %v3673 = vadd.f32 0.0, %v3672
        %v3674 = vpop.f32.mrb[0].mxu0
        %3675 = vmatprep.mubr.f32.mxu0 0.0
        %3676 = vmatmul.mubr.f32.gmra.mrb[0].mxu0 %v3493
        %v3677 = vpop.f32.mrb[0].mxu0
        %v3678 = vadd.f32 0.0, %v3677
        %v3679 = vpop.f32.mrb[0].mxu0
        %3680 = vmatprep.mubr.f32.mxu0 0.0
        %3681 = vmatmul.mubr.f32.gmra.mrb[0].mxu0 %v3496
        %v3682 = vpop.f32.mrb[0].mxu0
        %v3683 = vadd.f32 0.0, %v3682
        %v3684 = vpop.f32.mrb[0].mxu0
        %3685 = vmatprep.mubr.f32.mxu0 0.0
        %3686 = vmatmul.mubr.f32.gmra.mrb[0].mxu0 %v3499
        %v3687 = vpop.f32.mrb[0].mxu0
        %v3688 = vadd.f32 0.0, %v3687
        %v3689 = vpop.f32.mrb[0].mxu0
        %3690 = vmatprep.mubr.f32.mxu0 0.0
        %3691 = vmatmul.mubr.f32.gmra.mrb[0].mxu0 %v3502
        %v3692 = vpop.f32.mrb[0].mxu0
        %v3693 = vadd.f32 0.0, %v3692
        %v3694 = vpop.f32.mrb[0].mxu0
        %3695 = vmatprep.mubr.f32.mxu0 0.0
        %3696 = vmatmul.mubr.f32.gmra.mrb[0].mxu0 %v3505
        %v3697 = vpop.f32.mrb[0].mxu0
        %v3698 = vadd.f32 0.0, %v3697
        %v3699 = vpop.f32.mrb[0].mxu0
        %3700 = vmatprep.mubr.f32.mxu0 0.0
        %3701 = vmatmul.mubr.f32.gmra.mrb[0].mxu0 %v3508
        %v3702 = vpop.f32.mrb[0].mxu0
        %v3703 = vadd.f32 0.0, %v3702
        %v3704 = vpop.f32.mrb[0].mxu0
        %3705 = vmatprep.mubr.f32.mxu0 0.0
        %3706 = vmatmul.mubr.f32.gmra.mrb[0].mxu0 %v3511
        %v3707 = vpop.f32.mrb[0].mxu0
        %v3708 = vadd.f32 0.0, %v3707
        %v3709 = vpop.f32.mrb[0].mxu0
        %3710 = vmatprep.mubr.f32.mxu0 0.0
        %3711 = vmatmul.mubr.f32.gmra.mrb[0].mxu0 %v3514
        %v3712 = vpop.f32.mrb[0].mxu0
        %v3713 = vadd.f32 0.0, %v3712
        %v3714 = vpop.f32.mrb[0].mxu0
        %3715 = vmatprep.mubr.f32.mxu0 0.0
        %3716 = vmatmul.mubr.f32.gmra.mrb[0].mxu0 %v3517
        %v3717 = vpop.f32.mrb[0].mxu0
        %v3718 = vadd.f32 0.0, %v3717
        %v3719 = vpop.f32.mrb[0].mxu0
        %3720 = vmatprep.mubr.f32.mxu0 0.0
        %3721 = vmatmul.mubr.f32.gmra.mrb[0].mxu0 %v3520
        %v3722 = vpop.f32.mrb[0].mxu0
        %v3723 = vadd.f32 0.0, %v3722
        %v3724 = vpop.f32.mrb[0].mxu0
        %3725 = vmatprep.mubr.f32.mxu0 0.0
        %3726 = vmatmul.mubr.f32.gmra.mrb[0].mxu0 %v3523
        %v3727 = vpop.f32.mrb[0].mxu0
        %v3728 = vadd.f32 0.0, %v3727
        %v3729 = vpop.f32.mrb[0].mxu0
        %3730 = vmatprep.mubr.f32.mxu0 0.0
        %3731 = vmatmul.mubr.f32.gmra.mrb[0].mxu0 %v3526
        %v3732 = vpop.f32.mrb[0].mxu0
        %v3733 = vadd.f32 0.0, %v3732
        %v3734 = vpop.f32.mrb[0].mxu0
        %3735 = vmatprep.mubr.f32.mxu0 0.0
        %3736 = vmatmul.mubr.f32.gmra.mrb[0].mxu0 %v3529
        %v3737 = vpop.f32.mrb[0].mxu0
        %v3738 = vadd.f32 0.0, %v3737
        %v3739 = vpop.f32.mrb[0].mxu0
        %3740 = vmatprep.mubr.f32.mxu0 0.0
        %3741 = vmatmul.mubr.f32.gmra.mrb[0].mxu0 %v3532
        %v3742 = vpop.f32.mrb[0].mxu0
        %v3743 = vadd.f32 0.0, %v3742
        %v3744 = vpop.f32.mrb[0].mxu0
        %3745 = vmatprep.mubr.f32.mxu0 0.0
        %3746 = vmatmul.mubr.f32.gmra.mrb[0].mxu0 %v3535
        %v3747 = vpop.f32.mrb[0].mxu0
        %v3748 = vadd.f32 0.0, %v3747
        %v3749 = vpop.f32.mrb[0].mxu0
        %3750 = vmatprep.mubr.f32.mxu0 0.0
        %3751 = vmatmul.mubr.f32.gmra.mrb[0].mxu0 %v3538
        %v3752 = vpop.f32.mrb[0].mxu0
        %v3753 = vadd.f32 0.0, %v3752
        %v3754 = vpop.f32.mrb[0].mxu0
        %3755 = vmatprep.mubr.f32.mxu0 0.0
        %3756 = vmatmul.mubr.f32.gmra.mrb[0].mxu0 %v3541
        %v3757 = vpop.f32.mrb[0].mxu0
        %v3758 = vadd.f32 0.0, %v3757
        %v3759 = vpop.f32.mrb[0].mxu0
        %3760 = vmatprep.mubr.f32.mxu0 0.0
        %3761 = vmatmul.mubr.f32.gmra.mrb[0].mxu0 %v3544
        %v3762 = vpop.f32.mrb[0].mxu0
        %v3763 = vadd.f32 0.0, %v3762
        %v3764 = vpop.f32.mrb[0].mxu0
        %3765 = vmatprep.mubr.f32.mxu0 0.0
        %3766 = vmatmul.mubr.f32.gmra.mrb[0].mxu0 %v3547
        %v3767 = vpop.f32.mrb[0].mxu0
        %v3768 = vadd.f32 0.0, %v3767
        %v3769 = vpop.f32.mrb[0].mxu0
        %3770 = vmatprep.mubr.f32.mxu0 0.0
        %3771 = vmatmul.mubr.f32.gmra.mrb[0].mxu0 %v3550
        %v3772 = vpop.f32.mrb[0].mxu0
        %v3773 = vadd.f32 0.0, %v3772
        %v3774 = vpop.f32.mrb[0].mxu0
        %3775 = vmatprep.mubr.f32.mxu0 0.0
        %3776 = vmatmul.mubr.f32.gmra.mrb[0].mxu0 %v3553
        %v3777 = vpop.f32.mrb[0].mxu0
        %v3778 = vadd.f32 0.0, %v3777
        %v3779 = vpop.f32.mrb[0].mxu0
        %3780 = vmatprep.mubr.f32.mxu0 0.0
        %3781 = vmatmul.mubr.f32.gmra.mrb[0].mxu0 %v3556
        %v3782 = vpop.f32.mrb[0].mxu0
        %v3783 = vadd.f32 0.0, %v3782
        %v3784 = vpop.f32.mrb[0].mxu0
        %3785 = vdwg.mxu0
        %v3786 = vadd.f32 %v3428, %v3628
        %v3787 = vadd.f32 %v3429, %v3633
        %v3788 = vadd.f32 %v3430, %v3638
        %v3789 = vadd.f32 %v3431, %v3643
        %v3790 = vadd.f32 %v3432, %v3648
        %v3791 = vadd.f32 %v3433, %v3653
        %v3792 = vadd.f32 %v3434, %v3658
        %v3793 = vadd.f32 %v3435, %v3663
        %v3794 = vadd.f32 %v3436, %v3668
        %v3795 = vadd.f32 %v3437, %v3673
        %v3796 = vadd.f32 %v3438, %v3678
        %v3797 = vadd.f32 %v3439, %v3683
        %v3798 = vadd.f32 %v3440, %v3688
        %v3799 = vadd.f32 %v3441, %v3693
        %v3800 = vadd.f32 %v3442, %v3698
        %v3801 = vadd.f32 %v3443, %v3703
        %v3802 = vadd.f32 %v3444, %v3708
        %v3803 = vadd.f32 %v3445, %v3713
        %v3804 = vadd.f32 %v3446, %v3718
        %v3805 = vadd.f32 %v3447, %v3723
        %v3806 = vadd.f32 %v3448, %v3728
        %v3807 = vadd.f32 %v3449, %v3733
        %v3808 = vadd.f32 %v3450, %v3738
        %v3809 = vadd.f32 %v3451, %v3743
        %v3810 = vadd.f32 %v3452, %v3748
        %v3811 = vadd.f32 %v3453, %v3753
        %v3812 = vadd.f32 %v3454, %v3758
        %v3813 = vadd.f32 %v3455, %v3763
        %v3814 = vadd.f32 %v3456, %v3768
        %v3815 = vadd.f32 %v3457, %v3773
        %v3816 = vadd.f32 %v3458, %v3778
        %v3817 = vadd.f32 %v3459, %v3783
        %3818 = vst.msk [vmem:[#allocation2] sm:$0xff] %vm182, %v3786
        %3819 = vst.msk [vmem:[#allocation2 + $0x8] sm:$0xff] %vm182, %v3787
        %3820 = vst.msk [vmem:[#allocation2 + $0x10] sm:$0xff] %vm182, %v3788
        %3821 = vst.msk [vmem:[#allocation2 + $0x18] sm:$0xff] %vm182, %v3789
        %3822 = vst.msk [vmem:[#allocation2 + $0x20] sm:$0xff] %vm182, %v3790
        %3823 = vst.msk [vmem:[#allocation2 + $0x28] sm:$0xff] %vm182, %v3791
        %3824 = vst.msk [vmem:[#allocation2 + $0x30] sm:$0xff] %vm182, %v3792
        %3825 = vst.msk [vmem:[#allocation2 + $0x38] sm:$0xff] %vm182, %v3793
        %3826 = vst.msk [vmem:[#allocation2 + $0x40] sm:$0xff] %vm182, %v3794
        %3827 = vst.msk [vmem:[#allocation2 + $0x48] sm:$0xff] %vm182, %v3795
        %3828 = vst.msk [vmem:[#allocation2 + $0x50] sm:$0xff] %vm182, %v3796
        %3829 = vst.msk [vmem:[#allocation2 + $0x58] sm:$0xff] %vm182, %v3797
        %3830 = vst.msk [vmem:[#allocation2 + $0x60] sm:$0xff] %vm182, %v3798
        %3831 = vst.msk [vmem:[#allocation2 + $0x68] sm:$0xff] %vm182, %v3799
        %3832 = vst.msk [vmem:[#allocation2 + $0x70] sm:$0xff] %vm182, %v3800
        %3833 = vst.msk [vmem:[#allocation2 + $0x78] sm:$0xff] %vm182, %v3801
        %3834 = vst.msk [vmem:[#allocation2 + $0x80] sm:$0xff] %vm182, %v3802
        %3835 = vst.msk [vmem:[#allocation2 + $0x88] sm:$0xff] %vm182, %v3803
        %3836 = vst.msk [vmem:[#allocation2 + $0x90] sm:$0xff] %vm182, %v3804
        %3837 = vst.msk [vmem:[#allocation2 + $0x98] sm:$0xff] %vm182, %v3805
        %3838 = vst.msk [vmem:[#allocation2 + $0xa0] sm:$0xff] %vm182, %v3806
        %3839 = vst.msk [vmem:[#allocation2 + $0xa8] sm:$0xff] %vm182, %v3807
        %3840 = vst.msk [vmem:[#allocation2 + $0xb0] sm:$0xff] %vm182, %v3808
        %3841 = vst.msk [vmem:[#allocation2 + $0xb8] sm:$0xff] %vm182, %v3809
        %3842 = vst.msk [vmem:[#allocation2 + $0xc0] sm:$0xff] %vm182, %v3810
        %3843 = vst.msk [vmem:[#allocation2 + $0xc8] sm:$0xff] %vm182, %v3811
        %3844 = vst.msk [vmem:[#allocation2 + $0xd0] sm:$0xff] %vm182, %v3812
        %3845 = vst.msk [vmem:[#allocation2 + $0xd8] sm:$0xff] %vm182, %v3813
        %3846 = vst.msk [vmem:[#allocation2 + $0xe0] sm:$0xff] %vm182, %v3814
        %3847 = vst.msk [vmem:[#allocation2 + $0xe8] sm:$0xff] %vm182, %v3815
        %3848 = vst.msk [vmem:[#allocation2 + $0xf0] sm:$0xff] %vm182, %v3816
        %3849 = vst.msk [vmem:[#allocation2 + $0xf8] sm:$0xff] %vm182, %v3817
        %v3850 = vld [vmem:[%s2941 + $0x2] sm:$0xff]
        %v3851 = vld [vmem:[%s2941 + $0xa] sm:$0xff]
        %v3852 = vld [vmem:[%s2941 + $0x1a] sm:$0xff]
        %v3853 = vld [vmem:[%s2941 + $0x22] sm:$0xff]
        %v3854 = vld [vmem:[%s2941 + $0x32] sm:$0xff]
        %v3855 = vld [vmem:[%s2941 + $0x3a] sm:$0xff]
        %v3856 = vld [vmem:[%s2941 + $0x4a] sm:$0xff]
        %v3857 = vld [vmem:[%s2941 + $0x52] sm:$0xff]
        %v3858 = vld [vmem:[%s2941 + $0x62] sm:$0xff]
        %v3859 = vld [vmem:[%s2941 + $0x6a] sm:$0xff]
        %v3860 = vld [vmem:[%s2941 + $0x7a] sm:$0xff]
        %v3861 = vld [vmem:[%s2941 + $0x82] sm:$0xff]
        %v3862 = vld [vmem:[%s2941 + $0x92] sm:$0xff]
        %v3863 = vld [vmem:[%s2941 + $0x9a] sm:$0xff]
        %v3864 = vld [vmem:[%s2941 + $0xaa] sm:$0xff]
        %v3865 = vld [vmem:[%s2941 + $0xb2] sm:$0xff]
        %v3866 = vld [vmem:[%s2941 + $0xc2] sm:$0xff]
        %v3867 = vld [vmem:[%s2941 + $0xca] sm:$0xff]
        %v3868 = vld [vmem:[%s2941 + $0xda] sm:$0xff]
        %v3869 = vld [vmem:[%s2941 + $0xe2] sm:$0xff]
        %v3870 = vld [vmem:[%s2941 + $0xf2] sm:$0xff]
        %v3871 = vld [vmem:[%s2941 + $0xfa] sm:$0xff]
        %v3872 = vld [vmem:[%s2941 + $0x10a] sm:$0xff]
        %v3873 = vld [vmem:[%s2941 + $0x112] sm:$0xff]
        %v3874 = vld [vmem:[%s2941 + $0x122] sm:$0xff]
        %v3875 = vld [vmem:[%s2941 + $0x12a] sm:$0xff]
        %v3876 = vld [vmem:[%s2941 + $0x13a] sm:$0xff]
        %v3877 = vld [vmem:[%s2941 + $0x142] sm:$0xff]
        %v3878 = vld [vmem:[%s2941 + $0x152] sm:$0xff]
        %v3879 = vld [vmem:[%s2941 + $0x15a] sm:$0xff]
        %v3880 = vld [vmem:[%s2941 + $0x16a] sm:$0xff]
        %v3881 = vld [vmem:[%s2941 + $0x172] sm:$0xff]
        %v3882 = vld [vmem:[#allocation2] sm:$0xff]
        %v3883 = vld [vmem:[#allocation2 + $0x8] sm:$0xff]
        %v3884 = vld [vmem:[#allocation2 + $0x10] sm:$0xff]
        %v3885 = vld [vmem:[#allocation2 + $0x18] sm:$0xff]
        %v3886 = vld [vmem:[#allocation2 + $0x20] sm:$0xff]
        %v3887 = vld [vmem:[#allocation2 + $0x28] sm:$0xff]
        %v3888 = vld [vmem:[#allocation2 + $0x30] sm:$0xff]
        %v3889 = vld [vmem:[#allocation2 + $0x38] sm:$0xff]
        %v3890 = vld [vmem:[#allocation2 + $0x40] sm:$0xff]
        %v3891 = vld [vmem:[#allocation2 + $0x48] sm:$0xff]
        %v3892 = vld [vmem:[#allocation2 + $0x50] sm:$0xff]
        %v3893 = vld [vmem:[#allocation2 + $0x58] sm:$0xff]
        %v3894 = vld [vmem:[#allocation2 + $0x60] sm:$0xff]
        %v3895 = vld [vmem:[#allocation2 + $0x68] sm:$0xff]
        %v3896 = vld [vmem:[#allocation2 + $0x70] sm:$0xff]
        %v3897 = vld [vmem:[#allocation2 + $0x78] sm:$0xff]
        %v3898 = vld [vmem:[#allocation2 + $0x80] sm:$0xff]
        %v3899 = vld [vmem:[#allocation2 + $0x88] sm:$0xff]
        %v3900 = vld [vmem:[#allocation2 + $0x90] sm:$0xff]
        %v3901 = vld [vmem:[#allocation2 + $0x98] sm:$0xff]
        %v3902 = vld [vmem:[#allocation2 + $0xa0] sm:$0xff]
        %v3903 = vld [vmem:[#allocation2 + $0xa8] sm:$0xff]
        %v3904 = vld [vmem:[#allocation2 + $0xb0] sm:$0xff]
        %v3905 = vld [vmem:[#allocation2 + $0xb8] sm:$0xff]
        %v3906 = vld [vmem:[#allocation2 + $0xc0] sm:$0xff]
        %v3907 = vld [vmem:[#allocation2 + $0xc8] sm:$0xff]
        %v3908 = vld [vmem:[#allocation2 + $0xd0] sm:$0xff]
        %v3909 = vld [vmem:[#allocation2 + $0xd8] sm:$0xff]
        %v3910 = vld [vmem:[#allocation2 + $0xe0] sm:$0xff]
        %v3911 = vld [vmem:[#allocation2 + $0xe8] sm:$0xff]
        %v3912 = vld [vmem:[#allocation2 + $0xf0] sm:$0xff]
        %v3913 = vld [vmem:[#allocation2 + $0xf8] sm:$0xff]
        %s3914 = scalar_lea.vmem %s1, 32
        %v3915 = vld [vmem:[%s3914] sm:$0xf]
        %v3917 = vsel %vm280, %v3850, 0
        %v3920 = vsel %vm280, %v3851, 0
        %v3923 = vsel %vm280, %v3852, 0
        %v3926 = vsel %vm280, %v3853, 0
        %v3929 = vsel %vm280, %v3854, 0
        %v3932 = vsel %vm280, %v3855, 0
        %v3935 = vsel %vm280, %v3856, 0
        %v3938 = vsel %vm280, %v3857, 0
        %v3941 = vsel %vm280, %v3858, 0
        %v3944 = vsel %vm280, %v3859, 0
        %v3947 = vsel %vm280, %v3860, 0
        %v3950 = vsel %vm280, %v3861, 0
        %v3953 = vsel %vm280, %v3862, 0
        %v3956 = vsel %vm280, %v3863, 0
        %v3959 = vsel %vm280, %v3864, 0
        %v3962 = vsel %vm280, %v3865, 0
        %v3965 = vsel %vm280, %v3866, 0
        %v3968 = vsel %vm280, %v3867, 0
        %v3971 = vsel %vm280, %v3868, 0
        %v3974 = vsel %vm280, %v3869, 0
        %v3977 = vsel %vm280, %v3870, 0
        %v3980 = vsel %vm280, %v3871, 0
        %v3983 = vsel %vm280, %v3872, 0
        %v3986 = vsel %vm280, %v3873, 0
        %v3989 = vsel %vm280, %v3874, 0
        %v3992 = vsel %vm280, %v3875, 0
        %v3995 = vsel %vm280, %v3876, 0
        %v3998 = vsel %vm280, %v3877, 0
        %v4001 = vsel %vm280, %v3878, 0
        %v4004 = vsel %vm280, %v3879, 0
        %v4007 = vsel %vm280, %v3880, 0
        %v4010 = vsel %vm280, %v3881, 0
        %v4013 = vsel %vm377, %v3915, 0
        %4015 = vmatprep.subr.mxu0 0.0
        %4016 = vmatpush1.msra.mxu0 %v4013
        %4017 = vmatprep.subr.mxu0 0.0
        %4018 = vmatpush1.msra.mxu0 0.0
        %4019 = vmatprep.subr.mxu0 0.0
        %4020 = vmatpush1.msra.mxu0 0.0
        %4021 = vmatprep.subr.mxu0 0.0
        %4022 = vmatpush1.msra.mxu0 0.0
        %4023 = vmatprep.subr.mxu0 0.0
        %4024 = vmatpush1.msra.mxu0 0.0
        %4025 = vmatprep.subr.mxu0 0.0
        %4026 = vmatpush1.msra.mxu0 0.0
        %4027 = vmatprep.subr.mxu0 0.0
        %4028 = vmatpush1.msra.mxu0 0.0
        %4029 = vmatprep.subr.mxu0 0.0
        %4030 = vmatpush1.msra.mxu0 0.0
        %4031 = vmatprep.subr.mxu0 0.0
        %4032 = vmatpush1.msra.mxu0 0.0
        %4033 = vmatprep.subr.mxu0 0.0
        %4034 = vmatpush1.msra.mxu0 0.0
        %4035 = vmatprep.subr.mxu0 0.0
        %4036 = vmatpush1.msra.mxu0 0.0
        %4037 = vmatprep.subr.mxu0 0.0
        %4038 = vmatpush1.msra.mxu0 0.0
        %4039 = vmatprep.subr.mxu0 0.0
        %4040 = vmatpush1.msra.mxu0 0.0
        %4041 = vmatprep.subr.mxu0 0.0
        %4042 = vmatpush1.msra.mxu0 0.0
        %4043 = vmatprep.subr.mxu0 0.0
        %4044 = vmatpush1.msra.mxu0 0.0
        %4045 = vmatprep.subr.mxu0 0.0
        %4046 = vmatpush1.msra.mxu0 0.0
        %4047 = vmatprep.subr.mxu0 0.0
        %4048 = vmatpush1.msra.mxu0 0.0
        %4049 = vmatprep.subr.mxu0 0.0
        %4050 = vmatpush1.msra.mxu0 0.0
        %4051 = vmatprep.subr.mxu0 0.0
        %4052 = vmatpush1.msra.mxu0 0.0
        %4053 = vmatprep.subr.mxu0 0.0
        %4054 = vmatpush1.msra.mxu0 0.0
        %4055 = vmatprep.subr.mxu0 0.0
        %4056 = vmatpush1.msra.mxu0 0.0
        %4057 = vmatprep.subr.mxu0 0.0
        %4058 = vmatpush1.msra.mxu0 0.0
        %4059 = vmatprep.subr.mxu0 0.0
        %4060 = vmatpush1.msra.mxu0 0.0
        %4061 = vmatprep.subr.mxu0 0.0
        %4062 = vmatpush1.msra.mxu0 0.0
        %4063 = vmatprep.subr.mxu0 0.0
        %4064 = vmatpush1.msra.mxu0 0.0
        %4065 = vmatprep.subr.mxu0 0.0
        %4066 = vmatpush1.msra.mxu0 0.0
        %4067 = vmatprep.subr.mxu0 0.0
        %4068 = vmatpush1.msra.mxu0 0.0
        %4069 = vmatprep.subr.mxu0 0.0
        %4070 = vmatpush1.msra.mxu0 0.0
        %4071 = vmatprep.subr.mxu0 0.0
        %4072 = vmatpush1.msra.mxu0 0.0
        %4073 = vmatprep.subr.mxu0 0.0
        %4074 = vmatpush1.msra.mxu0 0.0
        %4075 = vmatprep.subr.mxu0 0.0
        %4076 = vmatpush1.msra.mxu0 0.0
        %4077 = vmatprep.subr.mxu0 0.0
        %4078 = vmatpush1.msra.mxu0 0.0
        %4079 = vmatprep.mubr.f32.mxu0 0.0
        %4080 = vmatmul.mubr.f32.gmra.mrb[0].mxu0 %v3917
        %v4081 = vpop.f32.mrb[0].mxu0
        %v4082 = vadd.f32 0.0, %v4081
        %v4083 = vpop.f32.mrb[0].mxu0
        %4084 = vmatprep.mubr.f32.mxu0 0.0
        %4085 = vmatmul.mubr.f32.gmra.mrb[0].mxu0 %v3920
        %v4086 = vpop.f32.mrb[0].mxu0
        %v4087 = vadd.f32 0.0, %v4086
        %v4088 = vpop.f32.mrb[0].mxu0
        %4089 = vmatprep.mubr.f32.mxu0 0.0
        %4090 = vmatmul.mubr.f32.gmra.mrb[0].mxu0 %v3923
        %v4091 = vpop.f32.mrb[0].mxu0
        %v4092 = vadd.f32 0.0, %v4091
        %v4093 = vpop.f32.mrb[0].mxu0
        %4094 = vmatprep.mubr.f32.mxu0 0.0
        %4095 = vmatmul.mubr.f32.gmra.mrb[0].mxu0 %v3926
        %v4096 = vpop.f32.mrb[0].mxu0
        %v4097 = vadd.f32 0.0, %v4096
        %v4098 = vpop.f32.mrb[0].mxu0
        %4099 = vmatprep.mubr.f32.mxu0 0.0
        %4100 = vmatmul.mubr.f32.gmra.mrb[0].mxu0 %v3929
        %v4101 = vpop.f32.mrb[0].mxu0
        %v4102 = vadd.f32 0.0, %v4101
        %v4103 = vpop.f32.mrb[0].mxu0
        %4104 = vmatprep.mubr.f32.mxu0 0.0
        %4105 = vmatmul.mubr.f32.gmra.mrb[0].mxu0 %v3932
        %v4106 = vpop.f32.mrb[0].mxu0
        %v4107 = vadd.f32 0.0, %v4106
        %v4108 = vpop.f32.mrb[0].mxu0
        %4109 = vmatprep.mubr.f32.mxu0 0.0
        %4110 = vmatmul.mubr.f32.gmra.mrb[0].mxu0 %v3935
        %v4111 = vpop.f32.mrb[0].mxu0
        %v4112 = vadd.f32 0.0, %v4111
        %v4113 = vpop.f32.mrb[0].mxu0
        %4114 = vmatprep.mubr.f32.mxu0 0.0
        %4115 = vmatmul.mubr.f32.gmra.mrb[0].mxu0 %v3938
        %v4116 = vpop.f32.mrb[0].mxu0
        %v4117 = vadd.f32 0.0, %v4116
        %v4118 = vpop.f32.mrb[0].mxu0
        %4119 = vmatprep.mubr.f32.mxu0 0.0
        %4120 = vmatmul.mubr.f32.gmra.mrb[0].mxu0 %v3941
        %v4121 = vpop.f32.mrb[0].mxu0
        %v4122 = vadd.f32 0.0, %v4121
        %v4123 = vpop.f32.mrb[0].mxu0
        %4124 = vmatprep.mubr.f32.mxu0 0.0
        %4125 = vmatmul.mubr.f32.gmra.mrb[0].mxu0 %v3944
        %v4126 = vpop.f32.mrb[0].mxu0
        %v4127 = vadd.f32 0.0, %v4126
        %v4128 = vpop.f32.mrb[0].mxu0
        %4129 = vmatprep.mubr.f32.mxu0 0.0
        %4130 = vmatmul.mubr.f32.gmra.mrb[0].mxu0 %v3947
        %v4131 = vpop.f32.mrb[0].mxu0
        %v4132 = vadd.f32 0.0, %v4131
        %v4133 = vpop.f32.mrb[0].mxu0
        %4134 = vmatprep.mubr.f32.mxu0 0.0
        %4135 = vmatmul.mubr.f32.gmra.mrb[0].mxu0 %v3950
        %v4136 = vpop.f32.mrb[0].mxu0
        %v4137 = vadd.f32 0.0, %v4136
        %v4138 = vpop.f32.mrb[0].mxu0
        %4139 = vmatprep.mubr.f32.mxu0 0.0
        %4140 = vmatmul.mubr.f32.gmra.mrb[0].mxu0 %v3953
        %v4141 = vpop.f32.mrb[0].mxu0
        %v4142 = vadd.f32 0.0, %v4141
        %v4143 = vpop.f32.mrb[0].mxu0
        %4144 = vmatprep.mubr.f32.mxu0 0.0
        %4145 = vmatmul.mubr.f32.gmra.mrb[0].mxu0 %v3956
        %v4146 = vpop.f32.mrb[0].mxu0
        %v4147 = vadd.f32 0.0, %v4146
        %v4148 = vpop.f32.mrb[0].mxu0
        %4149 = vmatprep.mubr.f32.mxu0 0.0
        %4150 = vmatmul.mubr.f32.gmra.mrb[0].mxu0 %v3959
        %v4151 = vpop.f32.mrb[0].mxu0
        %v4152 = vadd.f32 0.0, %v4151
        %v4153 = vpop.f32.mrb[0].mxu0
        %4154 = vmatprep.mubr.f32.mxu0 0.0
        %4155 = vmatmul.mubr.f32.gmra.mrb[0].mxu0 %v3962
        %v4156 = vpop.f32.mrb[0].mxu0
        %v4157 = vadd.f32 0.0, %v4156
        %v4158 = vpop.f32.mrb[0].mxu0
        %4159 = vmatprep.mubr.f32.mxu0 0.0
        %4160 = vmatmul.mubr.f32.gmra.mrb[0].mxu0 %v3965
        %v4161 = vpop.f32.mrb[0].mxu0
        %v4162 = vadd.f32 0.0, %v4161
        %v4163 = vpop.f32.mrb[0].mxu0
        %4164 = vmatprep.mubr.f32.mxu0 0.0
        %4165 = vmatmul.mubr.f32.gmra.mrb[0].mxu0 %v3968
        %v4166 = vpop.f32.mrb[0].mxu0
        %v4167 = vadd.f32 0.0, %v4166
        %v4168 = vpop.f32.mrb[0].mxu0
        %4169 = vmatprep.mubr.f32.mxu0 0.0
        %4170 = vmatmul.mubr.f32.gmra.mrb[0].mxu0 %v3971
        %v4171 = vpop.f32.mrb[0].mxu0
        %v4172 = vadd.f32 0.0, %v4171
        %v4173 = vpop.f32.mrb[0].mxu0
        %4174 = vmatprep.mubr.f32.mxu0 0.0
        %4175 = vmatmul.mubr.f32.gmra.mrb[0].mxu0 %v3974
        %v4176 = vpop.f32.mrb[0].mxu0
        %v4177 = vadd.f32 0.0, %v4176
        %v4178 = vpop.f32.mrb[0].mxu0
        %4179 = vmatprep.mubr.f32.mxu0 0.0
        %4180 = vmatmul.mubr.f32.gmra.mrb[0].mxu0 %v3977
        %v4181 = vpop.f32.mrb[0].mxu0
        %v4182 = vadd.f32 0.0, %v4181
        %v4183 = vpop.f32.mrb[0].mxu0
        %4184 = vmatprep.mubr.f32.mxu0 0.0
        %4185 = vmatmul.mubr.f32.gmra.mrb[0].mxu0 %v3980
        %v4186 = vpop.f32.mrb[0].mxu0
        %v4187 = vadd.f32 0.0, %v4186
        %v4188 = vpop.f32.mrb[0].mxu0
        %4189 = vmatprep.mubr.f32.mxu0 0.0
        %4190 = vmatmul.mubr.f32.gmra.mrb[0].mxu0 %v3983
        %v4191 = vpop.f32.mrb[0].mxu0
        %v4192 = vadd.f32 0.0, %v4191
        %v4193 = vpop.f32.mrb[0].mxu0
        %4194 = vmatprep.mubr.f32.mxu0 0.0
        %4195 = vmatmul.mubr.f32.gmra.mrb[0].mxu0 %v3986
        %v4196 = vpop.f32.mrb[0].mxu0
        %v4197 = vadd.f32 0.0, %v4196
        %v4198 = vpop.f32.mrb[0].mxu0
        %4199 = vmatprep.mubr.f32.mxu0 0.0
        %4200 = vmatmul.mubr.f32.gmra.mrb[0].mxu0 %v3989
        %v4201 = vpop.f32.mrb[0].mxu0
        %v4202 = vadd.f32 0.0, %v4201
        %v4203 = vpop.f32.mrb[0].mxu0
        %4204 = vmatprep.mubr.f32.mxu0 0.0
        %4205 = vmatmul.mubr.f32.gmra.mrb[0].mxu0 %v3992
        %v4206 = vpop.f32.mrb[0].mxu0
        %v4207 = vadd.f32 0.0, %v4206
        %v4208 = vpop.f32.mrb[0].mxu0
        %4209 = vmatprep.mubr.f32.mxu0 0.0
        %4210 = vmatmul.mubr.f32.gmra.mrb[0].mxu0 %v3995
        %v4211 = vpop.f32.mrb[0].mxu0
        %v4212 = vadd.f32 0.0, %v4211
        %v4213 = vpop.f32.mrb[0].mxu0
        %4214 = vmatprep.mubr.f32.mxu0 0.0
        %4215 = vmatmul.mubr.f32.gmra.mrb[0].mxu0 %v3998
        %v4216 = vpop.f32.mrb[0].mxu0
        %v4217 = vadd.f32 0.0, %v4216
        %v4218 = vpop.f32.mrb[0].mxu0
        %4219 = vmatprep.mubr.f32.mxu0 0.0
        %4220 = vmatmul.mubr.f32.gmra.mrb[0].mxu0 %v4001
        %v4221 = vpop.f32.mrb[0].mxu0
        %v4222 = vadd.f32 0.0, %v4221
        %v4223 = vpop.f32.mrb[0].mxu0
        %4224 = vmatprep.mubr.f32.mxu0 0.0
        %4225 = vmatmul.mubr.f32.gmra.mrb[0].mxu0 %v4004
        %v4226 = vpop.f32.mrb[0].mxu0
        %v4227 = vadd.f32 0.0, %v4226
        %v4228 = vpop.f32.mrb[0].mxu0
        %4229 = vmatprep.mubr.f32.mxu0 0.0
        %4230 = vmatmul.mubr.f32.gmra.mrb[0].mxu0 %v4007
        %v4231 = vpop.f32.mrb[0].mxu0
        %v4232 = vadd.f32 0.0, %v4231
        %v4233 = vpop.f32.mrb[0].mxu0
        %4234 = vmatprep.mubr.f32.mxu0 0.0
        %4235 = vmatmul.mubr.f32.gmra.mrb[0].mxu0 %v4010
        %v4236 = vpop.f32.mrb[0].mxu0
        %v4237 = vadd.f32 0.0, %v4236
        %v4238 = vpop.f32.mrb[0].mxu0
        %4239 = vdwg.mxu0
        %v4240 = vadd.f32 %v3882, %v4082
        %v4241 = vadd.f32 %v3883, %v4087
        %v4242 = vadd.f32 %v3884, %v4092
        %v4243 = vadd.f32 %v3885, %v4097
        %v4244 = vadd.f32 %v3886, %v4102
        %v4245 = vadd.f32 %v3887, %v4107
        %v4246 = vadd.f32 %v3888, %v4112
        %v4247 = vadd.f32 %v3889, %v4117
        %v4248 = vadd.f32 %v3890, %v4122
        %v4249 = vadd.f32 %v3891, %v4127
        %v4250 = vadd.f32 %v3892, %v4132
        %v4251 = vadd.f32 %v3893, %v4137
        %v4252 = vadd.f32 %v3894, %v4142
        %v4253 = vadd.f32 %v3895, %v4147
        %v4254 = vadd.f32 %v3896, %v4152
        %v4255 = vadd.f32 %v3897, %v4157
        %v4256 = vadd.f32 %v3898, %v4162
        %v4257 = vadd.f32 %v3899, %v4167
        %v4258 = vadd.f32 %v3900, %v4172
        %v4259 = vadd.f32 %v3901, %v4177
        %v4260 = vadd.f32 %v3902, %v4182
        %v4261 = vadd.f32 %v3903, %v4187
        %v4262 = vadd.f32 %v3904, %v4192
        %v4263 = vadd.f32 %v3905, %v4197
        %v4264 = vadd.f32 %v3906, %v4202
        %v4265 = vadd.f32 %v3907, %v4207
        %v4266 = vadd.f32 %v3908, %v4212
        %v4267 = vadd.f32 %v3909, %v4217
        %v4268 = vadd.f32 %v3910, %v4222
        %v4269 = vadd.f32 %v3911, %v4227
        %v4270 = vadd.f32 %v3912, %v4232
        %v4271 = vadd.f32 %v3913, %v4237
        %4272 = vst.msk [vmem:[#allocation2] sm:$0xff] %vm182, %v4240
        %4273 = vst.msk [vmem:[#allocation2 + $0x8] sm:$0xff] %vm182, %v4241
        %4274 = vst.msk [vmem:[#allocation2 + $0x10] sm:$0xff] %vm182, %v4242
        %4275 = vst.msk [vmem:[#allocation2 + $0x18] sm:$0xff] %vm182, %v4243
        %4276 = vst.msk [vmem:[#allocation2 + $0x20] sm:$0xff] %vm182, %v4244
        %4277 = vst.msk [vmem:[#allocation2 + $0x28] sm:$0xff] %vm182, %v4245
        %4278 = vst.msk [vmem:[#allocation2 + $0x30] sm:$0xff] %vm182, %v4246
        %4279 = vst.msk [vmem:[#allocation2 + $0x38] sm:$0xff] %vm182, %v4247
        %4280 = vst.msk [vmem:[#allocation2 + $0x40] sm:$0xff] %vm182, %v4248
        %4281 = vst.msk [vmem:[#allocation2 + $0x48] sm:$0xff] %vm182, %v4249
        %4282 = vst.msk [vmem:[#allocation2 + $0x50] sm:$0xff] %vm182, %v4250
        %4283 = vst.msk [vmem:[#allocation2 + $0x58] sm:$0xff] %vm182, %v4251
        %4284 = vst.msk [vmem:[#allocation2 + $0x60] sm:$0xff] %vm182, %v4252
        %4285 = vst.msk [vmem:[#allocation2 + $0x68] sm:$0xff] %vm182, %v4253
        %4286 = vst.msk [vmem:[#allocation2 + $0x70] sm:$0xff] %vm182, %v4254
        %4287 = vst.msk [vmem:[#allocation2 + $0x78] sm:$0xff] %vm182, %v4255
        %4288 = vst.msk [vmem:[#allocation2 + $0x80] sm:$0xff] %vm182, %v4256
        %4289 = vst.msk [vmem:[#allocation2 + $0x88] sm:$0xff] %vm182, %v4257
        %4290 = vst.msk [vmem:[#allocation2 + $0x90] sm:$0xff] %vm182, %v4258
        %4291 = vst.msk [vmem:[#allocation2 + $0x98] sm:$0xff] %vm182, %v4259
        %4292 = vst.msk [vmem:[#allocation2 + $0xa0] sm:$0xff] %vm182, %v4260
        %4293 = vst.msk [vmem:[#allocation2 + $0xa8] sm:$0xff] %vm182, %v4261
        %4294 = vst.msk [vmem:[#allocation2 + $0xb0] sm:$0xff] %vm182, %v4262
        %4295 = vst.msk [vmem:[#allocation2 + $0xb8] sm:$0xff] %vm182, %v4263
        %4296 = vst.msk [vmem:[#allocation2 + $0xc0] sm:$0xff] %vm182, %v4264
        %4297 = vst.msk [vmem:[#allocation2 + $0xc8] sm:$0xff] %vm182, %v4265
        %4298 = vst.msk [vmem:[#allocation2 + $0xd0] sm:$0xff] %vm182, %v4266
        %4299 = vst.msk [vmem:[#allocation2 + $0xd8] sm:$0xff] %vm182, %v4267
        %4300 = vst.msk [vmem:[#allocation2 + $0xe0] sm:$0xff] %vm182, %v4268
        %4301 = vst.msk [vmem:[#allocation2 + $0xe8] sm:$0xff] %vm182, %v4269
        %4302 = vst.msk [vmem:[#allocation2 + $0xf0] sm:$0xff] %vm182, %v4270
        %4303 = vst.msk [vmem:[#allocation2 + $0xf8] sm:$0xff] %vm182, %v4271
        %v4304 = vld [vmem:[#allocation2] sm:$0xff]
        %v4305 = vld [vmem:[#allocation2 + $0x8] sm:$0xff]
        %v4306 = vld [vmem:[#allocation2 + $0x10] sm:$0xff]
        %v4307 = vld [vmem:[#allocation2 + $0x18] sm:$0xff]
        %v4308 = vld [vmem:[#allocation2 + $0x20] sm:$0xff]
        %v4309 = vld [vmem:[#allocation2 + $0x28] sm:$0xff]
        %v4310 = vld [vmem:[#allocation2 + $0x30] sm:$0xff]
        %v4311 = vld [vmem:[#allocation2 + $0x38] sm:$0xff]
        %v4312 = vld [vmem:[#allocation2 + $0x40] sm:$0xff]
        %v4313 = vld [vmem:[#allocation2 + $0x48] sm:$0xff]
        %v4314 = vld [vmem:[#allocation2 + $0x50] sm:$0xff]
        %v4315 = vld [vmem:[#allocation2 + $0x58] sm:$0xff]
        %v4316 = vld [vmem:[#allocation2 + $0x60] sm:$0xff]
        %v4317 = vld [vmem:[#allocation2 + $0x68] sm:$0xff]
        %v4318 = vld [vmem:[#allocation2 + $0x70] sm:$0xff]
        %v4319 = vld [vmem:[#allocation2 + $0x78] sm:$0xff]
        %v4320 = vld [vmem:[#allocation2 + $0x80] sm:$0xff]
        %v4321 = vld [vmem:[#allocation2 + $0x88] sm:$0xff]
        %v4322 = vld [vmem:[#allocation2 + $0x90] sm:$0xff]
        %v4323 = vld [vmem:[#allocation2 + $0x98] sm:$0xff]
        %v4324 = vld [vmem:[#allocation2 + $0xa0] sm:$0xff]
        %v4325 = vld [vmem:[#allocation2 + $0xa8] sm:$0xff]
        %v4326 = vld [vmem:[#allocation2 + $0xb0] sm:$0xff]
        %v4327 = vld [vmem:[#allocation2 + $0xb8] sm:$0xff]
        %v4328 = vld [vmem:[#allocation2 + $0xc0] sm:$0xff]
        %v4329 = vld [vmem:[#allocation2 + $0xc8] sm:$0xff]
        %v4330 = vld [vmem:[#allocation2 + $0xd0] sm:$0xff]
        %v4331 = vld [vmem:[#allocation2 + $0xd8] sm:$0xff]
        %v4332 = vld [vmem:[#allocation2 + $0xe0] sm:$0xff]
        %v4333 = vld [vmem:[#allocation2 + $0xe8] sm:$0xff]
        %v4334 = vld [vmem:[#allocation2 + $0xf0] sm:$0xff]
        %v4335 = vld [vmem:[#allocation2 + $0xf8] sm:$0xff]
        %4336 = vst.msk [vmem:[%s181] sm:$0xff] %vm182, %v4304
        %4337 = vst.msk [vmem:[%s181 + $0x8] sm:$0xff] %vm182, %v4305
        %4338 = vst.msk [vmem:[%s181 + $0x10] sm:$0xff] %vm182, %v4306
        %4339 = vst.msk [vmem:[%s181 + $0x18] sm:$0xff] %vm182, %v4307
        %4340 = vst.msk [vmem:[%s181 + $0x20] sm:$0xff] %vm182, %v4308
        %4341 = vst.msk [vmem:[%s181 + $0x28] sm:$0xff] %vm182, %v4309
        %4342 = vst.msk [vmem:[%s181 + $0x30] sm:$0xff] %vm182, %v4310
        %4343 = vst.msk [vmem:[%s181 + $0x38] sm:$0xff] %vm182, %v4311
        %4344 = vst.msk [vmem:[%s181 + $0x40] sm:$0xff] %vm182, %v4312
        %4345 = vst.msk [vmem:[%s181 + $0x48] sm:$0xff] %vm182, %v4313
        %4346 = vst.msk [vmem:[%s181 + $0x50] sm:$0xff] %vm182, %v4314
        %4347 = vst.msk [vmem:[%s181 + $0x58] sm:$0xff] %vm182, %v4315
        %4348 = vst.msk [vmem:[%s181 + $0x60] sm:$0xff] %vm182, %v4316
        %4349 = vst.msk [vmem:[%s181 + $0x68] sm:$0xff] %vm182, %v4317
        %4350 = vst.msk [vmem:[%s181 + $0x70] sm:$0xff] %vm182, %v4318
        %4351 = vst.msk [vmem:[%s181 + $0x78] sm:$0xff] %vm182, %v4319
        %4352 = vst.msk [vmem:[%s181 + $0x80] sm:$0xff] %vm182, %v4320
        %4353 = vst.msk [vmem:[%s181 + $0x88] sm:$0xff] %vm182, %v4321
        %4354 = vst.msk [vmem:[%s181 + $0x90] sm:$0xff] %vm182, %v4322
        %4355 = vst.msk [vmem:[%s181 + $0x98] sm:$0xff] %vm182, %v4323
        %4356 = vst.msk [vmem:[%s181 + $0xa0] sm:$0xff] %vm182, %v4324
        %4357 = vst.msk [vmem:[%s181 + $0xa8] sm:$0xff] %vm182, %v4325
        %4358 = vst.msk [vmem:[%s181 + $0xb0] sm:$0xff] %vm182, %v4326
        %4359 = vst.msk [vmem:[%s181 + $0xb8] sm:$0xff] %vm182, %v4327
        %4360 = vst.msk [vmem:[%s181 + $0xc0] sm:$0xff] %vm182, %v4328
        %4361 = vst.msk [vmem:[%s181 + $0xc8] sm:$0xff] %vm182, %v4329
        %4362 = vst.msk [vmem:[%s181 + $0xd0] sm:$0xff] %vm182, %v4330
        %4363 = vst.msk [vmem:[%s181 + $0xd8] sm:$0xff] %vm182, %v4331
        %4364 = vst.msk [vmem:[%s181 + $0xe0] sm:$0xff] %vm182, %v4332
        %4365 = vst.msk [vmem:[%s181 + $0xe8] sm:$0xff] %vm182, %v4333
        %4366 = vst.msk [vmem:[%s181 + $0xf0] sm:$0xff] %vm182, %v4334
        %4367 = vst.msk [vmem:[%s181 + $0xf8] sm:$0xff] %vm182, %v4335
        %v4368 = vsel %vm182, %v4304, 0.0
        %v4369 = vsel %vm182, %v4305, 0.0
        %v4370 = vadd.f32 %v4368, %v4369
        %v4371 = vsel %vm182, %v4306, 0.0
        %v4372 = vadd.f32 %v4370, %v4371
        %v4373 = vsel %vm182, %v4307, 0.0
        %v4374 = vadd.f32 %v4372, %v4373
        %v4375 = vsel %vm182, %v4308, 0.0
        %v4376 = vadd.f32 %v4374, %v4375
        %v4377 = vsel %vm182, %v4309, 0.0
        %v4378 = vadd.f32 %v4376, %v4377
        %v4379 = vsel %vm182, %v4310, 0.0
        %v4380 = vadd.f32 %v4378, %v4379
        %v4381 = vsel %vm182, %v4311, 0.0
        %v4382 = vadd.f32 %v4380, %v4381
        %v4383 = vsel %vm182, %v4312, 0.0
        %v4384 = vadd.f32 %v4382, %v4383
        %v4385 = vsel %vm182, %v4313, 0.0
        %v4386 = vadd.f32 %v4384, %v4385
        %v4387 = vsel %vm182, %v4314, 0.0
        %v4388 = vadd.f32 %v4386, %v4387
        %v4389 = vsel %vm182, %v4315, 0.0
        %v4390 = vadd.f32 %v4388, %v4389
        %v4391 = vsel %vm182, %v4316, 0.0
        %v4392 = vadd.f32 %v4390, %v4391
        %v4393 = vsel %vm182, %v4317, 0.0
        %v4394 = vadd.f32 %v4392, %v4393
        %v4395 = vsel %vm182, %v4318, 0.0
        %v4396 = vadd.f32 %v4394, %v4395
        %v4397 = vsel %vm182, %v4319, 0.0
        %v4398 = vadd.f32 %v4396, %v4397
        %v4399 = vsel %vm182, %v4320, 0.0
        %v4400 = vadd.f32 %v4398, %v4399
        %v4401 = vsel %vm182, %v4321, 0.0
        %v4402 = vadd.f32 %v4400, %v4401
        %v4403 = vsel %vm182, %v4322, 0.0
        %v4404 = vadd.f32 %v4402, %v4403
        %v4405 = vsel %vm182, %v4323, 0.0
        %v4406 = vadd.f32 %v4404, %v4405
        %v4407 = vsel %vm182, %v4324, 0.0
        %v4408 = vadd.f32 %v4406, %v4407
        %v4409 = vsel %vm182, %v4325, 0.0
        %v4410 = vadd.f32 %v4408, %v4409
        %v4411 = vsel %vm182, %v4326, 0.0
        %v4412 = vadd.f32 %v4410, %v4411
        %v4413 = vsel %vm182, %v4327, 0.0
        %v4414 = vadd.f32 %v4412, %v4413
        %v4415 = vsel %vm182, %v4328, 0.0
        %v4416 = vadd.f32 %v4414, %v4415
        %v4417 = vsel %vm182, %v4329, 0.0
        %v4418 = vadd.f32 %v4416, %v4417
        %v4419 = vsel %vm182, %v4330, 0.0
        %v4420 = vadd.f32 %v4418, %v4419
        %v4421 = vsel %vm182, %v4331, 0.0
        %v4422 = vadd.f32 %v4420, %v4421
        %v4423 = vsel %vm182, %v4332, 0.0
        %v4424 = vadd.f32 %v4422, %v4423
        %v4425 = vsel %vm182, %v4333, 0.0
        %v4426 = vadd.f32 %v4424, %v4425
        %v4427 = vsel %vm182, %v4334, 0.0
        %v4428 = vadd.f32 %v4426, %v4427
        %v4429 = vsel %vm182, %v4335, 0.0
        %v4430 = vadd.f32 %v4428, %v4429
        %v4431 = vrot.slane %v4430, 4
        %v4432 = vadd.f32 %v4430, %v4431
        %v4433 = vrot.slane %v4432, 2
        %v4434 = vadd.f32 %v4432, %v4433
        %v4435 = vrot.slane %v4434, 1
        %v4436 = vadd.f32 %v4434, %v4435
        %vm4437 = vcmask 57344
        %4438 = vst.msk [vmem:[%s171] sm:$0x1] %vm4437, %v4436
        %v4439 = vmul.f32 %v4304, %v4304
        %v4440 = vmul.f32 %v4305, %v4305
        %v4441 = vmul.f32 %v4306, %v4306
        %v4442 = vmul.f32 %v4307, %v4307
        %v4443 = vmul.f32 %v4308, %v4308
        %v4444 = vmul.f32 %v4309, %v4309
        %v4445 = vmul.f32 %v4310, %v4310
        %v4446 = vmul.f32 %v4311, %v4311
        %v4447 = vmul.f32 %v4312, %v4312
        %v4448 = vmul.f32 %v4313, %v4313
        %v4449 = vmul.f32 %v4314, %v4314
        %v4450 = vmul.f32 %v4315, %v4315
        %v4451 = vmul.f32 %v4316, %v4316
        %v4452 = vmul.f32 %v4317, %v4317
        %v4453 = vmul.f32 %v4318, %v4318
        %v4454 = vmul.f32 %v4319, %v4319
        %v4455 = vmul.f32 %v4320, %v4320
        %v4456 = vmul.f32 %v4321, %v4321
        %v4457 = vmul.f32 %v4322, %v4322
        %v4458 = vmul.f32 %v4323, %v4323
        %v4459 = vmul.f32 %v4324, %v4324
        %v4460 = vmul.f32 %v4325, %v4325
        %v4461 = vmul.f32 %v4326, %v4326
        %v4462 = vmul.f32 %v4327, %v4327
        %v4463 = vmul.f32 %v4328, %v4328
        %v4464 = vmul.f32 %v4329, %v4329
        %v4465 = vmul.f32 %v4330, %v4330
        %v4466 = vmul.f32 %v4331, %v4331
        %v4467 = vmul.f32 %v4332, %v4332
        %v4468 = vmul.f32 %v4333, %v4333
        %v4469 = vmul.f32 %v4334, %v4334
        %v4470 = vmul.f32 %v4335, %v4335
        %v4471 = vsel %vm182, %v4439, 0.0
        %v4472 = vsel %vm182, %v4440, 0.0
        %v4473 = vadd.f32 %v4471, %v4472
        %v4474 = vsel %vm182, %v4441, 0.0
        %v4475 = vadd.f32 %v4473, %v4474
        %v4476 = vsel %vm182, %v4442, 0.0
        %v4477 = vadd.f32 %v4475, %v4476
        %v4478 = vsel %vm182, %v4443, 0.0
        %v4479 = vadd.f32 %v4477, %v4478
        %v4480 = vsel %vm182, %v4444, 0.0
        %v4481 = vadd.f32 %v4479, %v4480
        %v4482 = vsel %vm182, %v4445, 0.0
        %v4483 = vadd.f32 %v4481, %v4482
        %v4484 = vsel %vm182, %v4446, 0.0
        %v4485 = vadd.f32 %v4483, %v4484
        %v4486 = vsel %vm182, %v4447, 0.0
        %v4487 = vadd.f32 %v4485, %v4486
        %v4488 = vsel %vm182, %v4448, 0.0
        %v4489 = vadd.f32 %v4487, %v4488
        %v4490 = vsel %vm182, %v4449, 0.0
        %v4491 = vadd.f32 %v4489, %v4490
        %v4492 = vsel %vm182, %v4450, 0.0
        %v4493 = vadd.f32 %v4491, %v4492
        %v4494 = vsel %vm182, %v4451, 0.0
        %v4495 = vadd.f32 %v4493, %v4494
        %v4496 = vsel %vm182, %v4452, 0.0
        %v4497 = vadd.f32 %v4495, %v4496
        %v4498 = vsel %vm182, %v4453, 0.0
        %v4499 = vadd.f32 %v4497, %v4498
        %v4500 = vsel %vm182, %v4454, 0.0
        %v4501 = vadd.f32 %v4499, %v4500
        %v4502 = vsel %vm182, %v4455, 0.0
        %v4503 = vadd.f32 %v4501, %v4502
        %v4504 = vsel %vm182, %v4456, 0.0
        %v4505 = vadd.f32 %v4503, %v4504
        %v4506 = vsel %vm182, %v4457, 0.0
        %v4507 = vadd.f32 %v4505, %v4506
        %v4508 = vsel %vm182, %v4458, 0.0
        %v4509 = vadd.f32 %v4507, %v4508
        %v4510 = vsel %vm182, %v4459, 0.0
        %v4511 = vadd.f32 %v4509, %v4510
        %v4512 = vsel %vm182, %v4460, 0.0
        %v4513 = vadd.f32 %v4511, %v4512
        %v4514 = vsel %vm182, %v4461, 0.0
        %v4515 = vadd.f32 %v4513, %v4514
        %v4516 = vsel %vm182, %v4462, 0.0
        %v4517 = vadd.f32 %v4515, %v4516
        %v4518 = vsel %vm182, %v4463, 0.0
        %v4519 = vadd.f32 %v4517, %v4518
        %v4520 = vsel %vm182, %v4464, 0.0
        %v4521 = vadd.f32 %v4519, %v4520
        %v4522 = vsel %vm182, %v4465, 0.0
        %v4523 = vadd.f32 %v4521, %v4522
        %v4524 = vsel %vm182, %v4466, 0.0
        %v4525 = vadd.f32 %v4523, %v4524
        %v4526 = vsel %vm182, %v4467, 0.0
        %v4527 = vadd.f32 %v4525, %v4526
        %v4528 = vsel %vm182, %v4468, 0.0
        %v4529 = vadd.f32 %v4527, %v4528
        %v4530 = vsel %vm182, %v4469, 0.0
        %v4531 = vadd.f32 %v4529, %v4530
        %v4532 = vsel %vm182, %v4470, 0.0
        %v4533 = vadd.f32 %v4531, %v4532
        %v4534 = vrot.slane %v4533, 4
        %v4535 = vadd.f32 %v4533, %v4534
        %v4536 = vrot.slane %v4535, 2
        %v4537 = vadd.f32 %v4535, %v4536
        %v4538 = vrot.slane %v4537, 1
        %v4539 = vadd.f32 %v4537, %v4538
        %4540 = vst.msk [vmem:[%s171 + $0x1] sm:$0x1] %vm4437, %v4539
        %p4541 = scmp.lt.s32.totalorder %s18, 1
        %s4542 = scalar_select %p4541, %s18, 1
        %s4543 = smul.addr %s4542, 32
        %s4544 = smul.addr %s4543, 8
        %s4545 = scalar_lea.vmem %s2, %s4544
        %s4546 = sand.u32 %s99, 1
        %s4547 = scalar_lea.sflag [#allocation4], %s4546
        %s4548 = sand.u32 %s99, 1
        %s4549 = smul.addr %s4548, 2
        %s4550 = scalar_lea.vmem [#allocation3], %s4549
        // Predicated region
        $region29: #{tpu_custom_call.1} parent=27 // pred_check
          %p4551 = pneg %p83
        $region30: #{tpu_custom_call.1} parent=27 // pred_check_branch
          %4553 = sbr.rel (%p4551) target = $region32
        $region31: #{tpu_custom_call.1} parent=27 // pred_region
          _
        $region32: #{tpu_custom_call.1} parent=27 // pred_fallthru
          _
        // Predicated region
        $region33: #{tpu_custom_call.1} parent=27 // pred_check
          %p4554 = pneg %p109
        $region34: #{tpu_custom_call.1} parent=27 // pred_check_branch
          %4556 = sbr.rel (%p4554) target = $region36
        $region35: #{tpu_custom_call.1} parent=27 // pred_region
          %s4558 = ssub.s32 32, 32
          %4559 = vsyncadd %s4547, %s4558
          %s4560 = smul.addr %s18, 32
          %s4561 = scalar_lea.hbm %s3, %s4560
          %s4563 = sshll.u32 %s4550, 4
          %s4564 = int_to_ptr.vmem [resolvable:$true] %s4563
          %4566 = dma.vmem_to_hbm [thread:$0]  %s4564, 32, %s4561, %s4547
        $region36: #{tpu_custom_call.1} parent=27 // pred_fallthru
          _
      $region28: #{tpu_custom_call.1} parent=5 // pred_fallthru
        _
      %p4567 = scmp.le.s32.totalorder 2, %s13
      // Predicated region
      $region37: #{tpu_custom_call.1} parent=5 // pred_check
        %p4568 = pneg %p4567
      $region38: #{tpu_custom_call.1} parent=5 // pred_check_branch
        %4570 = sbr.rel (%p4568) target = $region40
      $region39: #{tpu_custom_call.1} parent=5 // pred_region
        %s4571 = ssub.s32 %s13, 2
        // Predicated region
        $region41: #{tpu_custom_call.1} parent=39 // pred_check
          %p4572 = pneg %p89
        $region42: #{tpu_custom_call.1} parent=39 // pred_check_branch
          %4574 = sbr.rel (%p4572) target = $region44
        $region43: #{tpu_custom_call.1} parent=39 // pred_region
          %p4575 = scmp.lt.s32.totalorder %s19, 1
          %s4576 = scalar_select %p4575, %s19, 1
          %s4577 = smul.addr %s4576, 32
          %s4578 = smul.addr %s4577, 8
          %s4579 = scalar_lea.vmem %s2, %s4578
        $region44: #{tpu_custom_call.1} parent=39 // pred_fallthru
          _
        // Predicated region
        $region45: #{tpu_custom_call.1} parent=39 // pred_check
          %p4580 = pneg %p115
        $region46: #{tpu_custom_call.1} parent=39 // pred_check_branch
          %4582 = sbr.rel (%p4580) target = $region48
        $region47: #{tpu_custom_call.1} parent=39 // pred_region
          %s4583 = sand.u32 %s100, 1
          %s4584 = scalar_lea.sflag [#allocation4], %s4583
          %s4585 = sand.u32 %s100, 1
          %s4586 = smul.addr %s4585, 2
          %s4587 = scalar_lea.vmem [#allocation3], %s4586
          %4588 = dma.done %s4584, 32
        $region48: #{tpu_custom_call.1} parent=39 // pred_fallthru
          _
      $region40: #{tpu_custom_call.1} parent=5 // pred_fallthru
        _
    $region6: #{tpu_custom_call.1} parent=1 // loop_footer
      %s17 = sadd.s32 1, %s13
    $region7: #{tpu_custom_call.1} parent=1 // loop_footer_branch
      %12 = sbr.rel target = $region3
    $region8: #{tpu_custom_call.1} parent=1 // loop_exit
      _
    %4589 = vsyncpa [#allocation4], 1
    %s4590 = scalar_lea.sflag [#allocation4], 1
    %4591 = vsyncpa %s4590, 1

</llo_original>
